<compile_context>
chip_gen: v7x
topology: tpu7x:2x2x1
jax: 0.10.0
libtpu: 0.0.40
codegen_flags: <defaults>
</compile_context>

<pallas_src>
import jax
import jax.numpy as jnp
from jax import lax
import numpy as np
from jax.experimental import pallas as pl
from jax.experimental.pallas import tpu as pltpu


# ----------------------------- neighbor averaging -----------------------------
# PyTorch per-node nonzero() gather + mean re-expressed densely as
#   avg_i = (x_i + sum_j mask_ij * x_j) / (1 + deg_i),  mask = (adj > 0)
# which is exactly equivalent (including self-loop double counting) and is a matmul.

def _agg_kernel(x_ref, adj_ref, out_ref):
    # x_ref : (N, D)  resident for the current batch element
    # adj_ref: (tm, N) row tile of the adjacency matrix
    # out_ref: (tm, D)
    tm = adj_ref.shape[0]
    r0 = pl.multiple_of(pl.program_id(1) * tm, tm)
    x_all = x_ref[...]
    mask = (adj_ref[...] > 0.0).astype(jnp.float32)
    deg = jnp.sum(mask, axis=-1, keepdims=True)                      # (tm, 1)
    x_self = x_ref[pl.ds(r0, tm), :]                                 # (tm, D)
    agg = x_self + jnp.dot(mask, x_all, preferred_element_type=jnp.float32)
    out_ref[...] = agg / (deg + 1.0)


def _pick_row_tile(N):
    if N <= 512:
        return N
    for t in (512, 256, 128, 64, 32, 16, 8):
        if N % t == 0:
            return t
    return N


def neighbor_average(x, adj):
    B, N, D = x.shape
    tm = _pick_row_tile(N)
    return pl.pallas_call(
        _agg_kernel,
        out_shape=jax.ShapeDtypeStruct((B, N, D), jnp.float32),
        grid=(B, N // tm),
        in_specs=[
            pl.BlockSpec((None, N, D), lambda b, r: (b, 0, 0)),      # x resident per batch
            pl.BlockSpec((None, tm, N), lambda b, r: (b, r, 0)),     # adj row tile
        ],
        out_specs=pl.BlockSpec((None, tm, D), lambda b, r: (b, r, 0)),
        compiler_params=pltpu.CompilerParams(
            dimension_semantics=("parallel", "parallel")),
    )(x.astype(jnp.float32), adj.astype(jnp.float32))


# --------------------- fused bidirectional LSTM layer kernel -------------------

def _bilstm_layer_kernel(seq_ref, wih_ref, whh_ref, b_ref, out_ref, hT_ref, gi_ref):
    # seq_ref : (S, T*B, Dk) time-major input parts (S=1 first layer, S=2 afterwards)
    # wih_ref : (S*Dk, 4H)   this direction's input weights   (pre-transposed)
    # whh_ref : (H, 4H)      this direction's recurrent weights (pre-transposed)
    # b_ref   : (1, 4H)      pre-summed bias (b_ih + b_hh)
    # out_ref : (T, B, H)    this direction's hidden states, stored in natural time
    #                        order (backward direction writes at index T-1-t)
    # hT_ref  : (B, H)       final hidden state of this direction
    # gi_ref  : (T*B, 4H)    scratch: hoisted input projection for all timesteps
    d = pl.program_id(0)                       # 0 = forward, 1 = backward
    S, TB, Dk = seq_ref.shape
    T, B, H = out_ref.shape

    # ---- hoisted input projection: one large MXU GEMM for all timesteps ----
    gi = jnp.dot(seq_ref[0], wih_ref[0:Dk, :], preferred_element_type=jnp.float32)
    for s in range(1, S):                      # static Python loop (S is 1 or 2)
        gi = gi + jnp.dot(seq_ref[s], wih_ref[s * Dk:(s + 1) * Dk, :],
                          preferred_element_type=jnp.float32)
    gi_ref[...] = gi + b_ref[...]              # bias broadcast once, outside the loop

    # ---- serial recurrence: small (B,H)x(H,4H) matmul + gate math per step ----
    whh = whh_ref[...]                         # hoisted weight load
    rev = d == 1

    def step(t, carry):
        h, c = carry
        tt = jnp.where(rev, T - 1 - t, t)      # backward dir reads reversed time
        row0 = pl.multiple_of(tt * B, B)
        gates = gi_ref[pl.ds(row0, B), :] + jnp.dot(
            h, whh, preferred_element_type=jnp.float32)            # (B, 4H)
        # PyTorch gate order: [i, f, g, o]
        i = jax.nn.sigmoid(gates[:, 0:H])
        f = jax.nn.sigmoid(gates[:, H:2 * H])
        g = jnp.tanh(gates[:, 2 * H:3 * H])
        o = jax.nn.sigmoid(gates[:, 3 * H:4 * H])
        c_new = f * c + i * g
        h_new = o * jnp.tanh(c_new)
        out_ref[tt] = h_new                    # backward dir writes pre-reversed
        return h_new, c_new

    h0 = jnp.zeros((B, H), jnp.float32)
    c0 = jnp.zeros((B, H), jnp.float32)
    unroll = True if T <= 16 else 8
    h_last, _ = lax.fori_loop(0, T, step, (h0, c0), unroll=unroll)
    hT_ref[...] = h_last


def bilstm_layer(seq, wih, whh, bias, *, T, B):
    """seq: (S, T*B, Dk) time-major; wih: (2, S*Dk, 4H); whh: (2, H, 4H); bias: (2, 1, 4H).
    Returns out: (2, T, B, H) per-direction hidden sequences and hT: (2, B, H) finals."""
    S, TB, Dk = seq.shape
    Din = wih.shape[1]
    H = whh.shape[1]
    G = 4 * H
    # TODO(synk): for long sequences, tile the T axis with a grid + carried h/c scratch
    # (and an "arbitrary" T axis) to bound VMEM on v7x's 64 MiB/TC instead of keeping
    # the whole (T*B, *) slabs resident.
    out, hT = pl.pallas_call(
        _bilstm_layer_kernel,
        out_shape=(jax.ShapeDtypeStruct((2, T, B, H), jnp.float32),
                   jax.ShapeDtypeStruct((2, B, H), jnp.float32)),
        grid=(2,),                                            # direction axis
        in_specs=[
            pl.BlockSpec((S, TB, Dk), lambda d: (0, 0, 0)),   # shared input, fetched once
            pl.BlockSpec((None, Din, G), lambda d: (d, 0, 0)),
            pl.BlockSpec((None, H, G), lambda d: (d, 0, 0)),
            pl.BlockSpec((None, 1, G), lambda d: (d, 0, 0)),
        ],
        out_specs=(
            pl.BlockSpec((None, T, B, H), lambda d: (d, 0, 0, 0)),
            pl.BlockSpec((None, B, H), lambda d: (d, 0, 0)),
        ),
        scratch_shapes=[pltpu.VMEM((TB, G), jnp.float32)],
        compiler_params=pltpu.CompilerParams(
            dimension_semantics=("parallel",)),               # both TCs on v7x
    )(seq, wih, whh, bias)
    return out, hT


# ------------------------------- parameters ------------------------------------

def init_lstm_params(key, input_size, hidden_size, num_layers):
    """PyTorch-layout LSTM parameters (used by the pure-JAX reference)."""
    k = 1.0 / np.sqrt(hidden_size)
    params = []
    for layer in range(num_layers):
        d_in = input_size if layer == 0 else 2 * hidden_size
        layer_params = {}
        for direction in ("f", "b"):
            key, k1, k2, k3, k4 = jax.random.split(key, 5)
            w_ih = jax.random.uniform(k1, (4 * hidden_size, d_in), jnp.float32, -k, k)
            w_hh = jax.random.uniform(k2, (4 * hidden_size, hidden_size), jnp.float32, -k, k)
            b_ih = jax.random.uniform(k3, (4 * hidden_size,), jnp.float32, -k, k)
            b_hh = jax.random.uniform(k4, (4 * hidden_size,), jnp.float32, -k, k)
            layer_params[direction] = (w_ih, w_hh, b_ih + b_hh)
        params.append(layer_params)
    return params


def pack_lstm_params(raw_params):
    """One-time packing for the kernels: per layer (wih, whh, bias) stacked over
    direction, weights pre-transposed, biases pre-summed (no per-call transposes)."""
    packed = []
    for layer in raw_params:
        w_ih_f, w_hh_f, b_f = layer["f"]
        w_ih_b, w_hh_b, b_b = layer["b"]
        wih = jnp.stack([w_ih_f.T, w_ih_b.T])                 # (2, Din, 4H)
        whh = jnp.stack([w_hh_f.T, w_hh_b.T])                 # (2, H, 4H)
        bias = jnp.stack([b_f[None, :], b_b[None, :]])        # (2, 1, 4H)
        packed.append((wih, whh, bias))
    return packed


# ------------------------------- full ARNN --------------------------------------

def arnn_forward(x, adj, packed_params):
    B, N, D = x.shape
    T = N
    feats = neighbor_average(x, adj)                          # (B, T, D)
    # time-major once; (1, T*B, D) for the hoisted input GEMM.
    seq = jnp.swapaxes(feats, 0, 1).reshape(1, T * B, D)
    hT = None
    for wih, whh, bias in packed_params:
        out, hT = bilstm_layer(seq, wih, whh, bias, T=T, B=B)
        H = whh.shape[1]
        # (2, T, B, H) -> (2, T*B, H): contiguous merge (free), no concat / reverse.
        seq = out.reshape(2, T * B, H)
    # hn[-2] (forward final) ++ hn[-1] (backward final) of the last layer.
    return jnp.concatenate([hT[0], hT[1]], axis=-1)           # (B, 2H)


# --------------------------- pure-JAX reference ----------------------------------

def ref_forward(x, adj, params):
    x = x.astype(jnp.float32)
    mask = (adj.astype(jnp.float32) > 0).astype(jnp.float32)
    deg = mask.sum(-1, keepdims=True)
    seq = (x + jnp.einsum('bij,bjd->bid', mask, x)) / (deg + 1.0)

    def run_dir(seq, w_ih, w_hh, b):
        B, _, _ = seq.shape
        H = w_hh.shape[1]

        def step(carry, x_t):
            h, c = carry
            g = x_t @ w_ih.T + h @ w_hh.T + b
            i = jax.nn.sigmoid(g[:, :H])
            f = jax.nn.sigmoid(g[:, H:2 * H])
            gg = jnp.tanh(g[:, 2 * H:3 * H])
            o = jax.nn.sigmoid(g[:, 3 * H:4 * H])
            c = f * c + i * gg
            h = o * jnp.tanh(c)
            return (h, c), h

        (h, _), outs = lax.scan(step,
                                (jnp.zeros((B, H), jnp.float32),
                                 jnp.zeros((B, H), jnp.float32)),
                                jnp.swapaxes(seq, 0, 1))
        return jnp.swapaxes(outs, 0, 1), h

    h_f = h_b = None
    for layer in params:
        out_f, h_f = run_dir(seq, *layer["f"])
        out_b_rev, h_b = run_dir(seq[:, ::-1], *layer["b"])
        out_b = out_b_rev[:, ::-1]
        seq = jnp.concatenate([out_f, out_b], axis=-1)
    return jnp.concatenate([h_f, h_b], axis=-1)


# ----------------------------------- main ----------------------------------------

if __name__ == "__main__":
    B, N, D, H, L = 2, 8, 16, 32, 2   # batch, num_nodes(seq), input_size, hidden, layers
    key = jax.random.PRNGKey(0)
    kx, kadj, kp = jax.random.split(key, 3)
    x = jax.random.normal(kx, (B, N, D), jnp.float32)
    adj = jax.random.bernoulli(kadj, 0.4, (B, N, N)).astype(jnp.float32)
    raw_params = init_lstm_params(kp, D, H, L)
    packed = pack_lstm_params(raw_params)

    fwd = jax.jit(arnn_forward)
    out = jax.block_until_ready(fwd(x, adj, packed))
    ref = jax.block_until_ready(ref_forward(x, adj, raw_params))

    assert out.shape == (B, 2 * H)
    np.testing.assert_allclose(np.asarray(out), np.asarray(ref), rtol=1e-4, atol=1e-4)
    print("KERNEL_OK")
</pallas_src>

<mosaic_0001>
module attributes {stable_mosaic.version = 11 : i64} {
  func.func @_agg_kernel(%arg0: i32, %arg1: i32, %arg2: memref<1x8x16xf32, #tpu.memory_space<vmem>>, %arg3: memref<1x8x8xf32, #tpu.memory_space<vmem>>, %arg4: memref<1x8x16xf32, #tpu.memory_space<vmem>>) attributes {dimension_semantics = [#tpu.dimension_semantics<parallel>, #tpu.dimension_semantics<parallel>], iteration_bounds = array<i64: 2, 1>, scalar_prefetch = 0 : i64, scratch_operands = 0 : i64, tpu.core_type = #tpu.core_type<tc>, window_params = [{transform_indices = @transform_0, window_bounds = array<i64: 1, 8, 16>}, {transform_indices = @transform_1, window_bounds = array<i64: 1, 8, 8>}, {transform_indices = @transform_2, window_bounds = array<i64: 1, 8, 16>}]} {
    %c8_i32 = arith.constant 8 : i32
    %0 = arith.muli %arg1, %c8_i32 : i32
    %1 = tpu.assume_multiple %0, 8 : i32
    %c0 = arith.constant 0 : index
    %c0_0 = arith.constant 0 : index
    %c0_1 = arith.constant 0 : index
    %2 = vector.load %arg2[%c0, %c0_0, %c0_1] : memref<1x8x16xf32, #tpu.memory_space<vmem>>, vector<1x8x16xf32>
    %3 = vector.shape_cast %2 : vector<1x8x16xf32> to vector<8x16xf32>
    %c0_2 = arith.constant 0 : index
    %c0_3 = arith.constant 0 : index
    %c0_4 = arith.constant 0 : index
    %4 = vector.load %arg3[%c0_2, %c0_3, %c0_4] : memref<1x8x8xf32, #tpu.memory_space<vmem>>, vector<1x8x8xf32>
    %5 = vector.shape_cast %4 : vector<1x8x8xf32> to vector<8x8xf32>
    %cst = arith.constant 0.000000e+00 : f32
    %6 = vector.broadcast %cst : f32 to vector<8x8xf32>
    %7 = arith.cmpf ogt, %5, %6 : vector<8x8xf32>
    %8 = arith.extui %7 : vector<8x8xi1> to vector<8x8xi32>
    %9 = arith.sitofp %8 : vector<8x8xi32> to vector<8x8xf32>
    %cst_5 = arith.constant dense<0.000000e+00> : vector<8xf32>
    %10 = vector.multi_reduction <add>, %9, %cst_5 [1] : vector<8x8xf32> to vector<8xf32>
    %11 = vector.shape_cast %10 : vector<8xf32> to vector<8x1xf32>
    %c0_6 = arith.constant 0 : index
    %12 = arith.index_cast %1 : i32 to index
    %c0_7 = arith.constant 0 : index
    %13 = vector.load %arg2[%c0_6, %12, %c0_7] : memref<1x8x16xf32, #tpu.memory_space<vmem>>, vector<1x8x16xf32>
    %14 = vector.shape_cast %13 : vector<1x8x16xf32> to vector<8x16xf32>
    %cst_8 = arith.constant dense<0.000000e+00> : vector<8x16xf32>
    %15 = tpu.matmul %9, %3, %cst_8 {dimension_numbers = #tpu.dot_dimension_numbers<[1], [0], [0], [1], [0, 0, 1, 1], [], []>} : vector<8x8xf32>, vector<8x16xf32>, vector<8x16xf32> -> vector<8x16xf32>
    %16 = arith.addf %14, %15 : vector<8x16xf32>
    %cst_9 = arith.constant 1.000000e+00 : f32
    %17 = vector.broadcast %cst_9 : f32 to vector<8x1xf32>
    %18 = arith.addf %11, %17 : vector<8x1xf32>
    %19 = vector.broadcast %18 : vector<8x1xf32> to vector<8x16xf32>
    %20 = arith.divf %16, %19 : vector<8x16xf32>
    %c0_10 = arith.constant 0 : index
    %c0_11 = arith.constant 0 : index
    %c0_12 = arith.constant 0 : index
    %21 = vector.load %arg4[%c0_10, %c0_11, %c0_12] : memref<1x8x16xf32, #tpu.memory_space<vmem>>, vector<1x8x16xf32>
    %22 = vector.shape_cast %21 : vector<1x8x16xf32> to vector<8x16xf32>
    %23 = vector.shape_cast %20 : vector<8x16xf32> to vector<1x8x16xf32>
    tpu.vector_store %arg4[%c0_10, %c0_11, %c0_12], %23 {strides = array<i32>} : memref<1x8x16xf32, #tpu.memory_space<vmem>>, vector<1x8x16xf32>,
    return
  }
  func.func @transform_0(%arg0: i32, %arg1: i32) -> (i32, i32, i32) {
    %c0_i32 = arith.constant 0 : i32
    %c0_i32_0 = arith.constant 0 : i32
    %c0_i32_1 = arith.constant 0 : i32
    return %arg0, %c0_i32, %c0_i32_0 : i32, i32, i32
  }
  func.func @transform_1(%arg0: i32, %arg1: i32) -> (i32, i32, i32) {
    %c0_i32 = arith.constant 0 : i32
    %c0_i32_0 = arith.constant 0 : i32
    return %arg0, %arg1, %c0_i32 : i32, i32, i32
  }
  func.func @transform_2(%arg0: i32, %arg1: i32) -> (i32, i32, i32) {
    %c0_i32 = arith.constant 0 : i32
    %c0_i32_0 = arith.constant 0 : i32
    return %arg0, %arg1, %c0_i32 : i32, i32, i32
  }
}

module attributes {stable_mosaic.version = 11 : i64} {
  func.func @_bilstm_layer_kernel(%arg0: i32, %arg1: memref<2x16x32xf32, #tpu.memory_space<vmem>>, %arg2: memref<1x64x128xf32, #tpu.memory_space<vmem>>, %arg3: memref<1x32x128xf32, #tpu.memory_space<vmem>>, %arg4: memref<1x1x128xf32, #tpu.memory_space<vmem>>, %arg5: memref<1x8x2x32xf32, #tpu.memory_space<vmem>>, %arg6: memref<1x2x32xf32, #tpu.memory_space<vmem>>, %arg7: memref<16x128xf32, #tpu.memory_space<vmem>>) attributes {dimension_semantics = [#tpu.dimension_semantics<parallel>], iteration_bounds = array<i64: 2>, scalar_prefetch = 0 : i64, scratch_operands = 1 : i64, tpu.core_type = #tpu.core_type<tc>, window_params = [{pipeline_mode = #tpu.pipeline_mode<synchronous>, transform_indices = @transform_0, window_bounds = array<i64: 2, 16, 32>}, {transform_indices = @transform_1, window_bounds = array<i64: 1, 64, 128>}, {transform_indices = @transform_2, window_bounds = array<i64: 1, 32, 128>}, {transform_indices = @transform_3, window_bounds = array<i64: 1, 1, 128>}, {transform_indices = @transform_4, window_bounds = array<i64: 1, 8, 2, 32>}, {transform_indices = @transform_5, window_bounds = array<i64: 1, 2, 32>}]} {
    %c0 = arith.constant 0 : index
    %c0_0 = arith.constant 0 : index
    %c0_1 = arith.constant 0 : index
    %0 = vector.load %arg1[%c0, %c0_0, %c0_1] : memref<2x16x32xf32, #tpu.memory_space<vmem>>, vector<1x16x32xf32>
    %1 = vector.shape_cast %0 : vector<1x16x32xf32> to vector<16x32xf32>
    %c0_2 = arith.constant 0 : index
    %c0_3 = arith.constant 0 : index
    %c0_4 = arith.constant 0 : index
    %2 = vector.load %arg2[%c0_2, %c0_3, %c0_4] : memref<1x64x128xf32, #tpu.memory_space<vmem>>, vector<1x32x128xf32>
    %3 = vector.shape_cast %2 : vector<1x32x128xf32> to vector<32x128xf32>
    %cst = arith.constant dense<0.000000e+00> : vector<16x128xf32>
    %4 = tpu.matmul %1, %3, %cst {dimension_numbers = #tpu.dot_dimension_numbers<[1], [0], [0], [1], [0, 0, 1, 1], [], []>} : vector<16x32xf32>, vector<32x128xf32>, vector<16x128xf32> -> vector<16x128xf32>
    %c1 = arith.constant 1 : index
    %c0_5 = arith.constant 0 : index
    %c0_6 = arith.constant 0 : index
    %5 = vector.load %arg1[%c1, %c0_5, %c0_6] : memref<2x16x32xf32, #tpu.memory_space<vmem>>, vector<1x16x32xf32>
    %6 = vector.shape_cast %5 : vector<1x16x32xf32> to vector<16x32xf32>
    %c0_7 = arith.constant 0 : index
    %c32 = arith.constant 32 : index
    %c0_8 = arith.constant 0 : index
    %7 = vector.load %arg2[%c0_7, %c32, %c0_8] : memref<1x64x128xf32, #tpu.memory_space<vmem>>, vector<1x32x128xf32>
    %8 = vector.shape_cast %7 : vector<1x32x128xf32> to vector<32x128xf32>
    %cst_9 = arith.constant dense<0.000000e+00> : vector<16x128xf32>
    %9 = tpu.matmul %6, %8, %cst_9 {dimension_numbers = #tpu.dot_dimension_numbers<[1], [0], [0], [1], [0, 0, 1, 1], [], []>} : vector<16x32xf32>, vector<32x128xf32>, vector<16x128xf32> -> vector<16x128xf32>
    %10 = arith.addf %4, %9 : vector<16x128xf32>
    %c0_10 = arith.constant 0 : index
    %c0_11 = arith.constant 0 : index
    %c0_12 = arith.constant 0 : index
    %11 = vector.load %arg4[%c0_10, %c0_11, %c0_12] : memref<1x1x128xf32, #tpu.memory_space<vmem>>, vector<1x1x128xf32>
    %12 = vector.shape_cast %11 : vector<1x1x128xf32> to vector<1x128xf32>
    %13 = vector.broadcast %12 : vector<1x128xf32> to vector<16x128xf32>
    %14 = arith.addf %10, %13 : vector<16x128xf32>
    %c0_13 = arith.constant 0 : index
    %c0_14 = arith.constant 0 : index
    %15 = vector.load %arg7[%c0_13, %c0_14] : memref<16x128xf32, #tpu.memory_space<vmem>>, vector<16x128xf32>
    tpu.vector_store %arg7[%c0_13, %c0_14], %14 {strides = array<i32>} : memref<16x128xf32, #tpu.memory_space<vmem>>, vector<16x128xf32>,
    %c0_15 = arith.constant 0 : index
    %c0_16 = arith.constant 0 : index
    %c0_17 = arith.constant 0 : index
    %16 = vector.load %arg3[%c0_15, %c0_16, %c0_17] : memref<1x32x128xf32, #tpu.memory_space<vmem>>, vector<1x32x128xf32>
    %17 = vector.shape_cast %16 : vector<1x32x128xf32> to vector<32x128xf32>
    %c1_i32 = arith.constant 1 : i32
    %18 = arith.cmpi eq, %arg0, %c1_i32 : i32
    %cst_18 = arith.constant 0.000000e+00 : f32
    %19 = vector.broadcast %cst_18 : f32 to vector<2x32xf32>
    %cst_19 = arith.constant 0.000000e+00 : f32
    %20 = vector.broadcast %cst_19 : f32 to vector<2x32xf32>
    %c0_i32 = arith.constant 0 : i32
    %c7_i32 = arith.constant 7 : i32
    %21 = arith.subi %c7_i32, %c0_i32 : i32
    %22 = arith.select %18, %21, %c0_i32 : i32
    %c2_i32 = arith.constant 2 : i32
    %23 = arith.muli %22, %c2_i32 : i32
    %24 = tpu.assume_multiple %23, 2 : i32
    %25 = arith.index_cast %24 : i32 to index
    %c0_20 = arith.constant 0 : index
    %26 = vector.load %arg7[%25, %c0_20] : memref<16x128xf32, #tpu.memory_space<vmem>>, vector<2x128xf32>
    %cst_21 = arith.constant dense<0.000000e+00> : vector<2x128xf32>
    %27 = tpu.matmul %19, %17, %cst_21 {dimension_numbers = #tpu.dot_dimension_numbers<[1], [0], [0], [1], [0, 0, 1, 1], [], []>} : vector<2x32xf32>, vector<32x128xf32>, vector<2x128xf32> -> vector<2x128xf32>
    %28 = arith.addf %26, %27 : vector<2x128xf32>
    %29 = vector.extract_strided_slice %28 {offsets = [0, 0], sizes = [2, 32], strides = [1, 1]} : vector<2x128xf32> to vector<2x32xf32>
    %30 = arith.negf %29 : vector<2x32xf32>
    %31 = math.exp %30 : vector<2x32xf32>
    %cst_22 = arith.constant 1.000000e+00 : f32
    %32 = vector.broadcast %cst_22 : f32 to vector<2x32xf32>
    %33 = arith.addf %32, %31 : vector<2x32xf32>
    %34 = arith.divf %32, %33 : vector<2x32xf32>
    %35 = vector.extract_strided_slice %28 {offsets = [0, 32], sizes = [2, 32], strides = [1, 1]} : vector<2x128xf32> to vector<2x32xf32>
    %36 = arith.negf %35 : vector<2x32xf32>
    %37 = math.exp %36 : vector<2x32xf32>
    %cst_23 = arith.constant 1.000000e+00 : f32
    %38 = vector.broadcast %cst_23 : f32 to vector<2x32xf32>
    %39 = arith.addf %38, %37 : vector<2x32xf32>
    %40 = arith.divf %38, %39 : vector<2x32xf32>
    %41 = vector.extract_strided_slice %28 {offsets = [0, 64], sizes = [2, 32], strides = [1, 1]} : vector<2x128xf32> to vector<2x32xf32>
    %42 = math.tanh %41 : vector<2x32xf32>
    %43 = vector.extract_strided_slice %28 {offsets = [0, 96], sizes = [2, 32], strides = [1, 1]} : vector<2x128xf32> to vector<2x32xf32>
    %44 = arith.negf %43 : vector<2x32xf32>
    %45 = math.exp %44 : vector<2x32xf32>
    %cst_24 = arith.constant 1.000000e+00 : f32
    %46 = vector.broadcast %cst_24 : f32 to vector<2x32xf32>
    %47 = arith.addf %46, %45 : vector<2x32xf32>
    %48 = arith.divf %46, %47 : vector<2x32xf32>
    %49 = arith.mulf %40, %20 : vector<2x32xf32>
    %50 = arith.mulf %34, %42 : vector<2x32xf32>
    %51 = arith.addf %49, %50 : vector<2x32xf32>
    %52 = math.tanh %51 : vector<2x32xf32>
    %53 = arith.mulf %48, %52 : vector<2x32xf32>
    %c0_25 = arith.constant 0 : index
    %54 = arith.index_cast %22 : i32 to index
    %c0_26 = arith.constant 0 : index
    %c0_27 = arith.constant 0 : index
    %55 = vector.load %arg5[%c0_25, %54, %c0_26, %c0_27] : memref<1x8x2x32xf32, #tpu.memory_space<vmem>>, vector<1x1x2x32xf32>
    %56 = vector.shape_cast %55 : vector<1x1x2x32xf32> to vector<2x32xf32>
    %57 = vector.shape_cast %53 : vector<2x32xf32> to vector<1x1x2x32xf32>
    tpu.vector_store %arg5[%c0_25, %54, %c0_26, %c0_27], %57 {strides = array<i32>} : memref<1x8x2x32xf32, #tpu.memory_space<vmem>>, vector<1x1x2x32xf32>,
    %c1_i32_28 = arith.constant 1 : i32
    %c7_i32_29 = arith.constant 7 : i32
    %58 = arith.subi %c7_i32_29, %c1_i32_28 : i32
    %59 = arith.select %18, %58, %c1_i32_28 : i32
    %c2_i32_30 = arith.constant 2 : i32
    %60 = arith.muli %59, %c2_i32_30 : i32
    %61 = tpu.assume_multiple %60, 2 : i32
    %62 = arith.index_cast %61 : i32 to index
    %c0_31 = arith.constant 0 : index
    %63 = vector.load %arg7[%62, %c0_31] : memref<16x128xf32, #tpu.memory_space<vmem>>, vector<2x128xf32>
    %cst_32 = arith.constant dense<0.000000e+00> : vector<2x128xf32>
    %64 = tpu.matmul %53, %17, %cst_32 {dimension_numbers = #tpu.dot_dimension_numbers<[1], [0], [0], [1], [0, 0, 1, 1], [], []>} : vector<2x32xf32>, vector<32x128xf32>, vector<2x128xf32> -> vector<2x128xf32>
    %65 = arith.addf %63, %64 : vector<2x128xf32>
    %66 = vector.extract_strided_slice %65 {offsets = [0, 0], sizes = [2, 32], strides = [1, 1]} : vector<2x128xf32> to vector<2x32xf32>
    %67 = arith.negf %66 : vector<2x32xf32>
    %68 = math.exp %67 : vector<2x32xf32>
    %cst_33 = arith.constant 1.000000e+00 : f32
    %69 = vector.broadcast %cst_33 : f32 to vector<2x32xf32>
    %70 = arith.addf %69, %68 : vector<2x32xf32>
    %71 = arith.divf %69, %70 : vector<2x32xf32>
    %72 = vector.extract_strided_slice %65 {offsets = [0, 32], sizes = [2, 32], strides = [1, 1]} : vector<2x128xf32> to vector<2x32xf32>
    %73 = arith.negf %72 : vector<2x32xf32>
    %74 = math.exp %73 : vector<2x32xf32>
    %cst_34 = arith.constant 1.000000e+00 : f32
    %75 = vector.broadcast %cst_34 : f32 to vector<2x32xf32>
    %76 = arith.addf %75, %74 : vector<2x32xf32>
    %77 = arith.divf %75, %76 : vector<2x32xf32>
    %78 = vector.extract_strided_slice %65 {offsets = [0, 64], sizes = [2, 32], strides = [1, 1]} : vector<2x128xf32> to vector<2x32xf32>
    %79 = math.tanh %78 : vector<2x32xf32>
    %80 = vector.extract_strided_slice %65 {offsets = [0, 96], sizes = [2, 32], strides = [1, 1]} : vector<2x128xf32> to vector<2x32xf32>
    %81 = arith.negf %80 : vector<2x32xf32>
    %82 = math.exp %81 : vector<2x32xf32>
    %cst_35 = arith.constant 1.000000e+00 : f32
    %83 = vector.broadcast %cst_35 : f32 to vector<2x32xf32>
    %84 = arith.addf %83, %82 : vector<2x32xf32>
    %85 = arith.divf %83, %84 : vector<2x32xf32>
    %86 = arith.mulf %77, %51 : vector<2x32xf32>
    %87 = arith.mulf %71, %79 : vector<2x32xf32>
    %88 = arith.addf %86, %87 : vector<2x32xf32>
    %89 = math.tanh %88 : vector<2x32xf32>
    %90 = arith.mulf %85, %89 : vector<2x32xf32>
    %c0_36 = arith.constant 0 : index
    %91 = arith.index_cast %59 : i32 to index
    %c0_37 = arith.constant 0 : index
    %c0_38 = arith.constant 0 : index
    %92 = vector.load %arg5[%c0_36, %91, %c0_37, %c0_38] : memref<1x8x2x32xf32, #tpu.memory_space<vmem>>, vector<1x1x2x32xf32>
    %93 = vector.shape_cast %92 : vector<1x1x2x32xf32> to vector<2x32xf32>
    %94 = vector.shape_cast %90 : vector<2x32xf32> to vector<1x1x2x32xf32>
    tpu.vector_store %arg5[%c0_36, %91, %c0_37, %c0_38], %94 {strides = array<i32>} : memref<1x8x2x32xf32, #tpu.memory_space<vmem>>, vector<1x1x2x32xf32>,
    %c2_i32_39 = arith.constant 2 : i32
    %c7_i32_40 = arith.constant 7 : i32
    %95 = arith.subi %c7_i32_40, %c2_i32_39 : i32
    %96 = arith.select %18, %95, %c2_i32_39 : i32
    %c2_i32_41 = arith.constant 2 : i32
    %97 = arith.muli %96, %c2_i32_41 : i32
    %98 = tpu.assume_multiple %97, 2 : i32
    %99 = arith.index_cast %98 : i32 to index
    %c0_42 = arith.constant 0 : index
    %100 = vector.load %arg7[%99, %c0_42] : memref<16x128xf32, #tpu.memory_space<vmem>>, vector<2x128xf32>
    %cst_43 = arith.constant dense<0.000000e+00> : vector<2x128xf32>
    %101 = tpu.matmul %90, %17, %cst_43 {dimension_numbers = #tpu.dot_dimension_numbers<[1], [0], [0], [1], [0, 0, 1, 1], [], []>} : vector<2x32xf32>, vector<32x128xf32>, vector<2x128xf32> -> vector<2x128xf32>
    %102 = arith.addf %100, %101 : vector<2x128xf32>
    %103 = vector.extract_strided_slice %102 {offsets = [0, 0], sizes = [2, 32], strides = [1, 1]} : vector<2x128xf32> to vector<2x32xf32>
    %104 = arith.negf %103 : vector<2x32xf32>
    %105 = math.exp %104 : vector<2x32xf32>
    %cst_44 = arith.constant 1.000000e+00 : f32
    %106 = vector.broadcast %cst_44 : f32 to vector<2x32xf32>
    %107 = arith.addf %106, %105 : vector<2x32xf32>
    %108 = arith.divf %106, %107 : vector<2x32xf32>
    %109 = vector.extract_strided_slice %102 {offsets = [0, 32], sizes = [2, 32], strides = [1, 1]} : vector<2x128xf32> to vector<2x32xf32>
    %110 = arith.negf %109 : vector<2x32xf32>
    %111 = math.exp %110 : vector<2x32xf32>
    %cst_45 = arith.constant 1.000000e+00 : f32
    %112 = vector.broadcast %cst_45 : f32 to vector<2x32xf32>
    %113 = arith.addf %112, %111 : vector<2x32xf32>
    %114 = arith.divf %112, %113 : vector<2x32xf32>
    %115 = vector.extract_strided_slice %102 {offsets = [0, 64], sizes = [2, 32], strides = [1, 1]} : vector<2x128xf32> to vector<2x32xf32>
    %116 = math.tanh %115 : vector<2x32xf32>
    %117 = vector.extract_strided_slice %102 {offsets = [0, 96], sizes = [2, 32], strides = [1, 1]} : vector<2x128xf32> to vector<2x32xf32>
    %118 = arith.negf %117 : vector<2x32xf32>
    %119 = math.exp %118 : vector<2x32xf32>
    %cst_46 = arith.constant 1.000000e+00 : f32
    %120 = vector.broadcast %cst_46 : f32 to vector<2x32xf32>
    %121 = arith.addf %120, %119 : vector<2x32xf32>
    %122 = arith.divf %120, %121 : vector<2x32xf32>
    %123 = arith.mulf %114, %88 : vector<2x32xf32>
    %124 = arith.mulf %108, %116 : vector<2x32xf32>
    %125 = arith.addf %123, %124 : vector<2x32xf32>
    %126 = math.tanh %125 : vector<2x32xf32>
    %127 = arith.mulf %122, %126 : vector<2x32xf32>
    %c0_47 = arith.constant 0 : index
    %128 = arith.index_cast %96 : i32 to index
    %c0_48 = arith.constant 0 : index
    %c0_49 = arith.constant 0 : index
    %129 = vector.load %arg5[%c0_47, %128, %c0_48, %c0_49] : memref<1x8x2x32xf32, #tpu.memory_space<vmem>>, vector<1x1x2x32xf32>
    %130 = vector.shape_cast %129 : vector<1x1x2x32xf32> to vector<2x32xf32>
    %131 = vector.shape_cast %127 : vector<2x32xf32> to vector<1x1x2x32xf32>
    tpu.vector_store %arg5[%c0_47, %128, %c0_48, %c0_49], %131 {strides = array<i32>} : memref<1x8x2x32xf32, #tpu.memory_space<vmem>>, vector<1x1x2x32xf32>,
    %c3_i32 = arith.constant 3 : i32
    %c7_i32_50 = arith.constant 7 : i32
    %132 = arith.subi %c7_i32_50, %c3_i32 : i32
    %133 = arith.select %18, %132, %c3_i32 : i32
    %c2_i32_51 = arith.constant 2 : i32
    %134 = arith.muli %133, %c2_i32_51 : i32
    %135 = tpu.assume_multiple %134, 2 : i32
    %136 = arith.index_cast %135 : i32 to index
    %c0_52 = arith.constant 0 : index
    %137 = vector.load %arg7[%136, %c0_52] : memref<16x128xf32, #tpu.memory_space<vmem>>, vector<2x128xf32>
    %cst_53 = arith.constant dense<0.000000e+00> : vector<2x128xf32>
    %138 = tpu.matmul %127, %17, %cst_53 {dimension_numbers = #tpu.dot_dimension_numbers<[1], [0], [0], [1], [0, 0, 1, 1], [], []>} : vector<2x32xf32>, vector<32x128xf32>, vector<2x128xf32> -> vector<2x128xf32>
    %139 = arith.addf %137, %138 : vector<2x128xf32>
    %140 = vector.extract_strided_slice %139 {offsets = [0, 0], sizes = [2, 32], strides = [1, 1]} : vector<2x128xf32> to vector<2x32xf32>
    %141 = arith.negf %140 : vector<2x32xf32>
    %142 = math.exp %141 : vector<2x32xf32>
    %cst_54 = arith.constant 1.000000e+00 : f32
    %143 = vector.broadcast %cst_54 : f32 to vector<2x32xf32>
    %144 = arith.addf %143, %142 : vector<2x32xf32>
    %145 = arith.divf %143, %144 : vector<2x32xf32>
    %146 = vector.extract_strided_slice %139 {offsets = [0, 32], sizes = [2, 32], strides = [1, 1]} : vector<2x128xf32> to vector<2x32xf32>
    %147 = arith.negf %146 : vector<2x32xf32>
    %148 = math.exp %147 : vector<2x32xf32>
    %cst_55 = arith.constant 1.000000e+00 : f32
    %149 = vector.broadcast %cst_55 : f32 to vector<2x32xf32>
    %150 = arith.addf %149, %148 : vector<2x32xf32>
    %151 = arith.divf %149, %150 : vector<2x32xf32>
    %152 = vector.extract_strided_slice %139 {offsets = [0, 64], sizes = [2, 32], strides = [1, 1]} : vector<2x128xf32> to vector<2x32xf32>
    %153 = math.tanh %152 : vector<2x32xf32>
    %154 = vector.extract_strided_slice %139 {offsets = [0, 96], sizes = [2, 32], strides = [1, 1]} : vector<2x128xf32> to vector<2x32xf32>
    %155 = arith.negf %154 : vector<2x32xf32>
    %156 = math.exp %155 : vector<2x32xf32>
    %cst_56 = arith.constant 1.000000e+00 : f32
    %157 = vector.broadcast %cst_56 : f32 to vector<2x32xf32>
    %158 = arith.addf %157, %156 : vector<2x32xf32>
    %159 = arith.divf %157, %158 : vector<2x32xf32>
    %160 = arith.mulf %151, %125 : vector<2x32xf32>
    %161 = arith.mulf %145, %153 : vector<2x32xf32>
    %162 = arith.addf %160, %161 : vector<2x32xf32>
    %163 = math.tanh %162 : vector<2x32xf32>
    %164 = arith.mulf %159, %163 : vector<2x32xf32>
    %c0_57 = arith.constant 0 : index
    %165 = arith.index_cast %133 : i32 to index
    %c0_58 = arith.constant 0 : index
    %c0_59 = arith.constant 0 : index
    %166 = vector.load %arg5[%c0_57, %165, %c0_58, %c0_59] : memref<1x8x2x32xf32, #tpu.memory_space<vmem>>, vector<1x1x2x32xf32>
    %167 = vector.shape_cast %166 : vector<1x1x2x32xf32> to vector<2x32xf32>
    %168 = vector.shape_cast %164 : vector<2x32xf32> to vector<1x1x2x32xf32>
    tpu.vector_store %arg5[%c0_57, %165, %c0_58, %c0_59], %168 {strides = array<i32>} : memref<1x8x2x32xf32, #tpu.memory_space<vmem>>, vector<1x1x2x32xf32>,
    %c4_i32 = arith.constant 4 : i32
    %c7_i32_60 = arith.constant 7 : i32
    %169 = arith.subi %c7_i32_60, %c4_i32 : i32
    %170 = arith.select %18, %169, %c4_i32 : i32
    %c2_i32_61 = arith.constant 2 : i32
    %171 = arith.muli %170, %c2_i32_61 : i32
    %172 = tpu.assume_multiple %171, 2 : i32
    %173 = arith.index_cast %172 : i32 to index
    %c0_62 = arith.constant 0 : index
    %174 = vector.load %arg7[%173, %c0_62] : memref<16x128xf32, #tpu.memory_space<vmem>>, vector<2x128xf32>
    %cst_63 = arith.constant dense<0.000000e+00> : vector<2x128xf32>
    %175 = tpu.matmul %164, %17, %cst_63 {dimension_numbers = #tpu.dot_dimension_numbers<[1], [0], [0], [1], [0, 0, 1, 1], [], []>} : vector<2x32xf32>, vector<32x128xf32>, vector<2x128xf32> -> vector<2x128xf32>
    %176 = arith.addf %174, %175 : vector<2x128xf32>
    %177 = vector.extract_strided_slice %176 {offsets = [0, 0], sizes = [2, 32], strides = [1, 1]} : vector<2x128xf32> to vector<2x32xf32>
    %178 = arith.negf %177 : vector<2x32xf32>
    %179 = math.exp %178 : vector<2x32xf32>
    %cst_64 = arith.constant 1.000000e+00 : f32
    %180 = vector.broadcast %cst_64 : f32 to vector<2x32xf32>
    %181 = arith.addf %180, %179 : vector<2x32xf32>
    %182 = arith.divf %180, %181 : vector<2x32xf32>
    %183 = vector.extract_strided_slice %176 {offsets = [0, 32], sizes = [2, 32], strides = [1, 1]} : vector<2x128xf32> to vector<2x32xf32>
    %184 = arith.negf %183 : vector<2x32xf32>
    %185 = math.exp %184 : vector<2x32xf32>
    %cst_65 = arith.constant 1.000000e+00 : f32
    %186 = vector.broadcast %cst_65 : f32 to vector<2x32xf32>
    %187 = arith.addf %186, %185 : vector<2x32xf32>
    %188 = arith.divf %186, %187 : vector<2x32xf32>
    %189 = vector.extract_strided_slice %176 {offsets = [0, 64], sizes = [2, 32], strides = [1, 1]} : vector<2x128xf32> to vector<2x32xf32>
    %190 = math.tanh %189 : vector<2x32xf32>
    %191 = vector.extract_strided_slice %176 {offsets = [0, 96], sizes = [2, 32], strides = [1, 1]} : vector<2x128xf32> to vector<2x32xf32>
    %192 = arith.negf %191 : vector<2x32xf32>
    %193 = math.exp %192 : vector<2x32xf32>
    %cst_66 = arith.constant 1.000000e+00 : f32
    %194 = vector.broadcast %cst_66 : f32 to vector<2x32xf32>
    %195 = arith.addf %194, %193 : vector<2x32xf32>
    %196 = arith.divf %194, %195 : vector<2x32xf32>
    %197 = arith.mulf %188, %162 : vector<2x32xf32>
    %198 = arith.mulf %182, %190 : vector<2x32xf32>
    %199 = arith.addf %197, %198 : vector<2x32xf32>
    %200 = math.tanh %199 : vector<2x32xf32>
    %201 = arith.mulf %196, %200 : vector<2x32xf32>
    %c0_67 = arith.constant 0 : index
    %202 = arith.index_cast %170 : i32 to index
    %c0_68 = arith.constant 0 : index
    %c0_69 = arith.constant 0 : index
    %203 = vector.load %arg5[%c0_67, %202, %c0_68, %c0_69] : memref<1x8x2x32xf32, #tpu.memory_space<vmem>>, vector<1x1x2x32xf32>
    %204 = vector.shape_cast %203 : vector<1x1x2x32xf32> to vector<2x32xf32>
    %205 = vector.shape_cast %201 : vector<2x32xf32> to vector<1x1x2x32xf32>
    tpu.vector_store %arg5[%c0_67, %202, %c0_68, %c0_69], %205 {strides = array<i32>} : memref<1x8x2x32xf32, #tpu.memory_space<vmem>>, vector<1x1x2x32xf32>,
    %c5_i32 = arith.constant 5 : i32
    %c7_i32_70 = arith.constant 7 : i32
    %206 = arith.subi %c7_i32_70, %c5_i32 : i32
    %207 = arith.select %18, %206, %c5_i32 : i32
    %c2_i32_71 = arith.constant 2 : i32
    %208 = arith.muli %207, %c2_i32_71 : i32
    %209 = tpu.assume_multiple %208, 2 : i32
    %210 = arith.index_cast %209 : i32 to index
    %c0_72 = arith.constant 0 : index
    %211 = vector.load %arg7[%210, %c0_72] : memref<16x128xf32, #tpu.memory_space<vmem>>, vector<2x128xf32>
    %cst_73 = arith.constant dense<0.000000e+00> : vector<2x128xf32>
    %212 = tpu.matmul %201, %17, %cst_73 {dimension_numbers = #tpu.dot_dimension_numbers<[1], [0], [0], [1], [0, 0, 1, 1], [], []>} : vector<2x32xf32>, vector<32x128xf32>, vector<2x128xf32> -> vector<2x128xf32>
    %213 = arith.addf %211, %212 : vector<2x128xf32>
    %214 = vector.extract_strided_slice %213 {offsets = [0, 0], sizes = [2, 32], strides = [1, 1]} : vector<2x128xf32> to vector<2x32xf32>
    %215 = arith.negf %214 : vector<2x32xf32>
    %216 = math.exp %215 : vector<2x32xf32>
    %cst_74 = arith.constant 1.000000e+00 : f32
    %217 = vector.broadcast %cst_74 : f32 to vector<2x32xf32>
    %218 = arith.addf %217, %216 : vector<2x32xf32>
    %219 = arith.divf %217, %218 : vector<2x32xf32>
    %220 = vector.extract_strided_slice %213 {offsets = [0, 32], sizes = [2, 32], strides = [1, 1]} : vector<2x128xf32> to vector<2x32xf32>
    %221 = arith.negf %220 : vector<2x32xf32>
    %222 = math.exp %221 : vector<2x32xf32>
    %cst_75 = arith.constant 1.000000e+00 : f32
    %223 = vector.broadcast %cst_75 : f32 to vector<2x32xf32>
    %224 = arith.addf %223, %222 : vector<2x32xf32>
    %225 = arith.divf %223, %224 : vector<2x32xf32>
    %226 = vector.extract_strided_slice %213 {offsets = [0, 64], sizes = [2, 32], strides = [1, 1]} : vector<2x128xf32> to vector<2x32xf32>
    %227 = math.tanh %226 : vector<2x32xf32>
    %228 = vector.extract_strided_slice %213 {offsets = [0, 96], sizes = [2, 32], strides = [1, 1]} : vector<2x128xf32> to vector<2x32xf32>
    %229 = arith.negf %228 : vector<2x32xf32>
    %230 = math.exp %229 : vector<2x32xf32>
    %cst_76 = arith.constant 1.000000e+00 : f32
    %231 = vector.broadcast %cst_76 : f32 to vector<2x32xf32>
    %232 = arith.addf %231, %230 : vector<2x32xf32>
    %233 = arith.divf %231, %232 : vector<2x32xf32>
    %234 = arith.mulf %225, %199 : vector<2x32xf32>
    %235 = arith.mulf %219, %227 : vector<2x32xf32>
    %236 = arith.addf %234, %235 : vector<2x32xf32>
    %237 = math.tanh %236 : vector<2x32xf32>
    %238 = arith.mulf %233, %237 : vector<2x32xf32>
    %c0_77 = arith.constant 0 : index
    %239 = arith.index_cast %207 : i32 to index
    %c0_78 = arith.constant 0 : index
    %c0_79 = arith.constant 0 : index
    %240 = vector.load %arg5[%c0_77, %239, %c0_78, %c0_79] : memref<1x8x2x32xf32, #tpu.memory_space<vmem>>, vector<1x1x2x32xf32>
    %241 = vector.shape_cast %240 : vector<1x1x2x32xf32> to vector<2x32xf32>
    %242 = vector.shape_cast %238 : vector<2x32xf32> to vector<1x1x2x32xf32>
    tpu.vector_store %arg5[%c0_77, %239, %c0_78, %c0_79], %242 {strides = array<i32>} : memref<1x8x2x32xf32, #tpu.memory_space<vmem>>, vector<1x1x2x32xf32>,
    %c6_i32 = arith.constant 6 : i32
    %c7_i32_80 = arith.constant 7 : i32
    %243 = arith.subi %c7_i32_80, %c6_i32 : i32
    %244 = arith.select %18, %243, %c6_i32 : i32
    %c2_i32_81 = arith.constant 2 : i32
    %245 = arith.muli %244, %c2_i32_81 : i32
    %246 = tpu.assume_multiple %245, 2 : i32
    %247 = arith.index_cast %246 : i32 to index
    %c0_82 = arith.constant 0 : index
    %248 = vector.load %arg7[%247, %c0_82] : memref<16x128xf32, #tpu.memory_space<vmem>>, vector<2x128xf32>
    %cst_83 = arith.constant dense<0.000000e+00> : vector<2x128xf32>
    %249 = tpu.matmul %238, %17, %cst_83 {dimension_numbers = #tpu.dot_dimension_numbers<[1], [0], [0], [1], [0, 0, 1, 1], [], []>} : vector<2x32xf32>, vector<32x128xf32>, vector<2x128xf32> -> vector<2x128xf32>
    %250 = arith.addf %248, %249 : vector<2x128xf32>
    %251 = vector.extract_strided_slice %250 {offsets = [0, 0], sizes = [2, 32], strides = [1, 1]} : vector<2x128xf32> to vector<2x32xf32>
    %252 = arith.negf %251 : vector<2x32xf32>
    %253 = math.exp %252 : vector<2x32xf32>
    %cst_84 = arith.constant 1.000000e+00 : f32
    %254 = vector.broadcast %cst_84 : f32 to vector<2x32xf32>
    %255 = arith.addf %254, %253 : vector<2x32xf32>
    %256 = arith.divf %254, %255 : vector<2x32xf32>
    %257 = vector.extract_strided_slice %250 {offsets = [0, 32], sizes = [2, 32], strides = [1, 1]} : vector<2x128xf32> to vector<2x32xf32>
    %258 = arith.negf %257 : vector<2x32xf32>
    %259 = math.exp %258 : vector<2x32xf32>
    %cst_85 = arith.constant 1.000000e+00 : f32
    %260 = vector.broadcast %cst_85 : f32 to vector<2x32xf32>
    %261 = arith.addf %260, %259 : vector<2x32xf32>
    %262 = arith.divf %260, %261 : vector<2x32xf32>
    %263 = vector.extract_strided_slice %250 {offsets = [0, 64], sizes = [2, 32], strides = [1, 1]} : vector<2x128xf32> to vector<2x32xf32>
    %264 = math.tanh %263 : vector<2x32xf32>
    %265 = vector.extract_strided_slice %250 {offsets = [0, 96], sizes = [2, 32], strides = [1, 1]} : vector<2x128xf32> to vector<2x32xf32>
    %266 = arith.negf %265 : vector<2x32xf32>
    %267 = math.exp %266 : vector<2x32xf32>
    %cst_86 = arith.constant 1.000000e+00 : f32
    %268 = vector.broadcast %cst_86 : f32 to vector<2x32xf32>
    %269 = arith.addf %268, %267 : vector<2x32xf32>
    %270 = arith.divf %268, %269 : vector<2x32xf32>
    %271 = arith.mulf %262, %236 : vector<2x32xf32>
    %272 = arith.mulf %256, %264 : vector<2x32xf32>
    %273 = arith.addf %271, %272 : vector<2x32xf32>
    %274 = math.tanh %273 : vector<2x32xf32>
    %275 = arith.mulf %270, %274 : vector<2x32xf32>
    %c0_87 = arith.constant 0 : index
    %276 = arith.index_cast %244 : i32 to index
    %c0_88 = arith.constant 0 : index
    %c0_89 = arith.constant 0 : index
    %277 = vector.load %arg5[%c0_87, %276, %c0_88, %c0_89] : memref<1x8x2x32xf32, #tpu.memory_space<vmem>>, vector<1x1x2x32xf32>
    %278 = vector.shape_cast %277 : vector<1x1x2x32xf32> to vector<2x32xf32>
    %279 = vector.shape_cast %275 : vector<2x32xf32> to vector<1x1x2x32xf32>
    tpu.vector_store %arg5[%c0_87, %276, %c0_88, %c0_89], %279 {strides = array<i32>} : memref<1x8x2x32xf32, #tpu.memory_space<vmem>>, vector<1x1x2x32xf32>,
    %c7_i32_90 = arith.constant 7 : i32
    %c7_i32_91 = arith.constant 7 : i32
    %280 = arith.subi %c7_i32_91, %c7_i32_90 : i32
    %281 = arith.select %18, %280, %c7_i32_90 : i32
    %c2_i32_92 = arith.constant 2 : i32
    %282 = arith.muli %281, %c2_i32_92 : i32
    %283 = tpu.assume_multiple %282, 2 : i32
    %284 = arith.index_cast %283 : i32 to index
    %c0_93 = arith.constant 0 : index
    %285 = vector.load %arg7[%284, %c0_93] : memref<16x128xf32, #tpu.memory_space<vmem>>, vector<2x128xf32>
    %cst_94 = arith.constant dense<0.000000e+00> : vector<2x128xf32>
    %286 = tpu.matmul %275, %17, %cst_94 {dimension_numbers = #tpu.dot_dimension_numbers<[1], [0], [0], [1], [0, 0, 1, 1], [], []>} : vector<2x32xf32>, vector<32x128xf32>, vector<2x128xf32> -> vector<2x128xf32>
    %287 = arith.addf %285, %286 : vector<2x128xf32>
    %288 = vector.extract_strided_slice %287 {offsets = [0, 0], sizes = [2, 32], strides = [1, 1]} : vector<2x128xf32> to vector<2x32xf32>
    %289 = arith.negf %288 : vector<2x32xf32>
    %290 = math.exp %289 : vector<2x32xf32>
    %cst_95 = arith.constant 1.000000e+00 : f32
    %291 = vector.broadcast %cst_95 : f32 to vector<2x32xf32>
    %292 = arith.addf %291, %290 : vector<2x32xf32>
    %293 = arith.divf %291, %292 : vector<2x32xf32>
    %294 = vector.extract_strided_slice %287 {offsets = [0, 32], sizes = [2, 32], strides = [1, 1]} : vector<2x128xf32> to vector<2x32xf32>
    %295 = arith.negf %294 : vector<2x32xf32>
    %296 = math.exp %295 : vector<2x32xf32>
    %cst_96 = arith.constant 1.000000e+00 : f32
    %297 = vector.broadcast %cst_96 : f32 to vector<2x32xf32>
    %298 = arith.addf %297, %296 : vector<2x32xf32>
    %299 = arith.divf %297, %298 : vector<2x32xf32>
    %300 = vector.extract_strided_slice %287 {offsets = [0, 64], sizes = [2, 32], strides = [1, 1]} : vector<2x128xf32> to vector<2x32xf32>
    %301 = math.tanh %300 : vector<2x32xf32>
    %302 = vector.extract_strided_slice %287 {offsets = [0, 96], sizes = [2, 32], strides = [1, 1]} : vector<2x128xf32> to vector<2x32xf32>
    %303 = arith.negf %302 : vector<2x32xf32>
    %304 = math.exp %303 : vector<2x32xf32>
    %cst_97 = arith.constant 1.000000e+00 : f32
    %305 = vector.broadcast %cst_97 : f32 to vector<2x32xf32>
    %306 = arith.addf %305, %304 : vector<2x32xf32>
    %307 = arith.divf %305, %306 : vector<2x32xf32>
    %308 = arith.mulf %299, %273 : vector<2x32xf32>
    %309 = arith.mulf %293, %301 : vector<2x32xf32>
    %310 = arith.addf %308, %309 : vector<2x32xf32>
    %311 = math.tanh %310 : vector<2x32xf32>
    %312 = arith.mulf %307, %311 : vector<2x32xf32>
    %c0_98 = arith.constant 0 : index
    %313 = arith.index_cast %281 : i32 to index
    %c0_99 = arith.constant 0 : index
    %c0_100 = arith.constant 0 : index
    %314 = vector.load %arg5[%c0_98, %313, %c0_99, %c0_100] : memref<1x8x2x32xf32, #tpu.memory_space<vmem>>, vector<1x1x2x32xf32>
    %315 = vector.shape_cast %314 : vector<1x1x2x32xf32> to vector<2x32xf32>
    %316 = vector.shape_cast %312 : vector<2x32xf32> to vector<1x1x2x32xf32>
    tpu.vector_store %arg5[%c0_98, %313, %c0_99, %c0_100], %316 {strides = array<i32>} : memref<1x8x2x32xf32, #tpu.memory_space<vmem>>, vector<1x1x2x32xf32>,
    %c8_i32 = arith.constant 8 : i32
    %c0_101 = arith.constant 0 : index
    %c0_102 = arith.constant 0 : index
    %c0_103 = arith.constant 0 : index
    %317 = vector.load %arg6[%c0_101, %c0_102, %c0_103] : memref<1x2x32xf32, #tpu.memory_space<vmem>>, vector<1x2x32xf32>
    %318 = vector.shape_cast %317 : vector<1x2x32xf32> to vector<2x32xf32>
    %319 = vector.shape_cast %312 : vector<2x32xf32> to vector<1x2x32xf32>
    tpu.vector_store %arg6[%c0_101, %c0_102, %c0_103], %319 {strides = array<i32>} : memref<1x2x32xf32, #tpu.memory_space<vmem>>, vector<1x2x32xf32>,
    return
  }
  func.func @transform_0(%arg0: i32) -> (i32, i32, i32) {
    %c0_i32 = arith.constant 0 : i32
    %c0_i32_0 = arith.constant 0 : i32
    %c0_i32_1 = arith.constant 0 : i32
    %c0_i32_2 = arith.constant 0 : i32
    return %c0_i32, %c0_i32_0, %c0_i32_1 : i32, i32, i32
  }
  func.func @transform_1(%arg0: i32) -> (i32, i32, i32) {
    %c0_i32 = arith.constant 0 : i32
    %c0_i32_0 = arith.constant 0 : i32
    %c0_i32_1 = arith.constant 0 : i32
    return %arg0, %c0_i32, %c0_i32_0 : i32, i32, i32
  }
  func.func @transform_2(%arg0: i32) -> (i32, i32, i32) {
    %c0_i32 = arith.constant 0 : i32
    %c0_i32_0 = arith.constant 0 : i32
    %c0_i32_1 = arith.constant 0 : i32
    return %arg0, %c0_i32, %c0_i32_0 : i32, i32, i32
  }
  func.func @transform_3(%arg0: i32) -> (i32, i32, i32) {
    %c0_i32 = arith.constant 0 : i32
    %c0_i32_0 = arith.constant 0 : i32
    %c0_i32_1 = arith.constant 0 : i32
    return %arg0, %c0_i32, %c0_i32_0 : i32, i32, i32
  }
  func.func @transform_4(%arg0: i32) -> (i32, i32, i32, i32) {
    %c0_i32 = arith.constant 0 : i32
    %c0_i32_0 = arith.constant 0 : i32
    %c0_i32_1 = arith.constant 0 : i32
    %c0_i32_2 = arith.constant 0 : i32
    return %arg0, %c0_i32, %c0_i32_0, %c0_i32_1 : i32, i32, i32, i32
  }
  func.func @transform_5(%arg0: i32) -> (i32, i32, i32) {
    %c0_i32 = arith.constant 0 : i32
    %c0_i32_0 = arith.constant 0 : i32
    %c0_i32_1 = arith.constant 0 : i32
    return %arg0, %c0_i32, %c0_i32_0 : i32, i32, i32
  }
}

module attributes {stable_mosaic.version = 11 : i64} {
  func.func @_bilstm_layer_kernel(%arg0: i32, %arg1: memref<1x16x16xf32, #tpu.memory_space<vmem>>, %arg2: memref<1x16x128xf32, #tpu.memory_space<vmem>>, %arg3: memref<1x32x128xf32, #tpu.memory_space<vmem>>, %arg4: memref<1x1x128xf32, #tpu.memory_space<vmem>>, %arg5: memref<1x8x2x32xf32, #tpu.memory_space<vmem>>, %arg6: memref<1x2x32xf32, #tpu.memory_space<vmem>>, %arg7: memref<16x128xf32, #tpu.memory_space<vmem>>) attributes {dimension_semantics = [#tpu.dimension_semantics<parallel>], iteration_bounds = array<i64: 2>, scalar_prefetch = 0 : i64, scratch_operands = 1 : i64, tpu.core_type = #tpu.core_type<tc>, window_params = [{pipeline_mode = #tpu.pipeline_mode<synchronous>, transform_indices = @transform_0, window_bounds = array<i64: 1, 16, 16>}, {transform_indices = @transform_1, window_bounds = array<i64: 1, 16, 128>}, {transform_indices = @transform_2, window_bounds = array<i64: 1, 32, 128>}, {transform_indices = @transform_3, window_bounds = array<i64: 1, 1, 128>}, {transform_indices = @transform_4, window_bounds = array<i64: 1, 8, 2, 32>}, {transform_indices = @transform_5, window_bounds = array<i64: 1, 2, 32>}]} {
    %c0 = arith.constant 0 : index
    %c0_0 = arith.constant 0 : index
    %c0_1 = arith.constant 0 : index
    %0 = vector.load %arg1[%c0, %c0_0, %c0_1] : memref<1x16x16xf32, #tpu.memory_space<vmem>>, vector<1x16x16xf32>
    %1 = vector.shape_cast %0 : vector<1x16x16xf32> to vector<16x16xf32>
    %c0_2 = arith.constant 0 : index
    %c0_3 = arith.constant 0 : index
    %c0_4 = arith.constant 0 : index
    %2 = vector.load %arg2[%c0_2, %c0_3, %c0_4] : memref<1x16x128xf32, #tpu.memory_space<vmem>>, vector<1x16x128xf32>
    %3 = vector.shape_cast %2 : vector<1x16x128xf32> to vector<16x128xf32>
    %cst = arith.constant dense<0.000000e+00> : vector<16x128xf32>
    %4 = tpu.matmul %1, %3, %cst {dimension_numbers = #tpu.dot_dimension_numbers<[1], [0], [0], [1], [0, 0, 1, 1], [], []>} : vector<16x16xf32>, vector<16x128xf32>, vector<16x128xf32> -> vector<16x128xf32>
    %c0_5 = arith.constant 0 : index
    %c0_6 = arith.constant 0 : index
    %c0_7 = arith.constant 0 : index
    %5 = vector.load %arg4[%c0_5, %c0_6, %c0_7] : memref<1x1x128xf32, #tpu.memory_space<vmem>>, vector<1x1x128xf32>
    %6 = vector.shape_cast %5 : vector<1x1x128xf32> to vector<1x128xf32>
    %7 = vector.broadcast %6 : vector<1x128xf32> to vector<16x128xf32>
    %8 = arith.addf %4, %7 : vector<16x128xf32>
    %c0_8 = arith.constant 0 : index
    %c0_9 = arith.constant 0 : index
    %9 = vector.load %arg7[%c0_8, %c0_9] : memref<16x128xf32, #tpu.memory_space<vmem>>, vector<16x128xf32>
    tpu.vector_store %arg7[%c0_8, %c0_9], %8 {strides = array<i32>} : memref<16x128xf32, #tpu.memory_space<vmem>>, vector<16x128xf32>,
    %c0_10 = arith.constant 0 : index
    %c0_11 = arith.constant 0 : index
    %c0_12 = arith.constant 0 : index
    %10 = vector.load %arg3[%c0_10, %c0_11, %c0_12] : memref<1x32x128xf32, #tpu.memory_space<vmem>>, vector<1x32x128xf32>
    %11 = vector.shape_cast %10 : vector<1x32x128xf32> to vector<32x128xf32>
    %c1_i32 = arith.constant 1 : i32
    %12 = arith.cmpi eq, %arg0, %c1_i32 : i32
    %cst_13 = arith.constant 0.000000e+00 : f32
    %13 = vector.broadcast %cst_13 : f32 to vector<2x32xf32>
    %cst_14 = arith.constant 0.000000e+00 : f32
    %14 = vector.broadcast %cst_14 : f32 to vector<2x32xf32>
    %c0_i32 = arith.constant 0 : i32
    %c7_i32 = arith.constant 7 : i32
    %15 = arith.subi %c7_i32, %c0_i32 : i32
    %16 = arith.select %12, %15, %c0_i32 : i32
    %c2_i32 = arith.constant 2 : i32
    %17 = arith.muli %16, %c2_i32 : i32
    %18 = tpu.assume_multiple %17, 2 : i32
    %19 = arith.index_cast %18 : i32 to index
    %c0_15 = arith.constant 0 : index
    %20 = vector.load %arg7[%19, %c0_15] : memref<16x128xf32, #tpu.memory_space<vmem>>, vector<2x128xf32>
    %cst_16 = arith.constant dense<0.000000e+00> : vector<2x128xf32>
    %21 = tpu.matmul %13, %11, %cst_16 {dimension_numbers = #tpu.dot_dimension_numbers<[1], [0], [0], [1], [0, 0, 1, 1], [], []>} : vector<2x32xf32>, vector<32x128xf32>, vector<2x128xf32> -> vector<2x128xf32>
    %22 = arith.addf %20, %21 : vector<2x128xf32>
    %23 = vector.extract_strided_slice %22 {offsets = [0, 0], sizes = [2, 32], strides = [1, 1]} : vector<2x128xf32> to vector<2x32xf32>
    %24 = arith.negf %23 : vector<2x32xf32>
    %25 = math.exp %24 : vector<2x32xf32>
    %cst_17 = arith.constant 1.000000e+00 : f32
    %26 = vector.broadcast %cst_17 : f32 to vector<2x32xf32>
    %27 = arith.addf %26, %25 : vector<2x32xf32>
    %28 = arith.divf %26, %27 : vector<2x32xf32>
    %29 = vector.extract_strided_slice %22 {offsets = [0, 32], sizes = [2, 32], strides = [1, 1]} : vector<2x128xf32> to vector<2x32xf32>
    %30 = arith.negf %29 : vector<2x32xf32>
    %31 = math.exp %30 : vector<2x32xf32>
    %cst_18 = arith.constant 1.000000e+00 : f32
    %32 = vector.broadcast %cst_18 : f32 to vector<2x32xf32>
    %33 = arith.addf %32, %31 : vector<2x32xf32>
    %34 = arith.divf %32, %33 : vector<2x32xf32>
    %35 = vector.extract_strided_slice %22 {offsets = [0, 64], sizes = [2, 32], strides = [1, 1]} : vector<2x128xf32> to vector<2x32xf32>
    %36 = math.tanh %35 : vector<2x32xf32>
    %37 = vector.extract_strided_slice %22 {offsets = [0, 96], sizes = [2, 32], strides = [1, 1]} : vector<2x128xf32> to vector<2x32xf32>
    %38 = arith.negf %37 : vector<2x32xf32>
    %39 = math.exp %38 : vector<2x32xf32>
    %cst_19 = arith.constant 1.000000e+00 : f32
    %40 = vector.broadcast %cst_19 : f32 to vector<2x32xf32>
    %41 = arith.addf %40, %39 : vector<2x32xf32>
    %42 = arith.divf %40, %41 : vector<2x32xf32>
    %43 = arith.mulf %34, %14 : vector<2x32xf32>
    %44 = arith.mulf %28, %36 : vector<2x32xf32>
    %45 = arith.addf %43, %44 : vector<2x32xf32>
    %46 = math.tanh %45 : vector<2x32xf32>
    %47 = arith.mulf %42, %46 : vector<2x32xf32>
    %c0_20 = arith.constant 0 : index
    %48 = arith.index_cast %16 : i32 to index
    %c0_21 = arith.constant 0 : index
    %c0_22 = arith.constant 0 : index
    %49 = vector.load %arg5[%c0_20, %48, %c0_21, %c0_22] : memref<1x8x2x32xf32, #tpu.memory_space<vmem>>, vector<1x1x2x32xf32>
    %50 = vector.shape_cast %49 : vector<1x1x2x32xf32> to vector<2x32xf32>
    %51 = vector.shape_cast %47 : vector<2x32xf32> to vector<1x1x2x32xf32>
    tpu.vector_store %arg5[%c0_20, %48, %c0_21, %c0_22], %51 {strides = array<i32>} : memref<1x8x2x32xf32, #tpu.memory_space<vmem>>, vector<1x1x2x32xf32>,
    %c1_i32_23 = arith.constant 1 : i32
    %c7_i32_24 = arith.constant 7 : i32
    %52 = arith.subi %c7_i32_24, %c1_i32_23 : i32
    %53 = arith.select %12, %52, %c1_i32_23 : i32
    %c2_i32_25 = arith.constant 2 : i32
    %54 = arith.muli %53, %c2_i32_25 : i32
    %55 = tpu.assume_multiple %54, 2 : i32
    %56 = arith.index_cast %55 : i32 to index
    %c0_26 = arith.constant 0 : index
    %57 = vector.load %arg7[%56, %c0_26] : memref<16x128xf32, #tpu.memory_space<vmem>>, vector<2x128xf32>
    %cst_27 = arith.constant dense<0.000000e+00> : vector<2x128xf32>
    %58 = tpu.matmul %47, %11, %cst_27 {dimension_numbers = #tpu.dot_dimension_numbers<[1], [0], [0], [1], [0, 0, 1, 1], [], []>} : vector<2x32xf32>, vector<32x128xf32>, vector<2x128xf32> -> vector<2x128xf32>
    %59 = arith.addf %57, %58 : vector<2x128xf32>
    %60 = vector.extract_strided_slice %59 {offsets = [0, 0], sizes = [2, 32], strides = [1, 1]} : vector<2x128xf32> to vector<2x32xf32>
    %61 = arith.negf %60 : vector<2x32xf32>
    %62 = math.exp %61 : vector<2x32xf32>
    %cst_28 = arith.constant 1.000000e+00 : f32
    %63 = vector.broadcast %cst_28 : f32 to vector<2x32xf32>
    %64 = arith.addf %63, %62 : vector<2x32xf32>
    %65 = arith.divf %63, %64 : vector<2x32xf32>
    %66 = vector.extract_strided_slice %59 {offsets = [0, 32], sizes = [2, 32], strides = [1, 1]} : vector<2x128xf32> to vector<2x32xf32>
    %67 = arith.negf %66 : vector<2x32xf32>
    %68 = math.exp %67 : vector<2x32xf32>
    %cst_29 = arith.constant 1.000000e+00 : f32
    %69 = vector.broadcast %cst_29 : f32 to vector<2x32xf32>
    %70 = arith.addf %69, %68 : vector<2x32xf32>
    %71 = arith.divf %69, %70 : vector<2x32xf32>
    %72 = vector.extract_strided_slice %59 {offsets = [0, 64], sizes = [2, 32], strides = [1, 1]} : vector<2x128xf32> to vector<2x32xf32>
    %73 = math.tanh %72 : vector<2x32xf32>
    %74 = vector.extract_strided_slice %59 {offsets = [0, 96], sizes = [2, 32], strides = [1, 1]} : vector<2x128xf32> to vector<2x32xf32>
    %75 = arith.negf %74 : vector<2x32xf32>
    %76 = math.exp %75 : vector<2x32xf32>
    %cst_30 = arith.constant 1.000000e+00 : f32
    %77 = vector.broadcast %cst_30 : f32 to vector<2x32xf32>
    %78 = arith.addf %77, %76 : vector<2x32xf32>
    %79 = arith.divf %77, %78 : vector<2x32xf32>
    %80 = arith.mulf %71, %45 : vector<2x32xf32>
    %81 = arith.mulf %65, %73 : vector<2x32xf32>
    %82 = arith.addf %80, %81 : vector<2x32xf32>
    %83 = math.tanh %82 : vector<2x32xf32>
    %84 = arith.mulf %79, %83 : vector<2x32xf32>
    %c0_31 = arith.constant 0 : index
    %85 = arith.index_cast %53 : i32 to index
    %c0_32 = arith.constant 0 : index
    %c0_33 = arith.constant 0 : index
    %86 = vector.load %arg5[%c0_31, %85, %c0_32, %c0_33] : memref<1x8x2x32xf32, #tpu.memory_space<vmem>>, vector<1x1x2x32xf32>
    %87 = vector.shape_cast %86 : vector<1x1x2x32xf32> to vector<2x32xf32>
    %88 = vector.shape_cast %84 : vector<2x32xf32> to vector<1x1x2x32xf32>
    tpu.vector_store %arg5[%c0_31, %85, %c0_32, %c0_33], %88 {strides = array<i32>} : memref<1x8x2x32xf32, #tpu.memory_space<vmem>>, vector<1x1x2x32xf32>,
    %c2_i32_34 = arith.constant 2 : i32
    %c7_i32_35 = arith.constant 7 : i32
    %89 = arith.subi %c7_i32_35, %c2_i32_34 : i32
    %90 = arith.select %12, %89, %c2_i32_34 : i32
    %c2_i32_36 = arith.constant 2 : i32
    %91 = arith.muli %90, %c2_i32_36 : i32
    %92 = tpu.assume_multiple %91, 2 : i32
    %93 = arith.index_cast %92 : i32 to index
    %c0_37 = arith.constant 0 : index
    %94 = vector.load %arg7[%93, %c0_37] : memref<16x128xf32, #tpu.memory_space<vmem>>, vector<2x128xf32>
    %cst_38 = arith.constant dense<0.000000e+00> : vector<2x128xf32>
    %95 = tpu.matmul %84, %11, %cst_38 {dimension_numbers = #tpu.dot_dimension_numbers<[1], [0], [0], [1], [0, 0, 1, 1], [], []>} : vector<2x32xf32>, vector<32x128xf32>, vector<2x128xf32> -> vector<2x128xf32>
    %96 = arith.addf %94, %95 : vector<2x128xf32>
    %97 = vector.extract_strided_slice %96 {offsets = [0, 0], sizes = [2, 32], strides = [1, 1]} : vector<2x128xf32> to vector<2x32xf32>
    %98 = arith.negf %97 : vector<2x32xf32>
    %99 = math.exp %98 : vector<2x32xf32>
    %cst_39 = arith.constant 1.000000e+00 : f32
    %100 = vector.broadcast %cst_39 : f32 to vector<2x32xf32>
    %101 = arith.addf %100, %99 : vector<2x32xf32>
    %102 = arith.divf %100, %101 : vector<2x32xf32>
    %103 = vector.extract_strided_slice %96 {offsets = [0, 32], sizes = [2, 32], strides = [1, 1]} : vector<2x128xf32> to vector<2x32xf32>
    %104 = arith.negf %103 : vector<2x32xf32>
    %105 = math.exp %104 : vector<2x32xf32>
    %cst_40 = arith.constant 1.000000e+00 : f32
    %106 = vector.broadcast %cst_40 : f32 to vector<2x32xf32>
    %107 = arith.addf %106, %105 : vector<2x32xf32>
    %108 = arith.divf %106, %107 : vector<2x32xf32>
    %109 = vector.extract_strided_slice %96 {offsets = [0, 64], sizes = [2, 32], strides = [1, 1]} : vector<2x128xf32> to vector<2x32xf32>
    %110 = math.tanh %109 : vector<2x32xf32>
    %111 = vector.extract_strided_slice %96 {offsets = [0, 96], sizes = [2, 32], strides = [1, 1]} : vector<2x128xf32> to vector<2x32xf32>
    %112 = arith.negf %111 : vector<2x32xf32>
    %113 = math.exp %112 : vector<2x32xf32>
    %cst_41 = arith.constant 1.000000e+00 : f32
    %114 = vector.broadcast %cst_41 : f32 to vector<2x32xf32>
    %115 = arith.addf %114, %113 : vector<2x32xf32>
    %116 = arith.divf %114, %115 : vector<2x32xf32>
    %117 = arith.mulf %108, %82 : vector<2x32xf32>
    %118 = arith.mulf %102, %110 : vector<2x32xf32>
    %119 = arith.addf %117, %118 : vector<2x32xf32>
    %120 = math.tanh %119 : vector<2x32xf32>
    %121 = arith.mulf %116, %120 : vector<2x32xf32>
    %c0_42 = arith.constant 0 : index
    %122 = arith.index_cast %90 : i32 to index
    %c0_43 = arith.constant 0 : index
    %c0_44 = arith.constant 0 : index
    %123 = vector.load %arg5[%c0_42, %122, %c0_43, %c0_44] : memref<1x8x2x32xf32, #tpu.memory_space<vmem>>, vector<1x1x2x32xf32>
    %124 = vector.shape_cast %123 : vector<1x1x2x32xf32> to vector<2x32xf32>
    %125 = vector.shape_cast %121 : vector<2x32xf32> to vector<1x1x2x32xf32>
    tpu.vector_store %arg5[%c0_42, %122, %c0_43, %c0_44], %125 {strides = array<i32>} : memref<1x8x2x32xf32, #tpu.memory_space<vmem>>, vector<1x1x2x32xf32>,
    %c3_i32 = arith.constant 3 : i32
    %c7_i32_45 = arith.constant 7 : i32
    %126 = arith.subi %c7_i32_45, %c3_i32 : i32
    %127 = arith.select %12, %126, %c3_i32 : i32
    %c2_i32_46 = arith.constant 2 : i32
    %128 = arith.muli %127, %c2_i32_46 : i32
    %129 = tpu.assume_multiple %128, 2 : i32
    %130 = arith.index_cast %129 : i32 to index
    %c0_47 = arith.constant 0 : index
    %131 = vector.load %arg7[%130, %c0_47] : memref<16x128xf32, #tpu.memory_space<vmem>>, vector<2x128xf32>
    %cst_48 = arith.constant dense<0.000000e+00> : vector<2x128xf32>
    %132 = tpu.matmul %121, %11, %cst_48 {dimension_numbers = #tpu.dot_dimension_numbers<[1], [0], [0], [1], [0, 0, 1, 1], [], []>} : vector<2x32xf32>, vector<32x128xf32>, vector<2x128xf32> -> vector<2x128xf32>
    %133 = arith.addf %131, %132 : vector<2x128xf32>
    %134 = vector.extract_strided_slice %133 {offsets = [0, 0], sizes = [2, 32], strides = [1, 1]} : vector<2x128xf32> to vector<2x32xf32>
    %135 = arith.negf %134 : vector<2x32xf32>
    %136 = math.exp %135 : vector<2x32xf32>
    %cst_49 = arith.constant 1.000000e+00 : f32
    %137 = vector.broadcast %cst_49 : f32 to vector<2x32xf32>
    %138 = arith.addf %137, %136 : vector<2x32xf32>
    %139 = arith.divf %137, %138 : vector<2x32xf32>
    %140 = vector.extract_strided_slice %133 {offsets = [0, 32], sizes = [2, 32], strides = [1, 1]} : vector<2x128xf32> to vector<2x32xf32>
    %141 = arith.negf %140 : vector<2x32xf32>
    %142 = math.exp %141 : vector<2x32xf32>
    %cst_50 = arith.constant 1.000000e+00 : f32
    %143 = vector.broadcast %cst_50 : f32 to vector<2x32xf32>
    %144 = arith.addf %143, %142 : vector<2x32xf32>
    %145 = arith.divf %143, %144 : vector<2x32xf32>
    %146 = vector.extract_strided_slice %133 {offsets = [0, 64], sizes = [2, 32], strides = [1, 1]} : vector<2x128xf32> to vector<2x32xf32>
    %147 = math.tanh %146 : vector<2x32xf32>
    %148 = vector.extract_strided_slice %133 {offsets = [0, 96], sizes = [2, 32], strides = [1, 1]} : vector<2x128xf32> to vector<2x32xf32>
    %149 = arith.negf %148 : vector<2x32xf32>
    %150 = math.exp %149 : vector<2x32xf32>
    %cst_51 = arith.constant 1.000000e+00 : f32
    %151 = vector.broadcast %cst_51 : f32 to vector<2x32xf32>
    %152 = arith.addf %151, %150 : vector<2x32xf32>
    %153 = arith.divf %151, %152 : vector<2x32xf32>
    %154 = arith.mulf %145, %119 : vector<2x32xf32>
    %155 = arith.mulf %139, %147 : vector<2x32xf32>
    %156 = arith.addf %154, %155 : vector<2x32xf32>
    %157 = math.tanh %156 : vector<2x32xf32>
    %158 = arith.mulf %153, %157 : vector<2x32xf32>
    %c0_52 = arith.constant 0 : index
    %159 = arith.index_cast %127 : i32 to index
    %c0_53 = arith.constant 0 : index
    %c0_54 = arith.constant 0 : index
    %160 = vector.load %arg5[%c0_52, %159, %c0_53, %c0_54] : memref<1x8x2x32xf32, #tpu.memory_space<vmem>>, vector<1x1x2x32xf32>
    %161 = vector.shape_cast %160 : vector<1x1x2x32xf32> to vector<2x32xf32>
    %162 = vector.shape_cast %158 : vector<2x32xf32> to vector<1x1x2x32xf32>
    tpu.vector_store %arg5[%c0_52, %159, %c0_53, %c0_54], %162 {strides = array<i32>} : memref<1x8x2x32xf32, #tpu.memory_space<vmem>>, vector<1x1x2x32xf32>,
    %c4_i32 = arith.constant 4 : i32
    %c7_i32_55 = arith.constant 7 : i32
    %163 = arith.subi %c7_i32_55, %c4_i32 : i32
    %164 = arith.select %12, %163, %c4_i32 : i32
    %c2_i32_56 = arith.constant 2 : i32
    %165 = arith.muli %164, %c2_i32_56 : i32
    %166 = tpu.assume_multiple %165, 2 : i32
    %167 = arith.index_cast %166 : i32 to index
    %c0_57 = arith.constant 0 : index
    %168 = vector.load %arg7[%167, %c0_57] : memref<16x128xf32, #tpu.memory_space<vmem>>, vector<2x128xf32>
    %cst_58 = arith.constant dense<0.000000e+00> : vector<2x128xf32>
    %169 = tpu.matmul %158, %11, %cst_58 {dimension_numbers = #tpu.dot_dimension_numbers<[1], [0], [0], [1], [0, 0, 1, 1], [], []>} : vector<2x32xf32>, vector<32x128xf32>, vector<2x128xf32> -> vector<2x128xf32>
    %170 = arith.addf %168, %169 : vector<2x128xf32>
    %171 = vector.extract_strided_slice %170 {offsets = [0, 0], sizes = [2, 32], strides = [1, 1]} : vector<2x128xf32> to vector<2x32xf32>
    %172 = arith.negf %171 : vector<2x32xf32>
    %173 = math.exp %172 : vector<2x32xf32>
    %cst_59 = arith.constant 1.000000e+00 : f32
    %174 = vector.broadcast %cst_59 : f32 to vector<2x32xf32>
    %175 = arith.addf %174, %173 : vector<2x32xf32>
    %176 = arith.divf %174, %175 : vector<2x32xf32>
    %177 = vector.extract_strided_slice %170 {offsets = [0, 32], sizes = [2, 32], strides = [1, 1]} : vector<2x128xf32> to vector<2x32xf32>
    %178 = arith.negf %177 : vector<2x32xf32>
    %179 = math.exp %178 : vector<2x32xf32>
    %cst_60 = arith.constant 1.000000e+00 : f32
    %180 = vector.broadcast %cst_60 : f32 to vector<2x32xf32>
    %181 = arith.addf %180, %179 : vector<2x32xf32>
    %182 = arith.divf %180, %181 : vector<2x32xf32>
    %183 = vector.extract_strided_slice %170 {offsets = [0, 64], sizes = [2, 32], strides = [1, 1]} : vector<2x128xf32> to vector<2x32xf32>
    %184 = math.tanh %183 : vector<2x32xf32>
    %185 = vector.extract_strided_slice %170 {offsets = [0, 96], sizes = [2, 32], strides = [1, 1]} : vector<2x128xf32> to vector<2x32xf32>
    %186 = arith.negf %185 : vector<2x32xf32>
    %187 = math.exp %186 : vector<2x32xf32>
    %cst_61 = arith.constant 1.000000e+00 : f32
    %188 = vector.broadcast %cst_61 : f32 to vector<2x32xf32>
    %189 = arith.addf %188, %187 : vector<2x32xf32>
    %190 = arith.divf %188, %189 : vector<2x32xf32>
    %191 = arith.mulf %182, %156 : vector<2x32xf32>
    %192 = arith.mulf %176, %184 : vector<2x32xf32>
    %193 = arith.addf %191, %192 : vector<2x32xf32>
    %194 = math.tanh %193 : vector<2x32xf32>
    %195 = arith.mulf %190, %194 : vector<2x32xf32>
    %c0_62 = arith.constant 0 : index
    %196 = arith.index_cast %164 : i32 to index
    %c0_63 = arith.constant 0 : index
    %c0_64 = arith.constant 0 : index
    %197 = vector.load %arg5[%c0_62, %196, %c0_63, %c0_64] : memref<1x8x2x32xf32, #tpu.memory_space<vmem>>, vector<1x1x2x32xf32>
    %198 = vector.shape_cast %197 : vector<1x1x2x32xf32> to vector<2x32xf32>
    %199 = vector.shape_cast %195 : vector<2x32xf32> to vector<1x1x2x32xf32>
    tpu.vector_store %arg5[%c0_62, %196, %c0_63, %c0_64], %199 {strides = array<i32>} : memref<1x8x2x32xf32, #tpu.memory_space<vmem>>, vector<1x1x2x32xf32>,
    %c5_i32 = arith.constant 5 : i32
    %c7_i32_65 = arith.constant 7 : i32
    %200 = arith.subi %c7_i32_65, %c5_i32 : i32
    %201 = arith.select %12, %200, %c5_i32 : i32
    %c2_i32_66 = arith.constant 2 : i32
    %202 = arith.muli %201, %c2_i32_66 : i32
    %203 = tpu.assume_multiple %202, 2 : i32
    %204 = arith.index_cast %203 : i32 to index
    %c0_67 = arith.constant 0 : index
    %205 = vector.load %arg7[%204, %c0_67] : memref<16x128xf32, #tpu.memory_space<vmem>>, vector<2x128xf32>
    %cst_68 = arith.constant dense<0.000000e+00> : vector<2x128xf32>
    %206 = tpu.matmul %195, %11, %cst_68 {dimension_numbers = #tpu.dot_dimension_numbers<[1], [0], [0], [1], [0, 0, 1, 1], [], []>} : vector<2x32xf32>, vector<32x128xf32>, vector<2x128xf32> -> vector<2x128xf32>
    %207 = arith.addf %205, %206 : vector<2x128xf32>
    %208 = vector.extract_strided_slice %207 {offsets = [0, 0], sizes = [2, 32], strides = [1, 1]} : vector<2x128xf32> to vector<2x32xf32>
    %209 = arith.negf %208 : vector<2x32xf32>
    %210 = math.exp %209 : vector<2x32xf32>
    %cst_69 = arith.constant 1.000000e+00 : f32
    %211 = vector.broadcast %cst_69 : f32 to vector<2x32xf32>
    %212 = arith.addf %211, %210 : vector<2x32xf32>
    %213 = arith.divf %211, %212 : vector<2x32xf32>
    %214 = vector.extract_strided_slice %207 {offsets = [0, 32], sizes = [2, 32], strides = [1, 1]} : vector<2x128xf32> to vector<2x32xf32>
    %215 = arith.negf %214 : vector<2x32xf32>
    %216 = math.exp %215 : vector<2x32xf32>
    %cst_70 = arith.constant 1.000000e+00 : f32
    %217 = vector.broadcast %cst_70 : f32 to vector<2x32xf32>
    %218 = arith.addf %217, %216 : vector<2x32xf32>
    %219 = arith.divf %217, %218 : vector<2x32xf32>
    %220 = vector.extract_strided_slice %207 {offsets = [0, 64], sizes = [2, 32], strides = [1, 1]} : vector<2x128xf32> to vector<2x32xf32>
    %221 = math.tanh %220 : vector<2x32xf32>
    %222 = vector.extract_strided_slice %207 {offsets = [0, 96], sizes = [2, 32], strides = [1, 1]} : vector<2x128xf32> to vector<2x32xf32>
    %223 = arith.negf %222 : vector<2x32xf32>
    %224 = math.exp %223 : vector<2x32xf32>
    %cst_71 = arith.constant 1.000000e+00 : f32
    %225 = vector.broadcast %cst_71 : f32 to vector<2x32xf32>
    %226 = arith.addf %225, %224 : vector<2x32xf32>
    %227 = arith.divf %225, %226 : vector<2x32xf32>
    %228 = arith.mulf %219, %193 : vector<2x32xf32>
    %229 = arith.mulf %213, %221 : vector<2x32xf32>
    %230 = arith.addf %228, %229 : vector<2x32xf32>
    %231 = math.tanh %230 : vector<2x32xf32>
    %232 = arith.mulf %227, %231 : vector<2x32xf32>
    %c0_72 = arith.constant 0 : index
    %233 = arith.index_cast %201 : i32 to index
    %c0_73 = arith.constant 0 : index
    %c0_74 = arith.constant 0 : index
    %234 = vector.load %arg5[%c0_72, %233, %c0_73, %c0_74] : memref<1x8x2x32xf32, #tpu.memory_space<vmem>>, vector<1x1x2x32xf32>
    %235 = vector.shape_cast %234 : vector<1x1x2x32xf32> to vector<2x32xf32>
    %236 = vector.shape_cast %232 : vector<2x32xf32> to vector<1x1x2x32xf32>
    tpu.vector_store %arg5[%c0_72, %233, %c0_73, %c0_74], %236 {strides = array<i32>} : memref<1x8x2x32xf32, #tpu.memory_space<vmem>>, vector<1x1x2x32xf32>,
    %c6_i32 = arith.constant 6 : i32
    %c7_i32_75 = arith.constant 7 : i32
    %237 = arith.subi %c7_i32_75, %c6_i32 : i32
    %238 = arith.select %12, %237, %c6_i32 : i32
    %c2_i32_76 = arith.constant 2 : i32
    %239 = arith.muli %238, %c2_i32_76 : i32
    %240 = tpu.assume_multiple %239, 2 : i32
    %241 = arith.index_cast %240 : i32 to index
    %c0_77 = arith.constant 0 : index
    %242 = vector.load %arg7[%241, %c0_77] : memref<16x128xf32, #tpu.memory_space<vmem>>, vector<2x128xf32>
    %cst_78 = arith.constant dense<0.000000e+00> : vector<2x128xf32>
    %243 = tpu.matmul %232, %11, %cst_78 {dimension_numbers = #tpu.dot_dimension_numbers<[1], [0], [0], [1], [0, 0, 1, 1], [], []>} : vector<2x32xf32>, vector<32x128xf32>, vector<2x128xf32> -> vector<2x128xf32>
    %244 = arith.addf %242, %243 : vector<2x128xf32>
    %245 = vector.extract_strided_slice %244 {offsets = [0, 0], sizes = [2, 32], strides = [1, 1]} : vector<2x128xf32> to vector<2x32xf32>
    %246 = arith.negf %245 : vector<2x32xf32>
    %247 = math.exp %246 : vector<2x32xf32>
    %cst_79 = arith.constant 1.000000e+00 : f32
    %248 = vector.broadcast %cst_79 : f32 to vector<2x32xf32>
    %249 = arith.addf %248, %247 : vector<2x32xf32>
    %250 = arith.divf %248, %249 : vector<2x32xf32>
    %251 = vector.extract_strided_slice %244 {offsets = [0, 32], sizes = [2, 32], strides = [1, 1]} : vector<2x128xf32> to vector<2x32xf32>
    %252 = arith.negf %251 : vector<2x32xf32>
    %253 = math.exp %252 : vector<2x32xf32>
    %cst_80 = arith.constant 1.000000e+00 : f32
    %254 = vector.broadcast %cst_80 : f32 to vector<2x32xf32>
    %255 = arith.addf %254, %253 : vector<2x32xf32>
    %256 = arith.divf %254, %255 : vector<2x32xf32>
    %257 = vector.extract_strided_slice %244 {offsets = [0, 64], sizes = [2, 32], strides = [1, 1]} : vector<2x128xf32> to vector<2x32xf32>
    %258 = math.tanh %257 : vector<2x32xf32>
    %259 = vector.extract_strided_slice %244 {offsets = [0, 96], sizes = [2, 32], strides = [1, 1]} : vector<2x128xf32> to vector<2x32xf32>
    %260 = arith.negf %259 : vector<2x32xf32>
    %261 = math.exp %260 : vector<2x32xf32>
    %cst_81 = arith.constant 1.000000e+00 : f32
    %262 = vector.broadcast %cst_81 : f32 to vector<2x32xf32>
    %263 = arith.addf %262, %261 : vector<2x32xf32>
    %264 = arith.divf %262, %263 : vector<2x32xf32>
    %265 = arith.mulf %256, %230 : vector<2x32xf32>
    %266 = arith.mulf %250, %258 : vector<2x32xf32>
    %267 = arith.addf %265, %266 : vector<2x32xf32>
    %268 = math.tanh %267 : vector<2x32xf32>
    %269 = arith.mulf %264, %268 : vector<2x32xf32>
    %c0_82 = arith.constant 0 : index
    %270 = arith.index_cast %238 : i32 to index
    %c0_83 = arith.constant 0 : index
    %c0_84 = arith.constant 0 : index
    %271 = vector.load %arg5[%c0_82, %270, %c0_83, %c0_84] : memref<1x8x2x32xf32, #tpu.memory_space<vmem>>, vector<1x1x2x32xf32>
    %272 = vector.shape_cast %271 : vector<1x1x2x32xf32> to vector<2x32xf32>
    %273 = vector.shape_cast %269 : vector<2x32xf32> to vector<1x1x2x32xf32>
    tpu.vector_store %arg5[%c0_82, %270, %c0_83, %c0_84], %273 {strides = array<i32>} : memref<1x8x2x32xf32, #tpu.memory_space<vmem>>, vector<1x1x2x32xf32>,
    %c7_i32_85 = arith.constant 7 : i32
    %c7_i32_86 = arith.constant 7 : i32
    %274 = arith.subi %c7_i32_86, %c7_i32_85 : i32
    %275 = arith.select %12, %274, %c7_i32_85 : i32
    %c2_i32_87 = arith.constant 2 : i32
    %276 = arith.muli %275, %c2_i32_87 : i32
    %277 = tpu.assume_multiple %276, 2 : i32
    %278 = arith.index_cast %277 : i32 to index
    %c0_88 = arith.constant 0 : index
    %279 = vector.load %arg7[%278, %c0_88] : memref<16x128xf32, #tpu.memory_space<vmem>>, vector<2x128xf32>
    %cst_89 = arith.constant dense<0.000000e+00> : vector<2x128xf32>
    %280 = tpu.matmul %269, %11, %cst_89 {dimension_numbers = #tpu.dot_dimension_numbers<[1], [0], [0], [1], [0, 0, 1, 1], [], []>} : vector<2x32xf32>, vector<32x128xf32>, vector<2x128xf32> -> vector<2x128xf32>
    %281 = arith.addf %279, %280 : vector<2x128xf32>
    %282 = vector.extract_strided_slice %281 {offsets = [0, 0], sizes = [2, 32], strides = [1, 1]} : vector<2x128xf32> to vector<2x32xf32>
    %283 = arith.negf %282 : vector<2x32xf32>
    %284 = math.exp %283 : vector<2x32xf32>
    %cst_90 = arith.constant 1.000000e+00 : f32
    %285 = vector.broadcast %cst_90 : f32 to vector<2x32xf32>
    %286 = arith.addf %285, %284 : vector<2x32xf32>
    %287 = arith.divf %285, %286 : vector<2x32xf32>
    %288 = vector.extract_strided_slice %281 {offsets = [0, 32], sizes = [2, 32], strides = [1, 1]} : vector<2x128xf32> to vector<2x32xf32>
    %289 = arith.negf %288 : vector<2x32xf32>
    %290 = math.exp %289 : vector<2x32xf32>
    %cst_91 = arith.constant 1.000000e+00 : f32
    %291 = vector.broadcast %cst_91 : f32 to vector<2x32xf32>
    %292 = arith.addf %291, %290 : vector<2x32xf32>
    %293 = arith.divf %291, %292 : vector<2x32xf32>
    %294 = vector.extract_strided_slice %281 {offsets = [0, 64], sizes = [2, 32], strides = [1, 1]} : vector<2x128xf32> to vector<2x32xf32>
    %295 = math.tanh %294 : vector<2x32xf32>
    %296 = vector.extract_strided_slice %281 {offsets = [0, 96], sizes = [2, 32], strides = [1, 1]} : vector<2x128xf32> to vector<2x32xf32>
    %297 = arith.negf %296 : vector<2x32xf32>
    %298 = math.exp %297 : vector<2x32xf32>
    %cst_92 = arith.constant 1.000000e+00 : f32
    %299 = vector.broadcast %cst_92 : f32 to vector<2x32xf32>
    %300 = arith.addf %299, %298 : vector<2x32xf32>
    %301 = arith.divf %299, %300 : vector<2x32xf32>
    %302 = arith.mulf %293, %267 : vector<2x32xf32>
    %303 = arith.mulf %287, %295 : vector<2x32xf32>
    %304 = arith.addf %302, %303 : vector<2x32xf32>
    %305 = math.tanh %304 : vector<2x32xf32>
    %306 = arith.mulf %301, %305 : vector<2x32xf32>
    %c0_93 = arith.constant 0 : index
    %307 = arith.index_cast %275 : i32 to index
    %c0_94 = arith.constant 0 : index
    %c0_95 = arith.constant 0 : index
    %308 = vector.load %arg5[%c0_93, %307, %c0_94, %c0_95] : memref<1x8x2x32xf32, #tpu.memory_space<vmem>>, vector<1x1x2x32xf32>
    %309 = vector.shape_cast %308 : vector<1x1x2x32xf32> to vector<2x32xf32>
    %310 = vector.shape_cast %306 : vector<2x32xf32> to vector<1x1x2x32xf32>
    tpu.vector_store %arg5[%c0_93, %307, %c0_94, %c0_95], %310 {strides = array<i32>} : memref<1x8x2x32xf32, #tpu.memory_space<vmem>>, vector<1x1x2x32xf32>,
    %c8_i32 = arith.constant 8 : i32
    %c0_96 = arith.constant 0 : index
    %c0_97 = arith.constant 0 : index
    %c0_98 = arith.constant 0 : index
    %311 = vector.load %arg6[%c0_96, %c0_97, %c0_98] : memref<1x2x32xf32, #tpu.memory_space<vmem>>, vector<1x2x32xf32>
    %312 = vector.shape_cast %311 : vector<1x2x32xf32> to vector<2x32xf32>
    %313 = vector.shape_cast %306 : vector<2x32xf32> to vector<1x2x32xf32>
    tpu.vector_store %arg6[%c0_96, %c0_97, %c0_98], %313 {strides = array<i32>} : memref<1x2x32xf32, #tpu.memory_space<vmem>>, vector<1x2x32xf32>,
    return
  }
  func.func @transform_0(%arg0: i32) -> (i32, i32, i32) {
    %c0_i32 = arith.constant 0 : i32
    %c0_i32_0 = arith.constant 0 : i32
    %c0_i32_1 = arith.constant 0 : i32
    %c0_i32_2 = arith.constant 0 : i32
    return %c0_i32, %c0_i32_0, %c0_i32_1 : i32, i32, i32
  }
  func.func @transform_1(%arg0: i32) -> (i32, i32, i32) {
    %c0_i32 = arith.constant 0 : i32
    %c0_i32_0 = arith.constant 0 : i32
    %c0_i32_1 = arith.constant 0 : i32
    return %arg0, %c0_i32, %c0_i32_0 : i32, i32, i32
  }
  func.func @transform_2(%arg0: i32) -> (i32, i32, i32) {
    %c0_i32 = arith.constant 0 : i32
    %c0_i32_0 = arith.constant 0 : i32
    %c0_i32_1 = arith.constant 0 : i32
    return %arg0, %c0_i32, %c0_i32_0 : i32, i32, i32
  }
  func.func @transform_3(%arg0: i32) -> (i32, i32, i32) {
    %c0_i32 = arith.constant 0 : i32
    %c0_i32_0 = arith.constant 0 : i32
    %c0_i32_1 = arith.constant 0 : i32
    return %arg0, %c0_i32, %c0_i32_0 : i32, i32, i32
  }
  func.func @transform_4(%arg0: i32) -> (i32, i32, i32, i32) {
    %c0_i32 = arith.constant 0 : i32
    %c0_i32_0 = arith.constant 0 : i32
    %c0_i32_1 = arith.constant 0 : i32
    %c0_i32_2 = arith.constant 0 : i32
    return %arg0, %c0_i32, %c0_i32_0, %c0_i32_1 : i32, i32, i32, i32
  }
  func.func @transform_5(%arg0: i32) -> (i32, i32, i32) {
    %c0_i32 = arith.constant 0 : i32
    %c0_i32_0 = arith.constant 0 : i32
    %c0_i32_1 = arith.constant 0 : i32
    return %arg0, %c0_i32, %c0_i32_0 : i32, i32, i32
  }
}

</mosaic_0001>

<llo_original>
// kernel: arnn_forward.3
$region0: #{arnn_forward.3}
  #allocation0 [shape = 'u32[]', space=smem, size = 0x4, offset = 0x4, fixed_abs, tag = 'smem constant byte address 0x4 - core index']
  #allocation1 [shape = 'u32[144,128]{1,0:T(1,128)}', space=vmem, size = 0x12000, scoped, tag = 'internal scratch']
  %s0 = inlined_call_operand.hbm [shape: f32[2,8,16], index: 0, kind: input, shape index: {}]
  %s1 = inlined_call_operand.hbm [shape: f32[2,8,8], index: 1, kind: input, shape index: {}]
  %s2 = inlined_call_operand.vmem [shape: f32[2,8,16], index: 2, kind: output, shape index: {}]
  %s3 = sld [smem:[#allocation0]]
  $region49: #{arnn_forward.3} parent=0
    _
  %s5 = ssub.s32 1, %s3
  %s6 = scalar_select 0, %s5, %s3
  $region1: #{arnn_forward.3} parent=0
    #allocation2 [shape = 'u8[8192]{0}', space=vmem, size = 0x2000, scoped, tag = 'input window, operand 0']
    #allocation3 [shape = 's32[2]{0}', space=sflag, size = 0x8, scoped, tag = 'scoped memory for arnn_forward.3']
    #allocation4 [shape = 'u8[8192]{0}', space=vmem, size = 0x2000, scoped, tag = 'input window, operand 1']
    #allocation5 [shape = 's32[2]{0}', space=sflag, size = 0x8, scoped, tag = 'scoped memory for arnn_forward.3']
    %7 = vsyncpa [#allocation3], 0
    %s8 = scalar_lea.sflag [#allocation3], 1
    %9 = vsyncpa %s8, 0
    %10 = vsyncpa [#allocation5], 0
    %s11 = scalar_lea.sflag [#allocation5], 1
    %12 = vsyncpa %s11, 0
    loop: start=0, step=1, limit=4
    $region2: #{arnn_forward.3} parent=1 // loop_pre_header
      _
    $region3: #{arnn_forward.3} parent=1 // loop_header
      %s14 = sphi 0, %s18
      %p15 = scmp.ge.s32.totalorder %s14, 4
      %s21 = sphi 0, %s33
      %s22 = sphi 0, %s29
      %s23 = sphi 0, %s21
      %s24 = sphi 0, %s22
      %s25 = sphi 0, %s23
      %s26 = sphi 0, %s24
      %s36 = sphi 0, %s38
      %s39 = sphi 0, %s36
      %s40 = sphi 0, %s39
      %s56 = sphi 0, %s40
      %s64 = sphi 0, %s66
      %s67 = sphi 0, %s64
      %s68 = sphi 0, %s67
      %s84 = sphi 0, %s68
      %s92 = sphi 0, %s94
      %s95 = sphi 0, %s92
      %s96 = sphi 0, %s95
      %s112 = sphi 0, %s96
    $region4: #{arnn_forward.3} parent=1 // loop_header_branch
      %17 = sbr.rel (%p15) target = $region8
    $region5: #{arnn_forward.3} parent=1 // loop_body
      %s19 = ssub.s32 %s14, 1
      %s20 = ssub.s32 %s14, 2
      %s27 = sadd.s32 1, %s22
      %p28 = scmp.ge.s32.totalorder %s27, 1
      %s29 = scalar_select %p28, 0, %s27
      %s30 = sadd.s32 1, %s21
      %s31 = scalar_select %p28, %s30, %s21
      %p32 = scmp.ge.s32.totalorder %s31, 2
      %s33 = scalar_select %p32, 0, %s31
      %s34 = ssub.s32 %s21, %s33
      %p35 = scmp.eq.s32.totalorder %s34, 0
      %s37 = sadd.s32 %s36, 1
      %s38 = scalar_select %p35, %s36, %s37
      %p41 = pneg %p35
      %p42 = scmp.eq.s32.totalorder %s14, 1
      %p43 = por %p41, %p42
      %p44 = scmp.ne.s32.totalorder %s36, %s39
      %p45 = scmp.eq.s32.totalorder %s14, 0
      %p46 = por %p44, %p45
      %p47 = scmp.ne.s32.totalorder %s36, %s39
      %p48 = scmp.eq.s32.totalorder %s19, 1
      %p49 = por %p47, %p48
      %p50 = scmp.ne.s32.totalorder %s39, %s40
      %p51 = scmp.eq.s32.totalorder %s19, 0
      %p52 = por %p50, %p51
      %p53 = scmp.ne.s32.totalorder %s39, %s40
      %p54 = scmp.eq.s32.totalorder %s20, 1
      %p55 = por %p53, %p54
      %p57 = scmp.ne.s32.totalorder %s40, %s56
      %p58 = scmp.eq.s32.totalorder %s20, 0
      %p59 = por %p57, %p58
      %s60 = ssub.s32 %s21, %s33
      %s61 = ssub.s32 %s22, %s29
      %s62 = sor.u32 %s60, %s61
      %p63 = scmp.eq.s32.totalorder %s62, 0
      %s65 = sadd.s32 %s64, 1
      %s66 = scalar_select %p63, %s64, %s65
      %p69 = pneg %p63
      %p70 = scmp.eq.s32.totalorder %s14, 1
      %p71 = por %p69, %p70
      %p72 = scmp.ne.s32.totalorder %s64, %s67
      %p73 = scmp.eq.s32.totalorder %s14, 0
      %p74 = por %p72, %p73
      %p75 = scmp.ne.s32.totalorder %s64, %s67
      %p76 = scmp.eq.s32.totalorder %s19, 1
      %p77 = por %p75, %p76
      %p78 = scmp.ne.s32.totalorder %s67, %s68
      %p79 = scmp.eq.s32.totalorder %s19, 0
      %p80 = por %p78, %p79
      %p81 = scmp.ne.s32.totalorder %s67, %s68
      %p82 = scmp.eq.s32.totalorder %s20, 1
      %p83 = por %p81, %p82
      %p85 = scmp.ne.s32.totalorder %s68, %s84
      %p86 = scmp.eq.s32.totalorder %s20, 0
      %p87 = por %p85, %p86
      %s88 = ssub.s32 %s21, %s33
      %s89 = ssub.s32 %s22, %s29
      %s90 = sor.u32 %s88, %s89
      %p91 = scmp.eq.s32.totalorder %s90, 0
      %s93 = sadd.s32 %s92, 1
      %s94 = scalar_select %p91, %s92, %s93
      %p97 = pneg %p91
      %p98 = scmp.eq.s32.totalorder %s14, 1
      %p99 = por %p97, %p98
      %p100 = scmp.ne.s32.totalorder %s92, %s95
      %p101 = scmp.eq.s32.totalorder %s14, 0
      %p102 = por %p100, %p101
      %p103 = scmp.ne.s32.totalorder %s92, %s95
      %p104 = scmp.eq.s32.totalorder %s19, 1
      %p105 = por %p103, %p104
      %p106 = scmp.ne.s32.totalorder %s95, %s96
      %p107 = scmp.eq.s32.totalorder %s19, 0
      %p108 = por %p106, %p107
      %p109 = scmp.ne.s32.totalorder %s95, %s96
      %p110 = scmp.eq.s32.totalorder %s20, 1
      %p111 = por %p109, %p110
      %p113 = scmp.ne.s32.totalorder %s96, %s112
      %p114 = scmp.eq.s32.totalorder %s20, 0
      %p115 = por %p113, %p114
      %p116 = scmp.le.s32.totalorder 1, %s14
      %p117 = scmp.lt.s32.totalorder %s14, 3
      %p118 = pnand %p116, %p117
      %p119 = pneg %p118
      // Predicated region
      $region9: #{arnn_forward.3} parent=5 // pred_check
        _
      $region10: #{arnn_forward.3} parent=5 // pred_check_branch
        %121 = sbr.rel (%p118) target = $region12
      $region11: #{arnn_forward.3} parent=5 // pred_region
        %s122 = ssub.s32 %s14, 1
      $region12: #{arnn_forward.3} parent=5 // pred_fallthru
        _
      %p123 = scmp.lt.s32.totalorder %s14, 2
      // Predicated region
      $region13: #{arnn_forward.3} parent=5 // pred_check
        %p124 = pneg %p123
      $region14: #{arnn_forward.3} parent=5 // pred_check_branch
        %126 = sbr.rel (%p124) target = $region16
      $region15: #{arnn_forward.3} parent=5 // pred_region
        // Predicated region
        $region17: #{arnn_forward.3} parent=15 // pred_check
          %p127 = pneg %p46
        $region18: #{arnn_forward.3} parent=15 // pred_check_branch
          %129 = sbr.rel (%p127) target = $region20
        $region19: #{arnn_forward.3} parent=15 // pred_region
          %s130 = sand.u32 %s36, 1
          %s131 = scalar_lea.sflag [#allocation3], %s130
          %s132 = sand.u32 %s36, 1
          %s133 = smul.addr %s132, 8
          %s134 = scalar_lea.vmem [#allocation2], %s133
          %s136 = ssub.s32 128, 128
          %137 = vsyncadd %s131, %s136
          %s138 = smul.addr %s21, 128
          %s139 = scalar_lea.hbm %s0, %s138
          %s141 = sshll.u32 %s134, 4
          %s142 = int_to_ptr.vmem [resolvable:$true] %s141
          %144 = dma.hbm_to_vmem [thread:$0]  %s139, 128, %s142, %s131
        $region20: #{arnn_forward.3} parent=15 // pred_fallthru
          _
        // Predicated region
        $region21: #{arnn_forward.3} parent=15 // pred_check
          %p145 = pneg %p74
        $region22: #{arnn_forward.3} parent=15 // pred_check_branch
          %147 = sbr.rel (%p145) target = $region24
        $region23: #{arnn_forward.3} parent=15 // pred_region
          %s148 = sand.u32 %s64, 1
          %s149 = scalar_lea.sflag [#allocation5], %s148
          %s150 = sand.u32 %s64, 1
          %s151 = smul.addr %s150, 8
          %s152 = scalar_lea.vmem [#allocation4], %s151
          %s154 = ssub.s32 128, 128
          %155 = vsyncadd %s149, %s154
          %s156 = sadd.s32 %s22, %s21
          %s157 = smul.addr %s156, 128
          %s158 = scalar_lea.hbm %s1, %s157
          %s160 = sshll.u32 %s152, 4
          %s161 = int_to_ptr.vmem [resolvable:$true] %s160
          %163 = dma.hbm_to_vmem [thread:$0]  %s158, 128, %s161, %s149
        $region24: #{arnn_forward.3} parent=15 // pred_fallthru
          _
      $region16: #{arnn_forward.3} parent=5 // pred_fallthru
        _
      %p164 = scmp.le.s32.totalorder 1, %s14
      %p165 = scmp.lt.s32.totalorder %s14, 3
      %p166 = pnand %p164, %p165
      %p167 = pneg %p166
      // Predicated region
      $region25: #{arnn_forward.3} parent=5 // pred_check
        _
      $region26: #{arnn_forward.3} parent=5 // pred_check_branch
        %169 = sbr.rel (%p166) target = $region28
      $region27: #{arnn_forward.3} parent=5 // pred_region
        %s170 = ssub.s32 %s14, 1
        %s171 = sand.u32 %s39, 1
        %s172 = scalar_lea.sflag [#allocation3], %s171
        %s173 = sand.u32 %s39, 1
        %s174 = smul.addr %s173, 8
        %s175 = scalar_lea.vmem [#allocation2], %s174
        // Predicated region
        $region29: #{arnn_forward.3} parent=27 // pred_check
          %p176 = pneg %p52
        $region30: #{arnn_forward.3} parent=27 // pred_check_branch
          %178 = sbr.rel (%p176) target = $region32
        $region31: #{arnn_forward.3} parent=27 // pred_region
          %179 = dma.done %s172, 128
        $region32: #{arnn_forward.3} parent=27 // pred_fallthru
          _
        %s180 = sand.u32 %s67, 1
        %s181 = scalar_lea.sflag [#allocation5], %s180
        %s182 = sand.u32 %s67, 1
        %s183 = smul.addr %s182, 8
        %s184 = scalar_lea.vmem [#allocation4], %s183
        // Predicated region
        $region33: #{arnn_forward.3} parent=27 // pred_check
          %p185 = pneg %p80
        $region34: #{arnn_forward.3} parent=27 // pred_check_branch
          %187 = sbr.rel (%p185) target = $region36
        $region35: #{arnn_forward.3} parent=27 // pred_region
          %188 = dma.done %s181, 128
        $region36: #{arnn_forward.3} parent=27 // pred_fallthru
          _
        %s189 = sand.u32 %s39, 1
        %s190 = scalar_lea.sflag [#allocation3], %s189
        %s191 = sand.u32 %s39, 1
        %s192 = smul.addr %s191, 8
        %s193 = scalar_lea.vmem [#allocation2], %s192
        %p194 = pneg %p52
        %p195 = pneg %p49
        %s196 = sand.u32 %s67, 1
        %s197 = scalar_lea.sflag [#allocation5], %s196
        %s198 = sand.u32 %s67, 1
        %s199 = smul.addr %s198, 8
        %s200 = scalar_lea.vmem [#allocation4], %s199
        %p201 = pneg %p80
        %p202 = pneg %p77
        %p203 = pneg %p108
        %p204 = pneg %p105
        %p205 = scmp.lt.s32.totalorder %s23, 1
        %s206 = scalar_select %p205, %s23, 1
        %p207 = scmp.lt.s32.totalorder %s24, 0
        %s208 = scalar_select %p207, %s24, 0
        %s209 = sadd.s32 %s208, %s206
        %s210 = smul.addr %s209, 8
        %s211 = scalar_lea.vmem %s2, %s210
        %p212 = scmp.lt.s32.totalorder %s23, 1
        %s213 = scalar_select %p212, %s23, 1
        %p214 = scmp.lt.s32.totalorder %s24, 0
        %s215 = scalar_select %p214, %s24, 0
        %s216 = sadd.s32 %s215, %s213
        %s217 = smul.addr %s216, 8
        %s218 = scalar_lea.vmem %s2, %s217
        %s219 = smul.u32 %s24, 8
        %v220 = vld [vmem:[%s175] sm:$0xff]
        %v221 = vld [vmem:[%s184] sm:$0xff]
        %vm222 = vcmp.gt.f32.partialorder %v221, 0.0
        %v223 = vsel %vm222, 1, 0
        %v224 = vcvt.s32.f32 %v223
        %vm225 = vcmask 64512
        %v226 = vsel %vm225, %v224, 0.0
        %227 = vadd.xlane.f32.xlu0 %v226
        %v228 = vpop.xlane.xlu0 %227
        %s229 = scalar_lea.vmem %s175, %s219 [#allocation2]
        %v230 = vld [vmem:[%s229] sm:$0xff]
        %v232 = vsel %vm225, %v224, 0
        %234 = vmatprep.subr.mxu0 0.0
        %235 = vmatpush1.msra.mxu0 %v220
        %236 = vmatprep.subr.mxu0 0.0
        %237 = vmatpush1.msra.mxu0 0.0
        %238 = vmatprep.subr.mxu0 0.0
        %239 = vmatpush1.msra.mxu0 0.0
        %240 = vmatprep.subr.mxu0 0.0
        %241 = vmatpush1.msra.mxu0 0.0
        %242 = vmatprep.subr.mxu0 0.0
        %243 = vmatpush1.msra.mxu0 0.0
        %244 = vmatprep.subr.mxu0 0.0
        %245 = vmatpush1.msra.mxu0 0.0
        %246 = vmatprep.subr.mxu0 0.0
        %247 = vmatpush1.msra.mxu0 0.0
        %248 = vmatprep.subr.mxu0 0.0
        %249 = vmatpush1.msra.mxu0 0.0
        %250 = vmatprep.subr.mxu0 0.0
        %251 = vmatpush1.msra.mxu0 0.0
        %252 = vmatprep.subr.mxu0 0.0
        %253 = vmatpush1.msra.mxu0 0.0
        %254 = vmatprep.subr.mxu0 0.0
        %255 = vmatpush1.msra.mxu0 0.0
        %256 = vmatprep.subr.mxu0 0.0
        %257 = vmatpush1.msra.mxu0 0.0
        %258 = vmatprep.subr.mxu0 0.0
        %259 = vmatpush1.msra.mxu0 0.0
        %260 = vmatprep.subr.mxu0 0.0
        %261 = vmatpush1.msra.mxu0 0.0
        %262 = vmatprep.subr.mxu0 0.0
        %263 = vmatpush1.msra.mxu0 0.0
        %264 = vmatprep.subr.mxu0 0.0
        %265 = vmatpush1.msra.mxu0 0.0
        %266 = vmatprep.subr.mxu0 0.0
        %267 = vmatpush1.msra.mxu0 0.0
        %268 = vmatprep.subr.mxu0 0.0
        %269 = vmatpush1.msra.mxu0 0.0
        %270 = vmatprep.subr.mxu0 0.0
        %271 = vmatpush1.msra.mxu0 0.0
        %272 = vmatprep.subr.mxu0 0.0
        %273 = vmatpush1.msra.mxu0 0.0
        %274 = vmatprep.subr.mxu0 0.0
        %275 = vmatpush1.msra.mxu0 0.0
        %276 = vmatprep.subr.mxu0 0.0
        %277 = vmatpush1.msra.mxu0 0.0
        %278 = vmatprep.subr.mxu0 0.0
        %279 = vmatpush1.msra.mxu0 0.0
        %280 = vmatprep.subr.mxu0 0.0
        %281 = vmatpush1.msra.mxu0 0.0
        %282 = vmatprep.subr.mxu0 0.0
        %283 = vmatpush1.msra.mxu0 0.0
        %284 = vmatprep.subr.mxu0 0.0
        %285 = vmatpush1.msra.mxu0 0.0
        %286 = vmatprep.subr.mxu0 0.0
        %287 = vmatpush1.msra.mxu0 0.0
        %288 = vmatprep.subr.mxu0 0.0
        %289 = vmatpush1.msra.mxu0 0.0
        %290 = vmatprep.subr.mxu0 0.0
        %291 = vmatpush1.msra.mxu0 0.0
        %292 = vmatprep.subr.mxu0 0.0
        %293 = vmatpush1.msra.mxu0 0.0
        %294 = vmatprep.subr.mxu0 0.0
        %295 = vmatpush1.msra.mxu0 0.0
        %296 = vmatprep.subr.mxu0 0.0
        %297 = vmatpush1.msra.mxu0 0.0
        %298 = vmatprep.mubr.f32.mxu0 0.0
        %299 = vmatmul.mubr.f32.gmra.mrb[0].mxu0 %v232
        %v300 = vpop.f32.mrb[0].mxu0
        %v301 = vadd.f32 0.0, %v300
        %v302 = vpop.f32.mrb[0].mxu0
        %303 = vdwg.mxu0
        %v304 = vadd.f32 %v230, %v301
        %v305 = vadd.f32 %v228, 1.0
        %v306 = vrcp.pop %v305
        %v307 = vmul.f32 %v304, %v306
        %vm308 = vcmask 130048
        %309 = vst.msk [vmem:[%s218] sm:$0xff] %vm308, %v307
        %p310 = scmp.lt.s32.totalorder %s23, 1
        %s311 = scalar_select %p310, %s23, 1
        %p312 = scmp.lt.s32.totalorder %s24, 0
        %s313 = scalar_select %p312, %s24, 0
        %s314 = sadd.s32 %s313, %s311
        %s315 = smul.addr %s314, 8
        %s316 = scalar_lea.vmem %s2, %s315
        // Predicated region
        $region37: #{arnn_forward.3} parent=27 // pred_check
          %p317 = pneg %p105
        $region38: #{arnn_forward.3} parent=27 // pred_check_branch
          %319 = sbr.rel (%p317) target = $region40
        $region39: #{arnn_forward.3} parent=27 // pred_region
          _
        $region40: #{arnn_forward.3} parent=27 // pred_fallthru
          _
      $region28: #{arnn_forward.3} parent=5 // pred_fallthru
        _
      %p320 = scmp.le.s32.totalorder 2, %s14
      // Predicated region
      $region41: #{arnn_forward.3} parent=5 // pred_check
        %p321 = pneg %p320
      $region42: #{arnn_forward.3} parent=5 // pred_check_branch
        %323 = sbr.rel (%p321) target = $region44
      $region43: #{arnn_forward.3} parent=5 // pred_region
        %s324 = ssub.s32 %s14, 2
        // Predicated region
        $region45: #{arnn_forward.3} parent=43 // pred_check
          %p325 = pneg %p111
        $region46: #{arnn_forward.3} parent=43 // pred_check_branch
          %327 = sbr.rel (%p325) target = $region48
        $region47: #{arnn_forward.3} parent=43 // pred_region
          %p328 = scmp.lt.s32.totalorder %s25, 1
          %s329 = scalar_select %p328, %s25, 1
          %p330 = scmp.lt.s32.totalorder %s26, 0
          %s331 = scalar_select %p330, %s26, 0
          %s332 = sadd.s32 %s331, %s329
          %s333 = smul.addr %s332, 8
          %s334 = scalar_lea.vmem %s2, %s333
        $region48: #{arnn_forward.3} parent=43 // pred_fallthru
          _
      $region44: #{arnn_forward.3} parent=5 // pred_fallthru
        _
    $region6: #{arnn_forward.3} parent=1 // loop_footer
      %s18 = sadd.s32 1, %s14
    $region7: #{arnn_forward.3} parent=1 // loop_footer_branch
      %13 = sbr.rel target = $region3
    $region8: #{arnn_forward.3} parent=1 // loop_exit
      _
    %335 = vsyncpa [#allocation3], 1
    %s336 = scalar_lea.sflag [#allocation3], 1
    %337 = vsyncpa %s336, 1
    %338 = vsyncpa [#allocation5], 1
    %s339 = scalar_lea.sflag [#allocation5], 1
    %340 = vsyncpa %s339, 1

// kernel: arnn_forward.4
$region0: #{arnn_forward.4}
  #allocation0 [shape = 'u32[]', space=smem, size = 0x4, offset = 0x4, fixed_abs, tag = 'smem constant byte address 0x4 - core index']
  #allocation1 [shape = 'u32[144,128]{1,0:T(1,128)}', space=vmem, size = 0x12000, scoped, tag = 'internal scratch']
  #allocation2 [shape = 'f32[16,128]{1,0:T(8,128)}', space=vmem, size = 0x2000, scoped, tag = 'scratch operand']
  %s0 = inlined_call_operand.vmem [shape: f32[1,16,16], index: 0, kind: input, shape index: {}]
  %s1 = inlined_call_operand.hbm [shape: f32[2,16,128], index: 1, kind: input, shape index: {}]
  %s2 = inlined_call_operand.hbm [shape: f32[2,32,128], index: 2, kind: input, shape index: {}]
  %s3 = inlined_call_operand.hbm [shape: f32[2,1,128], index: 3, kind: input, shape index: {}]
  %s4 = inlined_call_operand.vmem [shape: f32[2,8,2,32], index: 4, kind: output, shape index: {0}]
  %s5 = inlined_call_operand.hbm [shape: f32[2,2,32], index: 5, kind: output, shape index: {1}]
  %6 = xla_tuple %s4, %s5
  %s7 = sld [smem:[#allocation0]]
  $region69: #{arnn_forward.4} parent=0
    _
  %s9 = ssub.s32 1, %s7
  %s10 = scalar_select 0, %s9, %s7
  $region1: #{arnn_forward.4} parent=0
    #allocation3 [shape = 'u8[16384]{0}', space=vmem, size = 0x4000, scoped, tag = 'input window, operand 1']
    #allocation4 [shape = 's32[2]{0}', space=sflag, size = 0x8, scoped, tag = 'scoped memory for arnn_forward.4']
    #allocation5 [shape = 's32[2]{0}', space=sflag, size = 0x8, scoped, tag = 'scoped memory for arnn_forward.4']
    #allocation6 [shape = 'u8[32768]{0}', space=vmem, size = 0x8000, scoped, tag = 'input window, operand 2']
    #allocation7 [shape = 's32[2]{0}', space=sflag, size = 0x8, scoped, tag = 'scoped memory for arnn_forward.4']
    #allocation8 [shape = 'u8[1024]{0}', space=vmem, size = 0x400, scoped, tag = 'input window, operand 3']
    #allocation9 [shape = 'u8[2048]{0}', space=vmem, size = 0x800, scoped, tag = 'output window, operand 1']
    %11 = vsyncpa [#allocation4], 0
    %s12 = scalar_lea.sflag [#allocation4], 1
    %13 = vsyncpa %s12, 0
    %14 = vsyncpa [#allocation7], 0
    %s15 = scalar_lea.sflag [#allocation7], 1
    %16 = vsyncpa %s15, 0
    %17 = vsyncpa [#allocation5], 0
    %s18 = scalar_lea.sflag [#allocation5], 1
    %19 = vsyncpa %s18, 0
    loop: start=0, step=1, limit=4
    $region2: #{arnn_forward.4} parent=1 // loop_pre_header
      _
    $region3: #{arnn_forward.4} parent=1 // loop_header
      %s21 = sphi 0, %s25
      %p22 = scmp.ge.s32.totalorder %s21, 4
      %s29 = sphi 0, %s29
      %s31 = sphi 0, %s29
      %s32 = sphi 0, %s31
      %s46 = sphi 0, %s32
      %s52 = sphi 0, %s54
      %s55 = sphi 0, %s52
      %s56 = sphi 0, %s55
      %s72 = sphi 0, %s56
      %s78 = sphi 0, %s80
      %s81 = sphi 0, %s78
      %s82 = sphi 0, %s81
      %s98 = sphi 0, %s82
      %s104 = sphi 0, %s106
      %s107 = sphi 0, %s104
      %s108 = sphi 0, %s107
      %s124 = sphi 0, %s108
      %s130 = sphi 0, %s132
      %s133 = sphi 0, %s130
      %s134 = sphi 0, %s133
      %s150 = sphi 0, %s134
      %s156 = sphi 0, %s158
      %s159 = sphi 0, %s156
      %s160 = sphi 0, %s159
      %s176 = sphi 0, %s160
    $region4: #{arnn_forward.4} parent=1 // loop_header_branch
      %24 = sbr.rel (%p22) target = $region8
    $region5: #{arnn_forward.4} parent=1 // loop_body
      %s26 = ssub.s32 %s21, 1
      %s27 = ssub.s32 %s21, 2
      %s28 = sadd.s32 %s21, 1
      %s30 = sadd.s32 %s29, 1
      %p33 = scmp.eq.s32.totalorder %s21, 1
      %p34 = scmp.ne.s32.totalorder %s29, %s31
      %p35 = scmp.eq.s32.totalorder %s21, 0
      %p36 = por %p34, %p35
      %p37 = scmp.ne.s32.totalorder %s29, %s31
      %p38 = scmp.eq.s32.totalorder %s26, 1
      %p39 = por %p37, %p38
      %p40 = scmp.ne.s32.totalorder %s31, %s32
      %p41 = scmp.eq.s32.totalorder %s26, 0
      %p42 = por %p40, %p41
      %p43 = scmp.ne.s32.totalorder %s31, %s32
      %p44 = scmp.eq.s32.totalorder %s27, 1
      %p45 = por %p43, %p44
      %p47 = scmp.ne.s32.totalorder %s32, %s46
      %p48 = scmp.eq.s32.totalorder %s27, 0
      %p49 = por %p47, %p48
      %s50 = ssub.s32 %s21, %s28
      %p51 = scmp.eq.s32.totalorder %s50, 0
      %s53 = sadd.s32 %s52, 1
      %s54 = scalar_select %p51, %s52, %s53
      %p57 = pneg %p51
      %p58 = scmp.eq.s32.totalorder %s21, 1
      %p59 = por %p57, %p58
      %p60 = scmp.ne.s32.totalorder %s52, %s55
      %p61 = scmp.eq.s32.totalorder %s21, 0
      %p62 = por %p60, %p61
      %p63 = scmp.ne.s32.totalorder %s52, %s55
      %p64 = scmp.eq.s32.totalorder %s26, 1
      %p65 = por %p63, %p64
      %p66 = scmp.ne.s32.totalorder %s55, %s56
      %p67 = scmp.eq.s32.totalorder %s26, 0
      %p68 = por %p66, %p67
      %p69 = scmp.ne.s32.totalorder %s55, %s56
      %p70 = scmp.eq.s32.totalorder %s27, 1
      %p71 = por %p69, %p70
      %p73 = scmp.ne.s32.totalorder %s56, %s72
      %p74 = scmp.eq.s32.totalorder %s27, 0
      %p75 = por %p73, %p74
      %s76 = ssub.s32 %s21, %s28
      %p77 = scmp.eq.s32.totalorder %s76, 0
      %s79 = sadd.s32 %s78, 1
      %s80 = scalar_select %p77, %s78, %s79
      %p83 = pneg %p77
      %p84 = scmp.eq.s32.totalorder %s21, 1
      %p85 = por %p83, %p84
      %p86 = scmp.ne.s32.totalorder %s78, %s81
      %p87 = scmp.eq.s32.totalorder %s21, 0
      %p88 = por %p86, %p87
      %p89 = scmp.ne.s32.totalorder %s78, %s81
      %p90 = scmp.eq.s32.totalorder %s26, 1
      %p91 = por %p89, %p90
      %p92 = scmp.ne.s32.totalorder %s81, %s82
      %p93 = scmp.eq.s32.totalorder %s26, 0
      %p94 = por %p92, %p93
      %p95 = scmp.ne.s32.totalorder %s81, %s82
      %p96 = scmp.eq.s32.totalorder %s27, 1
      %p97 = por %p95, %p96
      %p99 = scmp.ne.s32.totalorder %s82, %s98
      %p100 = scmp.eq.s32.totalorder %s27, 0
      %p101 = por %p99, %p100
      %s102 = ssub.s32 %s21, %s28
      %p103 = scmp.eq.s32.totalorder %s102, 0
      %s105 = sadd.s32 %s104, 1
      %s106 = scalar_select %p103, %s104, %s105
      %p109 = pneg %p103
      %p110 = scmp.eq.s32.totalorder %s21, 1
      %p111 = por %p109, %p110
      %p112 = scmp.ne.s32.totalorder %s104, %s107
      %p113 = scmp.eq.s32.totalorder %s21, 0
      %p114 = por %p112, %p113
      %p115 = scmp.ne.s32.totalorder %s104, %s107
      %p116 = scmp.eq.s32.totalorder %s26, 1
      %p117 = por %p115, %p116
      %p118 = scmp.ne.s32.totalorder %s107, %s108
      %p119 = scmp.eq.s32.totalorder %s26, 0
      %p120 = por %p118, %p119
      %p121 = scmp.ne.s32.totalorder %s107, %s108
      %p122 = scmp.eq.s32.totalorder %s27, 1
      %p123 = por %p121, %p122
      %p125 = scmp.ne.s32.totalorder %s108, %s124
      %p126 = scmp.eq.s32.totalorder %s27, 0
      %p127 = por %p125, %p126
      %s128 = ssub.s32 %s21, %s28
      %p129 = scmp.eq.s32.totalorder %s128, 0
      %s131 = sadd.s32 %s130, 1
      %s132 = scalar_select %p129, %s130, %s131
      %p135 = pneg %p129
      %p136 = scmp.eq.s32.totalorder %s21, 1
      %p137 = por %p135, %p136
      %p138 = scmp.ne.s32.totalorder %s130, %s133
      %p139 = scmp.eq.s32.totalorder %s21, 0
      %p140 = por %p138, %p139
      %p141 = scmp.ne.s32.totalorder %s130, %s133
      %p142 = scmp.eq.s32.totalorder %s26, 1
      %p143 = por %p141, %p142
      %p144 = scmp.ne.s32.totalorder %s133, %s134
      %p145 = scmp.eq.s32.totalorder %s26, 0
      %p146 = por %p144, %p145
      %p147 = scmp.ne.s32.totalorder %s133, %s134
      %p148 = scmp.eq.s32.totalorder %s27, 1
      %p149 = por %p147, %p148
      %p151 = scmp.ne.s32.totalorder %s134, %s150
      %p152 = scmp.eq.s32.totalorder %s27, 0
      %p153 = por %p151, %p152
      %s154 = ssub.s32 %s21, %s28
      %p155 = scmp.eq.s32.totalorder %s154, 0
      %s157 = sadd.s32 %s156, 1
      %s158 = scalar_select %p155, %s156, %s157
      %p161 = pneg %p155
      %p162 = scmp.eq.s32.totalorder %s21, 1
      %p163 = por %p161, %p162
      %p164 = scmp.ne.s32.totalorder %s156, %s159
      %p165 = scmp.eq.s32.totalorder %s21, 0
      %p166 = por %p164, %p165
      %p167 = scmp.ne.s32.totalorder %s156, %s159
      %p168 = scmp.eq.s32.totalorder %s26, 1
      %p169 = por %p167, %p168
      %p170 = scmp.ne.s32.totalorder %s159, %s160
      %p171 = scmp.eq.s32.totalorder %s26, 0
      %p172 = por %p170, %p171
      %p173 = scmp.ne.s32.totalorder %s159, %s160
      %p174 = scmp.eq.s32.totalorder %s27, 1
      %p175 = por %p173, %p174
      %p177 = scmp.ne.s32.totalorder %s160, %s176
      %p178 = scmp.eq.s32.totalorder %s27, 0
      %p179 = por %p177, %p178
      %p180 = scmp.le.s32.totalorder 1, %s21
      %p181 = scmp.lt.s32.totalorder %s21, 3
      %p182 = pnand %p180, %p181
      %p183 = pneg %p182
      // Predicated region
      $region9: #{arnn_forward.4} parent=5 // pred_check
        _
      $region10: #{arnn_forward.4} parent=5 // pred_check_branch
        %185 = sbr.rel (%p182) target = $region12
      $region11: #{arnn_forward.4} parent=5 // pred_region
        %s186 = ssub.s32 %s21, 1
        // Predicated region
        $region13: #{arnn_forward.4} parent=11 // pred_check
          %p187 = pneg %p42
        $region14: #{arnn_forward.4} parent=11 // pred_check_branch
          %189 = sbr.rel (%p187) target = $region16
        $region15: #{arnn_forward.4} parent=11 // pred_region
          _
        $region16: #{arnn_forward.4} parent=11 // pred_fallthru
          _
      $region12: #{arnn_forward.4} parent=5 // pred_fallthru
        _
      %p190 = scmp.lt.s32.totalorder %s21, 2
      // Predicated region
      $region17: #{arnn_forward.4} parent=5 // pred_check
        %p191 = pneg %p190
      $region18: #{arnn_forward.4} parent=5 // pred_check_branch
        %193 = sbr.rel (%p191) target = $region20
      $region19: #{arnn_forward.4} parent=5 // pred_region
        // Predicated region
        $region21: #{arnn_forward.4} parent=19 // pred_check
          %p194 = pneg %p62
        $region22: #{arnn_forward.4} parent=19 // pred_check_branch
          %196 = sbr.rel (%p194) target = $region24
        $region23: #{arnn_forward.4} parent=19 // pred_region
          %s197 = sand.u32 %s52, 1
          %s198 = scalar_lea.sflag [#allocation4], %s197
          %s199 = sand.u32 %s52, 1
          %s200 = smul.addr %s199, 16
          %s201 = scalar_lea.vmem [#allocation3], %s200
          %s203 = ssub.s32 256, 256
          %204 = vsyncadd %s198, %s203
          %s205 = smul.addr %s21, 2
          %s206 = smul.addr %s205, 128
          %s207 = scalar_lea.hbm %s1, %s206
          %s208 = sshll.u32 %s201, 4
          %s209 = int_to_ptr.vmem [resolvable:$true] %s208
          %214 = dma.hbm_to_vmem [thread:$0]  %s207, 256, %s209, %s198, 128, 128, 8
        $region24: #{arnn_forward.4} parent=19 // pred_fallthru
          _
        // Predicated region
        $region25: #{arnn_forward.4} parent=19 // pred_check
          %p215 = pneg %p88
        $region26: #{arnn_forward.4} parent=19 // pred_check_branch
          %217 = sbr.rel (%p215) target = $region28
        $region27: #{arnn_forward.4} parent=19 // pred_region
          %s218 = sand.u32 %s21, 1
          %s219 = scalar_lea.sflag [#allocation7], %s218
          %s220 = sand.u32 %s78, 1
          %s221 = smul.addr %s220, 32
          %s222 = scalar_lea.vmem [#allocation6], %s221
          %s224 = ssub.s32 512, 512
          %225 = vsyncadd %s219, %s224
          %s226 = smul.addr %s21, 4
          %s227 = smul.addr %s226, 128
          %s228 = scalar_lea.hbm %s2, %s227
          %s229 = sshll.u32 %s222, 4
          %s230 = int_to_ptr.vmem [resolvable:$true] %s229
          %235 = dma.hbm_to_vmem [thread:$0]  %s228, 512, %s230, %s219, 128, 128, 8
        $region28: #{arnn_forward.4} parent=19 // pred_fallthru
          _
        // Predicated region
        $region29: #{arnn_forward.4} parent=19 // pred_check
          %p236 = pneg %p114
        $region30: #{arnn_forward.4} parent=19 // pred_check_branch
          %238 = sbr.rel (%p236) target = $region32
        $region31: #{arnn_forward.4} parent=19 // pred_region
          %s239 = sand.u32 %s21, 1
          %s240 = scalar_lea.sflag [#allocation7], %s239
          %s241 = sand.u32 %s104, 1
          %s242 = scalar_lea.vmem [#allocation8], %s241
          %s244 = ssub.s32 16, 16
          %245 = vsyncadd %s240, %s244
          %s246 = smul.addr %s21, 16
          %s247 = scalar_lea.hbm %s3, %s246
          %s249 = sshll.u32 %s242, 4
          %s250 = int_to_ptr.vmem [resolvable:$true] %s249
          %252 = dma.hbm_to_vmem [thread:$0]  %s247, 16, %s250, %s240
        $region32: #{arnn_forward.4} parent=19 // pred_fallthru
          _
      $region20: #{arnn_forward.4} parent=5 // pred_fallthru
        _
      %p253 = scmp.le.s32.totalorder 1, %s21
      %p254 = scmp.lt.s32.totalorder %s21, 3
      %p255 = pnand %p253, %p254
      %p256 = pneg %p255
      // Predicated region
      $region33: #{arnn_forward.4} parent=5 // pred_check
        _
      $region34: #{arnn_forward.4} parent=5 // pred_check_branch
        %258 = sbr.rel (%p255) target = $region36
      $region35: #{arnn_forward.4} parent=5 // pred_region
        %s259 = ssub.s32 %s21, 1
        %s260 = sand.u32 %s55, 1
        %s261 = scalar_lea.sflag [#allocation4], %s260
        %s262 = sand.u32 %s55, 1
        %s263 = smul.addr %s262, 16
        %s264 = scalar_lea.vmem [#allocation3], %s263
        // Predicated region
        $region37: #{arnn_forward.4} parent=35 // pred_check
          %p265 = pneg %p68
        $region38: #{arnn_forward.4} parent=35 // pred_check_branch
          %267 = sbr.rel (%p265) target = $region40
        $region39: #{arnn_forward.4} parent=35 // pred_region
          %268 = dma.done %s261, 256
        $region40: #{arnn_forward.4} parent=35 // pred_fallthru
          _
        %s269 = sand.u32 %s26, 1
        %s270 = scalar_lea.sflag [#allocation7], %s269
        %s271 = sand.u32 %s81, 1
        %s272 = smul.addr %s271, 32
        %s273 = scalar_lea.vmem [#allocation6], %s272
        // Predicated region
        $region41: #{arnn_forward.4} parent=35 // pred_check
          %p274 = pneg %p94
        $region42: #{arnn_forward.4} parent=35 // pred_check_branch
          %276 = sbr.rel (%p274) target = $region44
        $region43: #{arnn_forward.4} parent=35 // pred_region
          %277 = dma.done %s270, 512
        $region44: #{arnn_forward.4} parent=35 // pred_fallthru
          _
        %s278 = sand.u32 %s26, 1
        %s279 = scalar_lea.sflag [#allocation7], %s278
        %s280 = sand.u32 %s107, 1
        %s281 = scalar_lea.vmem [#allocation8], %s280
        // Predicated region
        $region45: #{arnn_forward.4} parent=35 // pred_check
          %p282 = pneg %p120
        $region46: #{arnn_forward.4} parent=35 // pred_check_branch
          %284 = sbr.rel (%p282) target = $region48
        $region47: #{arnn_forward.4} parent=35 // pred_region
          %285 = dma.done %s279, 16
        $region48: #{arnn_forward.4} parent=35 // pred_fallthru
          _
        %p286 = pneg %p42
        %p287 = pneg %p39
        %s288 = sand.u32 %s55, 1
        %s289 = scalar_lea.sflag [#allocation4], %s288
        %s290 = sand.u32 %s55, 1
        %s291 = smul.addr %s290, 16
        %s292 = scalar_lea.vmem [#allocation3], %s291
        %p293 = pneg %p68
        %p294 = pneg %p65
        %s295 = sand.u32 %s26, 1
        %s296 = scalar_lea.sflag [#allocation7], %s295
        %s297 = sand.u32 %s81, 1
        %s298 = smul.addr %s297, 32
        %s299 = scalar_lea.vmem [#allocation6], %s298
        %p300 = pneg %p94
        %p301 = pneg %p91
        %s302 = sand.u32 %s26, 1
        %s303 = scalar_lea.sflag [#allocation7], %s302
        %s304 = sand.u32 %s107, 1
        %s305 = scalar_lea.vmem [#allocation8], %s304
        %p306 = pneg %p120
        %p307 = pneg %p117
        %p308 = pneg %p146
        %p309 = pneg %p143
        %p310 = scmp.lt.s32.totalorder %s26, 1
        %s311 = scalar_select %p310, %s26, 1
        %s312 = smul.addr %s311, 8
        %s313 = smul.addr %s312, 2
        %s314 = scalar_lea.vmem %s4, %s313
        %p315 = pneg %p172
        %p316 = pneg %p169
        %s317 = sand.u32 %s159, 1
        %s318 = scalar_lea.sflag [#allocation5], %s317
        %s319 = sand.u32 %s159, 1
        %s320 = smul.addr %s319, 2
        %s321 = scalar_lea.vmem [#allocation9], %s320
        %p322 = scmp.lt.s32.totalorder %s26, 1
        %s323 = scalar_select %p322, %s26, 1
        %s324 = smul.addr %s323, 8
        %s325 = smul.addr %s324, 2
        %s326 = scalar_lea.vmem %s4, %s325
        %v327 = vld [vmem:[%s0] sm:$0xff]
        %v328 = vld [vmem:[%s0 + $0x8] sm:$0xff]
        %v329 = vld [vmem:[%s264] sm:$0xff]
        %v330 = vld [vmem:[%s264 + $0x8] sm:$0xff]
        %v331 = vld [vmem:[%s281] sm:$0x1]
        %v333 = vlaneseq
        %v334 = vshrl.u32 %v333, 7
        %v335 = vsub.s32 0, %v334
        %v336 = vrot.slane %v331, %v335
        %vm338 = vcmask 130048
        %v340 = vsel %vm338, %v327, 0
        %v343 = vsel %vm338, %v328, 0
        %345 = vmatprep.subr.mxu0 0.0
        %346 = vmatpush1.msra.mxu0 %v329
        %347 = vmatprep.subr.mxu0 0.0
        %348 = vmatpush1.msra.mxu0 %v330
        %349 = vmatprep.subr.mxu0 0.0
        %350 = vmatpush1.msra.mxu0 0.0
        %351 = vmatprep.subr.mxu0 0.0
        %352 = vmatpush1.msra.mxu0 0.0
        %353 = vmatprep.subr.mxu0 0.0
        %354 = vmatpush1.msra.mxu0 0.0
        %355 = vmatprep.subr.mxu0 0.0
        %356 = vmatpush1.msra.mxu0 0.0
        %357 = vmatprep.subr.mxu0 0.0
        %358 = vmatpush1.msra.mxu0 0.0
        %359 = vmatprep.subr.mxu0 0.0
        %360 = vmatpush1.msra.mxu0 0.0
        %361 = vmatprep.subr.mxu0 0.0
        %362 = vmatpush1.msra.mxu0 0.0
        %363 = vmatprep.subr.mxu0 0.0
        %364 = vmatpush1.msra.mxu0 0.0
        %365 = vmatprep.subr.mxu0 0.0
        %366 = vmatpush1.msra.mxu0 0.0
        %367 = vmatprep.subr.mxu0 0.0
        %368 = vmatpush1.msra.mxu0 0.0
        %369 = vmatprep.subr.mxu0 0.0
        %370 = vmatpush1.msra.mxu0 0.0
        %371 = vmatprep.subr.mxu0 0.0
        %372 = vmatpush1.msra.mxu0 0.0
        %373 = vmatprep.subr.mxu0 0.0
        %374 = vmatpush1.msra.mxu0 0.0
        %375 = vmatprep.subr.mxu0 0.0
        %376 = vmatpush1.msra.mxu0 0.0
        %377 = vmatprep.subr.mxu0 0.0
        %378 = vmatpush1.msra.mxu0 0.0
        %379 = vmatprep.subr.mxu0 0.0
        %380 = vmatpush1.msra.mxu0 0.0
        %381 = vmatprep.subr.mxu0 0.0
        %382 = vmatpush1.msra.mxu0 0.0
        %383 = vmatprep.subr.mxu0 0.0
        %384 = vmatpush1.msra.mxu0 0.0
        %385 = vmatprep.subr.mxu0 0.0
        %386 = vmatpush1.msra.mxu0 0.0
        %387 = vmatprep.subr.mxu0 0.0
        %388 = vmatpush1.msra.mxu0 0.0
        %389 = vmatprep.subr.mxu0 0.0
        %390 = vmatpush1.msra.mxu0 0.0
        %391 = vmatprep.subr.mxu0 0.0
        %392 = vmatpush1.msra.mxu0 0.0
        %393 = vmatprep.subr.mxu0 0.0
        %394 = vmatpush1.msra.mxu0 0.0
        %395 = vmatprep.subr.mxu0 0.0
        %396 = vmatpush1.msra.mxu0 0.0
        %397 = vmatprep.subr.mxu0 0.0
        %398 = vmatpush1.msra.mxu0 0.0
        %399 = vmatprep.subr.mxu0 0.0
        %400 = vmatpush1.msra.mxu0 0.0
        %401 = vmatprep.subr.mxu0 0.0
        %402 = vmatpush1.msra.mxu0 0.0
        %403 = vmatprep.subr.mxu0 0.0
        %404 = vmatpush1.msra.mxu0 0.0
        %405 = vmatprep.subr.mxu0 0.0
        %406 = vmatpush1.msra.mxu0 0.0
        %407 = vmatprep.subr.mxu0 0.0
        %408 = vmatpush1.msra.mxu0 0.0
        %409 = vmatprep.mubr.f32.mxu0 0.0
        %410 = vmatmul.mubr.f32.gmra.mrb[0].mxu0 %v340
        %v411 = vpop.f32.mrb[0].mxu0
        %v412 = vadd.f32 %v336, %v411
        %v413 = vpop.f32.mrb[0].mxu0
        %414 = vmatprep.mubr.f32.mxu0 0.0
        %415 = vmatmul.mubr.f32.gmra.mrb[0].mxu0 %v343
        %v416 = vpop.f32.mrb[0].mxu0
        %v417 = vadd.f32 %v336, %v416
        %v418 = vpop.f32.mrb[0].mxu0
        %419 = vdwg.mxu0
        %420 = vst [vmem:[#allocation2] sm:$0xff] %v412
        %421 = vst [vmem:[#allocation2 + $0x8] sm:$0xff] %v417
        %v422 = vld [vmem:[%s273] sm:$0xff]
        %v423 = vld [vmem:[%s273 + $0x8] sm:$0xff]
        %v424 = vld [vmem:[%s273 + $0x10] sm:$0xff]
        %v425 = vld [vmem:[%s273 + $0x18] sm:$0xff]
        %p426 = scmp.eq.s32.totalorder %s26, 1
        %s427 = scalar_select %p426, 7, 0
        %s428 = smul.u32 %s427, 2
        %s429 = scalar_lea.vmem [#allocation2], %s428
        %v430 = vld [vmem:[%s429] sm:$0x3]
        %vm431 = vcmask 261120
        %v433 = vsel %vm431, 0.0, 0
        %435 = vmatprep.subr.mxu0 0.0
        %436 = vmatpush1.msra.mxu0 %v422
        %437 = vmatprep.subr.mxu0 0.0
        %438 = vmatpush1.msra.mxu0 %v423
        %439 = vmatprep.subr.mxu0 0.0
        %440 = vmatpush1.msra.mxu0 %v424
        %441 = vmatprep.subr.mxu0 0.0
        %442 = vmatpush1.msra.mxu0 %v425
        %443 = vmatprep.subr.mxu0 0.0
        %444 = vmatpush1.msra.mxu0 0.0
        %445 = vmatprep.subr.mxu0 0.0
        %446 = vmatpush1.msra.mxu0 0.0
        %447 = vmatprep.subr.mxu0 0.0
        %448 = vmatpush1.msra.mxu0 0.0
        %449 = vmatprep.subr.mxu0 0.0
        %450 = vmatpush1.msra.mxu0 0.0
        %451 = vmatprep.subr.mxu0 0.0
        %452 = vmatpush1.msra.mxu0 0.0
        %453 = vmatprep.subr.mxu0 0.0
        %454 = vmatpush1.msra.mxu0 0.0
        %455 = vmatprep.subr.mxu0 0.0
        %456 = vmatpush1.msra.mxu0 0.0
        %457 = vmatprep.subr.mxu0 0.0
        %458 = vmatpush1.msra.mxu0 0.0
        %459 = vmatprep.subr.mxu0 0.0
        %460 = vmatpush1.msra.mxu0 0.0
        %461 = vmatprep.subr.mxu0 0.0
        %462 = vmatpush1.msra.mxu0 0.0
        %463 = vmatprep.subr.mxu0 0.0
        %464 = vmatpush1.msra.mxu0 0.0
        %465 = vmatprep.subr.mxu0 0.0
        %466 = vmatpush1.msra.mxu0 0.0
        %467 = vmatprep.subr.mxu0 0.0
        %468 = vmatpush1.msra.mxu0 0.0
        %469 = vmatprep.subr.mxu0 0.0
        %470 = vmatpush1.msra.mxu0 0.0
        %471 = vmatprep.subr.mxu0 0.0
        %472 = vmatpush1.msra.mxu0 0.0
        %473 = vmatprep.subr.mxu0 0.0
        %474 = vmatpush1.msra.mxu0 0.0
        %475 = vmatprep.subr.mxu0 0.0
        %476 = vmatpush1.msra.mxu0 0.0
        %477 = vmatprep.subr.mxu0 0.0
        %478 = vmatpush1.msra.mxu0 0.0
        %479 = vmatprep.subr.mxu0 0.0
        %480 = vmatpush1.msra.mxu0 0.0
        %481 = vmatprep.subr.mxu0 0.0
        %482 = vmatpush1.msra.mxu0 0.0
        %483 = vmatprep.subr.mxu0 0.0
        %484 = vmatpush1.msra.mxu0 0.0
        %485 = vmatprep.subr.mxu0 0.0
        %486 = vmatpush1.msra.mxu0 0.0
        %487 = vmatprep.subr.mxu0 0.0
        %488 = vmatpush1.msra.mxu0 0.0
        %489 = vmatprep.subr.mxu0 0.0
        %490 = vmatpush1.msra.mxu0 0.0
        %491 = vmatprep.subr.mxu0 0.0
        %492 = vmatpush1.msra.mxu0 0.0
        %493 = vmatprep.subr.mxu0 0.0
        %494 = vmatpush1.msra.mxu0 0.0
        %495 = vmatprep.subr.mxu0 0.0
        %496 = vmatpush1.msra.mxu0 0.0
        %497 = vmatprep.subr.mxu0 0.0
        %498 = vmatpush1.msra.mxu0 0.0
        %499 = vmatprep.mubr.f32.mxu0 0.0
        %500 = vmatmul.mubr.f32.gmra.mrb[0].mxu0 %v433
        %v501 = vpop.f32.mrb[0].mxu0
        %v502 = vadd.f32 0.0, %v501
        %v503 = vpop.f32.mrb[0].mxu0
        %504 = vdwg.mxu0
        %v505 = vadd.f32 %v430, %v502
        %v506 = vxor.u32 %v505, 2147483648
        %v507 = vmul.f32 %v506, 1.442695
        %v508 = vpow.pop %v507
        %v509 = vadd.f32 %v508, 1.0
        %v510 = vrcp.pop %v509
        %v511 = vmul.f32 1.0, %v510
        %v512 = vtanh.pop %v505
        %v513 = vmul.f32 %v511, 0.0
        %515 = vrot.lane.b32.xlu0 %v512, 64
        %v516 = vpop.permute.xlu0 %515
        %v518 = vmul.f32 %v511, %v516
        %520 = vrot.lane.b32.xlu0 %v518, 32
        %v521 = vpop.permute.xlu0 %520
        %v523 = vadd.f32 %v513, %v521
        %v524 = vtanh.pop %v523
        %526 = vrot.lane.b32.xlu0 %v524, 64
        %v527 = vpop.permute.xlu0 %526
        %v529 = vmul.f32 %v511, %v527
        %531 = vrot.lane.b32.xlu0 %v529, 32
        %v532 = vpop.permute.xlu0 %531
        %s534 = scalar_lea.vmem %s326, %s428
        %vm535 = vcmask 254976
        %536 = vst.msk [vmem:[%s534] sm:$0x3] %vm535, %v532
        %s537 = scalar_select %p426, 6, 1
        %s538 = smul.u32 %s537, 2
        %s539 = scalar_lea.vmem [#allocation2], %s538
        %v540 = vld [vmem:[%s539] sm:$0x3]
        %v541 = vsel %vm431, %v532, 0
        %543 = vmatprep.subr.mxu0 0.0
        %544 = vmatpush1.msra.mxu0 %v422
        %545 = vmatprep.subr.mxu0 0.0
        %546 = vmatpush1.msra.mxu0 %v423
        %547 = vmatprep.subr.mxu0 0.0
        %548 = vmatpush1.msra.mxu0 %v424
        %549 = vmatprep.subr.mxu0 0.0
        %550 = vmatpush1.msra.mxu0 %v425
        %551 = vmatprep.subr.mxu0 0.0
        %552 = vmatpush1.msra.mxu0 0.0
        %553 = vmatprep.subr.mxu0 0.0
        %554 = vmatpush1.msra.mxu0 0.0
        %555 = vmatprep.subr.mxu0 0.0
        %556 = vmatpush1.msra.mxu0 0.0
        %557 = vmatprep.subr.mxu0 0.0
        %558 = vmatpush1.msra.mxu0 0.0
        %559 = vmatprep.subr.mxu0 0.0
        %560 = vmatpush1.msra.mxu0 0.0
        %561 = vmatprep.subr.mxu0 0.0
        %562 = vmatpush1.msra.mxu0 0.0
        %563 = vmatprep.subr.mxu0 0.0
        %564 = vmatpush1.msra.mxu0 0.0
        %565 = vmatprep.subr.mxu0 0.0
        %566 = vmatpush1.msra.mxu0 0.0
        %567 = vmatprep.subr.mxu0 0.0
        %568 = vmatpush1.msra.mxu0 0.0
        %569 = vmatprep.subr.mxu0 0.0
        %570 = vmatpush1.msra.mxu0 0.0
        %571 = vmatprep.subr.mxu0 0.0
        %572 = vmatpush1.msra.mxu0 0.0
        %573 = vmatprep.subr.mxu0 0.0
        %574 = vmatpush1.msra.mxu0 0.0
        %575 = vmatprep.subr.mxu0 0.0
        %576 = vmatpush1.msra.mxu0 0.0
        %577 = vmatprep.subr.mxu0 0.0
        %578 = vmatpush1.msra.mxu0 0.0
        %579 = vmatprep.subr.mxu0 0.0
        %580 = vmatpush1.msra.mxu0 0.0
        %581 = vmatprep.subr.mxu0 0.0
        %582 = vmatpush1.msra.mxu0 0.0
        %583 = vmatprep.subr.mxu0 0.0
        %584 = vmatpush1.msra.mxu0 0.0
        %585 = vmatprep.subr.mxu0 0.0
        %586 = vmatpush1.msra.mxu0 0.0
        %587 = vmatprep.subr.mxu0 0.0
        %588 = vmatpush1.msra.mxu0 0.0
        %589 = vmatprep.subr.mxu0 0.0
        %590 = vmatpush1.msra.mxu0 0.0
        %591 = vmatprep.subr.mxu0 0.0
        %592 = vmatpush1.msra.mxu0 0.0
        %593 = vmatprep.subr.mxu0 0.0
        %594 = vmatpush1.msra.mxu0 0.0
        %595 = vmatprep.subr.mxu0 0.0
        %596 = vmatpush1.msra.mxu0 0.0
        %597 = vmatprep.subr.mxu0 0.0
        %598 = vmatpush1.msra.mxu0 0.0
        %599 = vmatprep.subr.mxu0 0.0
        %600 = vmatpush1.msra.mxu0 0.0
        %601 = vmatprep.subr.mxu0 0.0
        %602 = vmatpush1.msra.mxu0 0.0
        %603 = vmatprep.subr.mxu0 0.0
        %604 = vmatpush1.msra.mxu0 0.0
        %605 = vmatprep.subr.mxu0 0.0
        %606 = vmatpush1.msra.mxu0 0.0
        %607 = vmatprep.mubr.f32.mxu0 0.0
        %608 = vmatmul.mubr.f32.gmra.mrb[0].mxu0 %v541
        %v609 = vpop.f32.mrb[0].mxu0
        %v610 = vadd.f32 0.0, %v609
        %v611 = vpop.f32.mrb[0].mxu0
        %612 = vdwg.mxu0
        %v613 = vadd.f32 %v540, %v610
        %v614 = vxor.u32 %v613, 2147483648
        %v615 = vmul.f32 %v614, 1.442695
        %v616 = vpow.pop %v615
        %v617 = vadd.f32 %v616, 1.0
        %v618 = vrcp.pop %v617
        %v619 = vmul.f32 1.0, %v618
        %v620 = vtanh.pop %v613
        %v621 = vmul.f32 %v619, %v523
        %623 = vrot.lane.b32.xlu0 %v620, 64
        %v624 = vpop.permute.xlu0 %623
        %v626 = vmul.f32 %v619, %v624
        %628 = vrot.lane.b32.xlu0 %v626, 32
        %v629 = vpop.permute.xlu0 %628
        %v631 = vadd.f32 %v621, %v629
        %v632 = vtanh.pop %v631
        %634 = vrot.lane.b32.xlu0 %v632, 64
        %v635 = vpop.permute.xlu0 %634
        %v637 = vmul.f32 %v619, %v635
        %639 = vrot.lane.b32.xlu0 %v637, 32
        %v640 = vpop.permute.xlu0 %639
        %s642 = scalar_lea.vmem %s326, %s538
        %643 = vst.msk [vmem:[%s642] sm:$0x3] %vm535, %v640
        %s644 = scalar_select %p426, 5, 2
        %s645 = smul.u32 %s644, 2
        %s646 = scalar_lea.vmem [#allocation2], %s645
        %v647 = vld [vmem:[%s646] sm:$0x3]
        %v648 = vsel %vm431, %v640, 0
        %650 = vmatprep.subr.mxu0 0.0
        %651 = vmatpush1.msra.mxu0 %v422
        %652 = vmatprep.subr.mxu0 0.0
        %653 = vmatpush1.msra.mxu0 %v423
        %654 = vmatprep.subr.mxu0 0.0
        %655 = vmatpush1.msra.mxu0 %v424
        %656 = vmatprep.subr.mxu0 0.0
        %657 = vmatpush1.msra.mxu0 %v425
        %658 = vmatprep.subr.mxu0 0.0
        %659 = vmatpush1.msra.mxu0 0.0
        %660 = vmatprep.subr.mxu0 0.0
        %661 = vmatpush1.msra.mxu0 0.0
        %662 = vmatprep.subr.mxu0 0.0
        %663 = vmatpush1.msra.mxu0 0.0
        %664 = vmatprep.subr.mxu0 0.0
        %665 = vmatpush1.msra.mxu0 0.0
        %666 = vmatprep.subr.mxu0 0.0
        %667 = vmatpush1.msra.mxu0 0.0
        %668 = vmatprep.subr.mxu0 0.0
        %669 = vmatpush1.msra.mxu0 0.0
        %670 = vmatprep.subr.mxu0 0.0
        %671 = vmatpush1.msra.mxu0 0.0
        %672 = vmatprep.subr.mxu0 0.0
        %673 = vmatpush1.msra.mxu0 0.0
        %674 = vmatprep.subr.mxu0 0.0
        %675 = vmatpush1.msra.mxu0 0.0
        %676 = vmatprep.subr.mxu0 0.0
        %677 = vmatpush1.msra.mxu0 0.0
        %678 = vmatprep.subr.mxu0 0.0
        %679 = vmatpush1.msra.mxu0 0.0
        %680 = vmatprep.subr.mxu0 0.0
        %681 = vmatpush1.msra.mxu0 0.0
        %682 = vmatprep.subr.mxu0 0.0
        %683 = vmatpush1.msra.mxu0 0.0
        %684 = vmatprep.subr.mxu0 0.0
        %685 = vmatpush1.msra.mxu0 0.0
        %686 = vmatprep.subr.mxu0 0.0
        %687 = vmatpush1.msra.mxu0 0.0
        %688 = vmatprep.subr.mxu0 0.0
        %689 = vmatpush1.msra.mxu0 0.0
        %690 = vmatprep.subr.mxu0 0.0
        %691 = vmatpush1.msra.mxu0 0.0
        %692 = vmatprep.subr.mxu0 0.0
        %693 = vmatpush1.msra.mxu0 0.0
        %694 = vmatprep.subr.mxu0 0.0
        %695 = vmatpush1.msra.mxu0 0.0
        %696 = vmatprep.subr.mxu0 0.0
        %697 = vmatpush1.msra.mxu0 0.0
        %698 = vmatprep.subr.mxu0 0.0
        %699 = vmatpush1.msra.mxu0 0.0
        %700 = vmatprep.subr.mxu0 0.0
        %701 = vmatpush1.msra.mxu0 0.0
        %702 = vmatprep.subr.mxu0 0.0
        %703 = vmatpush1.msra.mxu0 0.0
        %704 = vmatprep.subr.mxu0 0.0
        %705 = vmatpush1.msra.mxu0 0.0
        %706 = vmatprep.subr.mxu0 0.0
        %707 = vmatpush1.msra.mxu0 0.0
        %708 = vmatprep.subr.mxu0 0.0
        %709 = vmatpush1.msra.mxu0 0.0
        %710 = vmatprep.subr.mxu0 0.0
        %711 = vmatpush1.msra.mxu0 0.0
        %712 = vmatprep.subr.mxu0 0.0
        %713 = vmatpush1.msra.mxu0 0.0
        %714 = vmatprep.mubr.f32.mxu0 0.0
        %715 = vmatmul.mubr.f32.gmra.mrb[0].mxu0 %v648
        %v716 = vpop.f32.mrb[0].mxu0
        %v717 = vadd.f32 0.0, %v716
        %v718 = vpop.f32.mrb[0].mxu0
        %719 = vdwg.mxu0
        %v720 = vadd.f32 %v647, %v717
        %v721 = vxor.u32 %v720, 2147483648
        %v722 = vmul.f32 %v721, 1.442695
        %v723 = vpow.pop %v722
        %v724 = vadd.f32 %v723, 1.0
        %v725 = vrcp.pop %v724
        %v726 = vmul.f32 1.0, %v725
        %v727 = vtanh.pop %v720
        %v728 = vmul.f32 %v726, %v631
        %730 = vrot.lane.b32.xlu0 %v727, 64
        %v731 = vpop.permute.xlu0 %730
        %v733 = vmul.f32 %v726, %v731
        %735 = vrot.lane.b32.xlu0 %v733, 32
        %v736 = vpop.permute.xlu0 %735
        %v738 = vadd.f32 %v728, %v736
        %v739 = vtanh.pop %v738
        %741 = vrot.lane.b32.xlu0 %v739, 64
        %v742 = vpop.permute.xlu0 %741
        %v744 = vmul.f32 %v726, %v742
        %746 = vrot.lane.b32.xlu0 %v744, 32
        %v747 = vpop.permute.xlu0 %746
        %s749 = scalar_lea.vmem %s326, %s645
        %750 = vst.msk [vmem:[%s749] sm:$0x3] %vm535, %v747
        %s751 = scalar_select %p426, 4, 3
        %s752 = smul.u32 %s751, 2
        %s753 = scalar_lea.vmem [#allocation2], %s752
        %v754 = vld [vmem:[%s753] sm:$0x3]
        %v755 = vsel %vm431, %v747, 0
        %757 = vmatprep.subr.mxu0 0.0
        %758 = vmatpush1.msra.mxu0 %v422
        %759 = vmatprep.subr.mxu0 0.0
        %760 = vmatpush1.msra.mxu0 %v423
        %761 = vmatprep.subr.mxu0 0.0
        %762 = vmatpush1.msra.mxu0 %v424
        %763 = vmatprep.subr.mxu0 0.0
        %764 = vmatpush1.msra.mxu0 %v425
        %765 = vmatprep.subr.mxu0 0.0
        %766 = vmatpush1.msra.mxu0 0.0
        %767 = vmatprep.subr.mxu0 0.0
        %768 = vmatpush1.msra.mxu0 0.0
        %769 = vmatprep.subr.mxu0 0.0
        %770 = vmatpush1.msra.mxu0 0.0
        %771 = vmatprep.subr.mxu0 0.0
        %772 = vmatpush1.msra.mxu0 0.0
        %773 = vmatprep.subr.mxu0 0.0
        %774 = vmatpush1.msra.mxu0 0.0
        %775 = vmatprep.subr.mxu0 0.0
        %776 = vmatpush1.msra.mxu0 0.0
        %777 = vmatprep.subr.mxu0 0.0
        %778 = vmatpush1.msra.mxu0 0.0
        %779 = vmatprep.subr.mxu0 0.0
        %780 = vmatpush1.msra.mxu0 0.0
        %781 = vmatprep.subr.mxu0 0.0
        %782 = vmatpush1.msra.mxu0 0.0
        %783 = vmatprep.subr.mxu0 0.0
        %784 = vmatpush1.msra.mxu0 0.0
        %785 = vmatprep.subr.mxu0 0.0
        %786 = vmatpush1.msra.mxu0 0.0
        %787 = vmatprep.subr.mxu0 0.0
        %788 = vmatpush1.msra.mxu0 0.0
        %789 = vmatprep.subr.mxu0 0.0
        %790 = vmatpush1.msra.mxu0 0.0
        %791 = vmatprep.subr.mxu0 0.0
        %792 = vmatpush1.msra.mxu0 0.0
        %793 = vmatprep.subr.mxu0 0.0
        %794 = vmatpush1.msra.mxu0 0.0
        %795 = vmatprep.subr.mxu0 0.0
        %796 = vmatpush1.msra.mxu0 0.0
        %797 = vmatprep.subr.mxu0 0.0
        %798 = vmatpush1.msra.mxu0 0.0
        %799 = vmatprep.subr.mxu0 0.0
        %800 = vmatpush1.msra.mxu0 0.0
        %801 = vmatprep.subr.mxu0 0.0
        %802 = vmatpush1.msra.mxu0 0.0
        %803 = vmatprep.subr.mxu0 0.0
        %804 = vmatpush1.msra.mxu0 0.0
        %805 = vmatprep.subr.mxu0 0.0
        %806 = vmatpush1.msra.mxu0 0.0
        %807 = vmatprep.subr.mxu0 0.0
        %808 = vmatpush1.msra.mxu0 0.0
        %809 = vmatprep.subr.mxu0 0.0
        %810 = vmatpush1.msra.mxu0 0.0
        %811 = vmatprep.subr.mxu0 0.0
        %812 = vmatpush1.msra.mxu0 0.0
        %813 = vmatprep.subr.mxu0 0.0
        %814 = vmatpush1.msra.mxu0 0.0
        %815 = vmatprep.subr.mxu0 0.0
        %816 = vmatpush1.msra.mxu0 0.0
        %817 = vmatprep.subr.mxu0 0.0
        %818 = vmatpush1.msra.mxu0 0.0
        %819 = vmatprep.subr.mxu0 0.0
        %820 = vmatpush1.msra.mxu0 0.0
        %821 = vmatprep.mubr.f32.mxu0 0.0
        %822 = vmatmul.mubr.f32.gmra.mrb[0].mxu0 %v755
        %v823 = vpop.f32.mrb[0].mxu0
        %v824 = vadd.f32 0.0, %v823
        %v825 = vpop.f32.mrb[0].mxu0
        %826 = vdwg.mxu0
        %v827 = vadd.f32 %v754, %v824
        %v828 = vxor.u32 %v827, 2147483648
        %v829 = vmul.f32 %v828, 1.442695
        %v830 = vpow.pop %v829
        %v831 = vadd.f32 %v830, 1.0
        %v832 = vrcp.pop %v831
        %v833 = vmul.f32 1.0, %v832
        %v834 = vtanh.pop %v827
        %v835 = vmul.f32 %v833, %v738
        %837 = vrot.lane.b32.xlu0 %v834, 64
        %v838 = vpop.permute.xlu0 %837
        %v840 = vmul.f32 %v833, %v838
        %842 = vrot.lane.b32.xlu0 %v840, 32
        %v843 = vpop.permute.xlu0 %842
        %v845 = vadd.f32 %v835, %v843
        %v846 = vtanh.pop %v845
        %848 = vrot.lane.b32.xlu0 %v846, 64
        %v849 = vpop.permute.xlu0 %848
        %v851 = vmul.f32 %v833, %v849
        %853 = vrot.lane.b32.xlu0 %v851, 32
        %v854 = vpop.permute.xlu0 %853
        %s856 = scalar_lea.vmem %s326, %s752
        %857 = vst.msk [vmem:[%s856] sm:$0x3] %vm535, %v854
        %s858 = scalar_select %p426, 3, 4
        %s859 = smul.u32 %s858, 2
        %s860 = scalar_lea.vmem [#allocation2], %s859
        %v861 = vld [vmem:[%s860] sm:$0x3]
        %v862 = vsel %vm431, %v854, 0
        %864 = vmatprep.subr.mxu0 0.0
        %865 = vmatpush1.msra.mxu0 %v422
        %866 = vmatprep.subr.mxu0 0.0
        %867 = vmatpush1.msra.mxu0 %v423
        %868 = vmatprep.subr.mxu0 0.0
        %869 = vmatpush1.msra.mxu0 %v424
        %870 = vmatprep.subr.mxu0 0.0
        %871 = vmatpush1.msra.mxu0 %v425
        %872 = vmatprep.subr.mxu0 0.0
        %873 = vmatpush1.msra.mxu0 0.0
        %874 = vmatprep.subr.mxu0 0.0
        %875 = vmatpush1.msra.mxu0 0.0
        %876 = vmatprep.subr.mxu0 0.0
        %877 = vmatpush1.msra.mxu0 0.0
        %878 = vmatprep.subr.mxu0 0.0
        %879 = vmatpush1.msra.mxu0 0.0
        %880 = vmatprep.subr.mxu0 0.0
        %881 = vmatpush1.msra.mxu0 0.0
        %882 = vmatprep.subr.mxu0 0.0
        %883 = vmatpush1.msra.mxu0 0.0
        %884 = vmatprep.subr.mxu0 0.0
        %885 = vmatpush1.msra.mxu0 0.0
        %886 = vmatprep.subr.mxu0 0.0
        %887 = vmatpush1.msra.mxu0 0.0
        %888 = vmatprep.subr.mxu0 0.0
        %889 = vmatpush1.msra.mxu0 0.0
        %890 = vmatprep.subr.mxu0 0.0
        %891 = vmatpush1.msra.mxu0 0.0
        %892 = vmatprep.subr.mxu0 0.0
        %893 = vmatpush1.msra.mxu0 0.0
        %894 = vmatprep.subr.mxu0 0.0
        %895 = vmatpush1.msra.mxu0 0.0
        %896 = vmatprep.subr.mxu0 0.0
        %897 = vmatpush1.msra.mxu0 0.0
        %898 = vmatprep.subr.mxu0 0.0
        %899 = vmatpush1.msra.mxu0 0.0
        %900 = vmatprep.subr.mxu0 0.0
        %901 = vmatpush1.msra.mxu0 0.0
        %902 = vmatprep.subr.mxu0 0.0
        %903 = vmatpush1.msra.mxu0 0.0
        %904 = vmatprep.subr.mxu0 0.0
        %905 = vmatpush1.msra.mxu0 0.0
        %906 = vmatprep.subr.mxu0 0.0
        %907 = vmatpush1.msra.mxu0 0.0
        %908 = vmatprep.subr.mxu0 0.0
        %909 = vmatpush1.msra.mxu0 0.0
        %910 = vmatprep.subr.mxu0 0.0
        %911 = vmatpush1.msra.mxu0 0.0
        %912 = vmatprep.subr.mxu0 0.0
        %913 = vmatpush1.msra.mxu0 0.0
        %914 = vmatprep.subr.mxu0 0.0
        %915 = vmatpush1.msra.mxu0 0.0
        %916 = vmatprep.subr.mxu0 0.0
        %917 = vmatpush1.msra.mxu0 0.0
        %918 = vmatprep.subr.mxu0 0.0
        %919 = vmatpush1.msra.mxu0 0.0
        %920 = vmatprep.subr.mxu0 0.0
        %921 = vmatpush1.msra.mxu0 0.0
        %922 = vmatprep.subr.mxu0 0.0
        %923 = vmatpush1.msra.mxu0 0.0
        %924 = vmatprep.subr.mxu0 0.0
        %925 = vmatpush1.msra.mxu0 0.0
        %926 = vmatprep.subr.mxu0 0.0
        %927 = vmatpush1.msra.mxu0 0.0
        %928 = vmatprep.mubr.f32.mxu0 0.0
        %929 = vmatmul.mubr.f32.gmra.mrb[0].mxu0 %v862
        %v930 = vpop.f32.mrb[0].mxu0
        %v931 = vadd.f32 0.0, %v930
        %v932 = vpop.f32.mrb[0].mxu0
        %933 = vdwg.mxu0
        %v934 = vadd.f32 %v861, %v931
        %v935 = vxor.u32 %v934, 2147483648
        %v936 = vmul.f32 %v935, 1.442695
        %v937 = vpow.pop %v936
        %v938 = vadd.f32 %v937, 1.0
        %v939 = vrcp.pop %v938
        %v940 = vmul.f32 1.0, %v939
        %v941 = vtanh.pop %v934
        %v942 = vmul.f32 %v940, %v845
        %944 = vrot.lane.b32.xlu0 %v941, 64
        %v945 = vpop.permute.xlu0 %944
        %v947 = vmul.f32 %v940, %v945
        %949 = vrot.lane.b32.xlu0 %v947, 32
        %v950 = vpop.permute.xlu0 %949
        %v952 = vadd.f32 %v942, %v950
        %v953 = vtanh.pop %v952
        %955 = vrot.lane.b32.xlu0 %v953, 64
        %v956 = vpop.permute.xlu0 %955
        %v958 = vmul.f32 %v940, %v956
        %960 = vrot.lane.b32.xlu0 %v958, 32
        %v961 = vpop.permute.xlu0 %960
        %s963 = scalar_lea.vmem %s326, %s859
        %964 = vst.msk [vmem:[%s963] sm:$0x3] %vm535, %v961
        %s965 = scalar_select %p426, 2, 5
        %s966 = smul.u32 %s965, 2
        %s967 = scalar_lea.vmem [#allocation2], %s966
        %v968 = vld [vmem:[%s967] sm:$0x3]
        %v969 = vsel %vm431, %v961, 0
        %971 = vmatprep.subr.mxu0 0.0
        %972 = vmatpush1.msra.mxu0 %v422
        %973 = vmatprep.subr.mxu0 0.0
        %974 = vmatpush1.msra.mxu0 %v423
        %975 = vmatprep.subr.mxu0 0.0
        %976 = vmatpush1.msra.mxu0 %v424
        %977 = vmatprep.subr.mxu0 0.0
        %978 = vmatpush1.msra.mxu0 %v425
        %979 = vmatprep.subr.mxu0 0.0
        %980 = vmatpush1.msra.mxu0 0.0
        %981 = vmatprep.subr.mxu0 0.0
        %982 = vmatpush1.msra.mxu0 0.0
        %983 = vmatprep.subr.mxu0 0.0
        %984 = vmatpush1.msra.mxu0 0.0
        %985 = vmatprep.subr.mxu0 0.0
        %986 = vmatpush1.msra.mxu0 0.0
        %987 = vmatprep.subr.mxu0 0.0
        %988 = vmatpush1.msra.mxu0 0.0
        %989 = vmatprep.subr.mxu0 0.0
        %990 = vmatpush1.msra.mxu0 0.0
        %991 = vmatprep.subr.mxu0 0.0
        %992 = vmatpush1.msra.mxu0 0.0
        %993 = vmatprep.subr.mxu0 0.0
        %994 = vmatpush1.msra.mxu0 0.0
        %995 = vmatprep.subr.mxu0 0.0
        %996 = vmatpush1.msra.mxu0 0.0
        %997 = vmatprep.subr.mxu0 0.0
        %998 = vmatpush1.msra.mxu0 0.0
        %999 = vmatprep.subr.mxu0 0.0
        %1000 = vmatpush1.msra.mxu0 0.0
        %1001 = vmatprep.subr.mxu0 0.0
        %1002 = vmatpush1.msra.mxu0 0.0
        %1003 = vmatprep.subr.mxu0 0.0
        %1004 = vmatpush1.msra.mxu0 0.0
        %1005 = vmatprep.subr.mxu0 0.0
        %1006 = vmatpush1.msra.mxu0 0.0
        %1007 = vmatprep.subr.mxu0 0.0
        %1008 = vmatpush1.msra.mxu0 0.0
        %1009 = vmatprep.subr.mxu0 0.0
        %1010 = vmatpush1.msra.mxu0 0.0
        %1011 = vmatprep.subr.mxu0 0.0
        %1012 = vmatpush1.msra.mxu0 0.0
        %1013 = vmatprep.subr.mxu0 0.0
        %1014 = vmatpush1.msra.mxu0 0.0
        %1015 = vmatprep.subr.mxu0 0.0
        %1016 = vmatpush1.msra.mxu0 0.0
        %1017 = vmatprep.subr.mxu0 0.0
        %1018 = vmatpush1.msra.mxu0 0.0
        %1019 = vmatprep.subr.mxu0 0.0
        %1020 = vmatpush1.msra.mxu0 0.0
        %1021 = vmatprep.subr.mxu0 0.0
        %1022 = vmatpush1.msra.mxu0 0.0
        %1023 = vmatprep.subr.mxu0 0.0
        %1024 = vmatpush1.msra.mxu0 0.0
        %1025 = vmatprep.subr.mxu0 0.0
        %1026 = vmatpush1.msra.mxu0 0.0
        %1027 = vmatprep.subr.mxu0 0.0
        %1028 = vmatpush1.msra.mxu0 0.0
        %1029 = vmatprep.subr.mxu0 0.0
        %1030 = vmatpush1.msra.mxu0 0.0
        %1031 = vmatprep.subr.mxu0 0.0
        %1032 = vmatpush1.msra.mxu0 0.0
        %1033 = vmatprep.subr.mxu0 0.0
        %1034 = vmatpush1.msra.mxu0 0.0
        %1035 = vmatprep.mubr.f32.mxu0 0.0
        %1036 = vmatmul.mubr.f32.gmra.mrb[0].mxu0 %v969
        %v1037 = vpop.f32.mrb[0].mxu0
        %v1038 = vadd.f32 0.0, %v1037
        %v1039 = vpop.f32.mrb[0].mxu0
        %1040 = vdwg.mxu0
        %v1041 = vadd.f32 %v968, %v1038
        %v1042 = vxor.u32 %v1041, 2147483648
        %v1043 = vmul.f32 %v1042, 1.442695
        %v1044 = vpow.pop %v1043
        %v1045 = vadd.f32 %v1044, 1.0
        %v1046 = vrcp.pop %v1045
        %v1047 = vmul.f32 1.0, %v1046
        %v1048 = vtanh.pop %v1041
        %v1049 = vmul.f32 %v1047, %v952
        %1051 = vrot.lane.b32.xlu0 %v1048, 64
        %v1052 = vpop.permute.xlu0 %1051
        %v1054 = vmul.f32 %v1047, %v1052
        %1056 = vrot.lane.b32.xlu0 %v1054, 32
        %v1057 = vpop.permute.xlu0 %1056
        %v1059 = vadd.f32 %v1049, %v1057
        %v1060 = vtanh.pop %v1059
        %1062 = vrot.lane.b32.xlu0 %v1060, 64
        %v1063 = vpop.permute.xlu0 %1062
        %v1065 = vmul.f32 %v1047, %v1063
        %1067 = vrot.lane.b32.xlu0 %v1065, 32
        %v1068 = vpop.permute.xlu0 %1067
        %s1070 = scalar_lea.vmem %s326, %s966
        %1071 = vst.msk [vmem:[%s1070] sm:$0x3] %vm535, %v1068
        %s1072 = scalar_select %p426, 1, 6
        %s1073 = smul.u32 %s1072, 2
        %s1074 = scalar_lea.vmem [#allocation2], %s1073
        %v1075 = vld [vmem:[%s1074] sm:$0x3]
        %v1076 = vsel %vm431, %v1068, 0
        %1078 = vmatprep.subr.mxu0 0.0
        %1079 = vmatpush1.msra.mxu0 %v422
        %1080 = vmatprep.subr.mxu0 0.0
        %1081 = vmatpush1.msra.mxu0 %v423
        %1082 = vmatprep.subr.mxu0 0.0
        %1083 = vmatpush1.msra.mxu0 %v424
        %1084 = vmatprep.subr.mxu0 0.0
        %1085 = vmatpush1.msra.mxu0 %v425
        %1086 = vmatprep.subr.mxu0 0.0
        %1087 = vmatpush1.msra.mxu0 0.0
        %1088 = vmatprep.subr.mxu0 0.0
        %1089 = vmatpush1.msra.mxu0 0.0
        %1090 = vmatprep.subr.mxu0 0.0
        %1091 = vmatpush1.msra.mxu0 0.0
        %1092 = vmatprep.subr.mxu0 0.0
        %1093 = vmatpush1.msra.mxu0 0.0
        %1094 = vmatprep.subr.mxu0 0.0
        %1095 = vmatpush1.msra.mxu0 0.0
        %1096 = vmatprep.subr.mxu0 0.0
        %1097 = vmatpush1.msra.mxu0 0.0
        %1098 = vmatprep.subr.mxu0 0.0
        %1099 = vmatpush1.msra.mxu0 0.0
        %1100 = vmatprep.subr.mxu0 0.0
        %1101 = vmatpush1.msra.mxu0 0.0
        %1102 = vmatprep.subr.mxu0 0.0
        %1103 = vmatpush1.msra.mxu0 0.0
        %1104 = vmatprep.subr.mxu0 0.0
        %1105 = vmatpush1.msra.mxu0 0.0
        %1106 = vmatprep.subr.mxu0 0.0
        %1107 = vmatpush1.msra.mxu0 0.0
        %1108 = vmatprep.subr.mxu0 0.0
        %1109 = vmatpush1.msra.mxu0 0.0
        %1110 = vmatprep.subr.mxu0 0.0
        %1111 = vmatpush1.msra.mxu0 0.0
        %1112 = vmatprep.subr.mxu0 0.0
        %1113 = vmatpush1.msra.mxu0 0.0
        %1114 = vmatprep.subr.mxu0 0.0
        %1115 = vmatpush1.msra.mxu0 0.0
        %1116 = vmatprep.subr.mxu0 0.0
        %1117 = vmatpush1.msra.mxu0 0.0
        %1118 = vmatprep.subr.mxu0 0.0
        %1119 = vmatpush1.msra.mxu0 0.0
        %1120 = vmatprep.subr.mxu0 0.0
        %1121 = vmatpush1.msra.mxu0 0.0
        %1122 = vmatprep.subr.mxu0 0.0
        %1123 = vmatpush1.msra.mxu0 0.0
        %1124 = vmatprep.subr.mxu0 0.0
        %1125 = vmatpush1.msra.mxu0 0.0
        %1126 = vmatprep.subr.mxu0 0.0
        %1127 = vmatpush1.msra.mxu0 0.0
        %1128 = vmatprep.subr.mxu0 0.0
        %1129 = vmatpush1.msra.mxu0 0.0
        %1130 = vmatprep.subr.mxu0 0.0
        %1131 = vmatpush1.msra.mxu0 0.0
        %1132 = vmatprep.subr.mxu0 0.0
        %1133 = vmatpush1.msra.mxu0 0.0
        %1134 = vmatprep.subr.mxu0 0.0
        %1135 = vmatpush1.msra.mxu0 0.0
        %1136 = vmatprep.subr.mxu0 0.0
        %1137 = vmatpush1.msra.mxu0 0.0
        %1138 = vmatprep.subr.mxu0 0.0
        %1139 = vmatpush1.msra.mxu0 0.0
        %1140 = vmatprep.subr.mxu0 0.0
        %1141 = vmatpush1.msra.mxu0 0.0
        %1142 = vmatprep.mubr.f32.mxu0 0.0
        %1143 = vmatmul.mubr.f32.gmra.mrb[0].mxu0 %v1076
        %v1144 = vpop.f32.mrb[0].mxu0
        %v1145 = vadd.f32 0.0, %v1144
        %v1146 = vpop.f32.mrb[0].mxu0
        %1147 = vdwg.mxu0
        %v1148 = vadd.f32 %v1075, %v1145
        %v1149 = vxor.u32 %v1148, 2147483648
        %v1150 = vmul.f32 %v1149, 1.442695
        %v1151 = vpow.pop %v1150
        %v1152 = vadd.f32 %v1151, 1.0
        %v1153 = vrcp.pop %v1152
        %v1154 = vmul.f32 1.0, %v1153
        %v1155 = vtanh.pop %v1148
        %v1156 = vmul.f32 %v1154, %v1059
        %1158 = vrot.lane.b32.xlu0 %v1155, 64
        %v1159 = vpop.permute.xlu0 %1158
        %v1161 = vmul.f32 %v1154, %v1159
        %1163 = vrot.lane.b32.xlu0 %v1161, 32
        %v1164 = vpop.permute.xlu0 %1163
        %v1166 = vadd.f32 %v1156, %v1164
        %v1167 = vtanh.pop %v1166
        %1169 = vrot.lane.b32.xlu0 %v1167, 64
        %v1170 = vpop.permute.xlu0 %1169
        %v1172 = vmul.f32 %v1154, %v1170
        %1174 = vrot.lane.b32.xlu0 %v1172, 32
        %v1175 = vpop.permute.xlu0 %1174
        %s1177 = scalar_lea.vmem %s326, %s1073
        %1178 = vst.msk [vmem:[%s1177] sm:$0x3] %vm535, %v1175
        %s1179 = scalar_select %p426, 0, 7
        %s1180 = smul.u32 %s1179, 2
        %s1181 = scalar_lea.vmem [#allocation2], %s1180
        %v1182 = vld [vmem:[%s1181] sm:$0x3]
        %v1183 = vsel %vm431, %v1175, 0
        %1185 = vmatprep.subr.mxu0 0.0
        %1186 = vmatpush1.msra.mxu0 %v422
        %1187 = vmatprep.subr.mxu0 0.0
        %1188 = vmatpush1.msra.mxu0 %v423
        %1189 = vmatprep.subr.mxu0 0.0
        %1190 = vmatpush1.msra.mxu0 %v424
        %1191 = vmatprep.subr.mxu0 0.0
        %1192 = vmatpush1.msra.mxu0 %v425
        %1193 = vmatprep.subr.mxu0 0.0
        %1194 = vmatpush1.msra.mxu0 0.0
        %1195 = vmatprep.subr.mxu0 0.0
        %1196 = vmatpush1.msra.mxu0 0.0
        %1197 = vmatprep.subr.mxu0 0.0
        %1198 = vmatpush1.msra.mxu0 0.0
        %1199 = vmatprep.subr.mxu0 0.0
        %1200 = vmatpush1.msra.mxu0 0.0
        %1201 = vmatprep.subr.mxu0 0.0
        %1202 = vmatpush1.msra.mxu0 0.0
        %1203 = vmatprep.subr.mxu0 0.0
        %1204 = vmatpush1.msra.mxu0 0.0
        %1205 = vmatprep.subr.mxu0 0.0
        %1206 = vmatpush1.msra.mxu0 0.0
        %1207 = vmatprep.subr.mxu0 0.0
        %1208 = vmatpush1.msra.mxu0 0.0
        %1209 = vmatprep.subr.mxu0 0.0
        %1210 = vmatpush1.msra.mxu0 0.0
        %1211 = vmatprep.subr.mxu0 0.0
        %1212 = vmatpush1.msra.mxu0 0.0
        %1213 = vmatprep.subr.mxu0 0.0
        %1214 = vmatpush1.msra.mxu0 0.0
        %1215 = vmatprep.subr.mxu0 0.0
        %1216 = vmatpush1.msra.mxu0 0.0
        %1217 = vmatprep.subr.mxu0 0.0
        %1218 = vmatpush1.msra.mxu0 0.0
        %1219 = vmatprep.subr.mxu0 0.0
        %1220 = vmatpush1.msra.mxu0 0.0
        %1221 = vmatprep.subr.mxu0 0.0
        %1222 = vmatpush1.msra.mxu0 0.0
        %1223 = vmatprep.subr.mxu0 0.0
        %1224 = vmatpush1.msra.mxu0 0.0
        %1225 = vmatprep.subr.mxu0 0.0
        %1226 = vmatpush1.msra.mxu0 0.0
        %1227 = vmatprep.subr.mxu0 0.0
        %1228 = vmatpush1.msra.mxu0 0.0
        %1229 = vmatprep.subr.mxu0 0.0
        %1230 = vmatpush1.msra.mxu0 0.0
        %1231 = vmatprep.subr.mxu0 0.0
        %1232 = vmatpush1.msra.mxu0 0.0
        %1233 = vmatprep.subr.mxu0 0.0
        %1234 = vmatpush1.msra.mxu0 0.0
        %1235 = vmatprep.subr.mxu0 0.0
        %1236 = vmatpush1.msra.mxu0 0.0
        %1237 = vmatprep.subr.mxu0 0.0
        %1238 = vmatpush1.msra.mxu0 0.0
        %1239 = vmatprep.subr.mxu0 0.0
        %1240 = vmatpush1.msra.mxu0 0.0
        %1241 = vmatprep.subr.mxu0 0.0
        %1242 = vmatpush1.msra.mxu0 0.0
        %1243 = vmatprep.subr.mxu0 0.0
        %1244 = vmatpush1.msra.mxu0 0.0
        %1245 = vmatprep.subr.mxu0 0.0
        %1246 = vmatpush1.msra.mxu0 0.0
        %1247 = vmatprep.subr.mxu0 0.0
        %1248 = vmatpush1.msra.mxu0 0.0
        %1249 = vmatprep.mubr.f32.mxu0 0.0
        %1250 = vmatmul.mubr.f32.gmra.mrb[0].mxu0 %v1183
        %v1251 = vpop.f32.mrb[0].mxu0
        %v1252 = vadd.f32 0.0, %v1251
        %v1253 = vpop.f32.mrb[0].mxu0
        %1254 = vdwg.mxu0
        %v1255 = vadd.f32 %v1182, %v1252
        %v1256 = vxor.u32 %v1255, 2147483648
        %v1257 = vmul.f32 %v1256, 1.442695
        %v1258 = vpow.pop %v1257
        %v1259 = vadd.f32 %v1258, 1.0
        %v1260 = vrcp.pop %v1259
        %v1261 = vmul.f32 1.0, %v1260
        %v1262 = vtanh.pop %v1255
        %v1263 = vmul.f32 %v1261, %v1166
        %1265 = vrot.lane.b32.xlu0 %v1262, 64
        %v1266 = vpop.permute.xlu0 %1265
        %v1268 = vmul.f32 %v1261, %v1266
        %1270 = vrot.lane.b32.xlu0 %v1268, 32
        %v1271 = vpop.permute.xlu0 %1270
        %v1273 = vadd.f32 %v1263, %v1271
        %v1274 = vtanh.pop %v1273
        %1276 = vrot.lane.b32.xlu0 %v1274, 64
        %v1277 = vpop.permute.xlu0 %1276
        %v1279 = vmul.f32 %v1261, %v1277
        %1281 = vrot.lane.b32.xlu0 %v1279, 32
        %v1282 = vpop.permute.xlu0 %1281
        %s1284 = scalar_lea.vmem %s326, %s1180
        %1285 = vst.msk [vmem:[%s1284] sm:$0x3] %vm535, %v1282
        %1286 = vst.msk [vmem:[%s321] sm:$0x3] %vm535, %v1282
        %p1287 = scmp.lt.s32.totalorder %s26, 1
        %s1288 = scalar_select %p1287, %s26, 1
        %s1289 = smul.addr %s1288, 8
        %s1290 = smul.addr %s1289, 2
        %s1291 = scalar_lea.vmem %s4, %s1290
        %s1292 = sand.u32 %s159, 1
        %s1293 = scalar_lea.sflag [#allocation5], %s1292
        %s1294 = sand.u32 %s159, 1
        %s1295 = smul.addr %s1294, 2
        %s1296 = scalar_lea.vmem [#allocation9], %s1295
        // Predicated region
        $region49: #{arnn_forward.4} parent=35 // pred_check
          %p1297 = pneg %p143
        $region50: #{arnn_forward.4} parent=35 // pred_check_branch
          %1299 = sbr.rel (%p1297) target = $region52
        $region51: #{arnn_forward.4} parent=35 // pred_region
          _
        $region52: #{arnn_forward.4} parent=35 // pred_fallthru
          _
        // Predicated region
        $region53: #{arnn_forward.4} parent=35 // pred_check
          %p1300 = pneg %p169
        $region54: #{arnn_forward.4} parent=35 // pred_check_branch
          %1302 = sbr.rel (%p1300) target = $region56
        $region55: #{arnn_forward.4} parent=35 // pred_region
          %s1304 = ssub.s32 32, 32
          %1305 = vsyncadd %s1293, %s1304
          %s1306 = smul.addr %s26, 32
          %s1307 = scalar_lea.hbm %s5, %s1306
          %s1309 = sshll.u32 %s1296, 4
          %s1310 = int_to_ptr.vmem [resolvable:$true] %s1309
          %1312 = dma.vmem_to_hbm [thread:$0]  %s1310, 32, %s1307, %s1293
        $region56: #{arnn_forward.4} parent=35 // pred_fallthru
          _
      $region36: #{arnn_forward.4} parent=5 // pred_fallthru
        _
      %p1313 = scmp.le.s32.totalorder 2, %s21
      // Predicated region
      $region57: #{arnn_forward.4} parent=5 // pred_check
        %p1314 = pneg %p1313
      $region58: #{arnn_forward.4} parent=5 // pred_check_branch
        %1316 = sbr.rel (%p1314) target = $region60
      $region59: #{arnn_forward.4} parent=5 // pred_region
        %s1317 = ssub.s32 %s21, 2
        // Predicated region
        $region61: #{arnn_forward.4} parent=59 // pred_check
          %p1318 = pneg %p149
        $region62: #{arnn_forward.4} parent=59 // pred_check_branch
          %1320 = sbr.rel (%p1318) target = $region64
        $region63: #{arnn_forward.4} parent=59 // pred_region
          %p1321 = scmp.lt.s32.totalorder %s27, 1
          %s1322 = scalar_select %p1321, %s27, 1
          %s1323 = smul.addr %s1322, 8
          %s1324 = smul.addr %s1323, 2
          %s1325 = scalar_lea.vmem %s4, %s1324
        $region64: #{arnn_forward.4} parent=59 // pred_fallthru
          _
        // Predicated region
        $region65: #{arnn_forward.4} parent=59 // pred_check
          %p1326 = pneg %p175
        $region66: #{arnn_forward.4} parent=59 // pred_check_branch
          %1328 = sbr.rel (%p1326) target = $region68
        $region67: #{arnn_forward.4} parent=59 // pred_region
          %s1329 = sand.u32 %s160, 1
          %s1330 = scalar_lea.sflag [#allocation5], %s1329
          %s1331 = sand.u32 %s160, 1
          %s1332 = smul.addr %s1331, 2
          %s1333 = scalar_lea.vmem [#allocation9], %s1332
          %1334 = dma.done %s1330, 32
        $region68: #{arnn_forward.4} parent=59 // pred_fallthru
          _
      $region60: #{arnn_forward.4} parent=5 // pred_fallthru
        _
    $region6: #{arnn_forward.4} parent=1 // loop_footer
      %s25 = sadd.s32 1, %s21
    $region7: #{arnn_forward.4} parent=1 // loop_footer_branch
      %20 = sbr.rel target = $region3
    $region8: #{arnn_forward.4} parent=1 // loop_exit
      _
    %1335 = vsyncpa [#allocation4], 1
    %s1336 = scalar_lea.sflag [#allocation4], 1
    %1337 = vsyncpa %s1336, 1
    %1338 = vsyncpa [#allocation7], 1
    %s1339 = scalar_lea.sflag [#allocation7], 1
    %1340 = vsyncpa %s1339, 1
    %1341 = vsyncpa [#allocation5], 1
    %s1342 = scalar_lea.sflag [#allocation5], 1
    %1343 = vsyncpa %s1342, 1

// kernel: arnn_forward.5
$region0: #{arnn_forward.5}
  #allocation0 [shape = 'u32[]', space=smem, size = 0x4, offset = 0x4, fixed_abs, tag = 'smem constant byte address 0x4 - core index']
  #allocation1 [shape = 'u32[144,128]{1,0:T(1,128)}', space=vmem, size = 0x12000, scoped, tag = 'internal scratch']
  #allocation2 [shape = 'f32[16,128]{1,0:T(8,128)}', space=vmem, size = 0x2000, scoped, tag = 'scratch operand']
  %s0 = inlined_call_operand.vmem [shape: f32[2,16,32], index: 0, kind: input, shape index: {}]
  %s1 = inlined_call_operand.vmem [shape: f32[2,64,128], index: 1, kind: input, shape index: {}]
  %s2 = inlined_call_operand.vmem [shape: f32[2,32,128], index: 2, kind: input, shape index: {}]
  %s3 = inlined_call_operand.vmem [shape: f32[2,1,128], index: 3, kind: input, shape index: {}]
  %s4 = inlined_call_operand.hbm [shape: f32[2,8,2,32], index: 4, kind: output, shape index: {0}]
  %s5 = inlined_call_operand.vmem [shape: f32[2,2,32], index: 5, kind: output, shape index: {1}]
  %6 = xla_tuple %s4, %s5
  %s7 = sld [smem:[#allocation0]]
  $region57: #{arnn_forward.5} parent=0
    _
  %s9 = ssub.s32 1, %s7
  %s10 = scalar_select 0, %s9, %s7
  $region1: #{arnn_forward.5} parent=0
    #allocation3 [shape = 'u8[16384]{0}', space=vmem, size = 0x4000, scoped, tag = 'output window, operand 0']
    #allocation4 [shape = 's32[2]{0}', space=sflag, size = 0x8, scoped, tag = 'scoped memory for arnn_forward.5']
    %11 = vsyncpa [#allocation4], 0
    %s12 = scalar_lea.sflag [#allocation4], 1
    %13 = vsyncpa %s12, 0
    loop: start=0, step=1, limit=4
    $region2: #{arnn_forward.5} parent=1 // loop_pre_header
      _
    $region3: #{arnn_forward.5} parent=1 // loop_header
      %s15 = sphi 0, %s19
      %p16 = scmp.ge.s32.totalorder %s15, 4
      %s23 = sphi 0, %s23
      %s25 = sphi 0, %s23
      %s26 = sphi 0, %s25
      %s40 = sphi 0, %s26
      %s46 = sphi 0, %s48
      %s49 = sphi 0, %s46
      %s50 = sphi 0, %s49
      %s66 = sphi 0, %s50
      %s72 = sphi 0, %s74
      %s75 = sphi 0, %s72
      %s76 = sphi 0, %s75
      %s92 = sphi 0, %s76
      %s98 = sphi 0, %s100
      %s101 = sphi 0, %s98
      %s102 = sphi 0, %s101
      %s118 = sphi 0, %s102
      %s124 = sphi 0, %s126
      %s127 = sphi 0, %s124
      %s128 = sphi 0, %s127
      %s144 = sphi 0, %s128
      %s150 = sphi 0, %s152
      %s153 = sphi 0, %s150
      %s154 = sphi 0, %s153
      %s170 = sphi 0, %s154
    $region4: #{arnn_forward.5} parent=1 // loop_header_branch
      %18 = sbr.rel (%p16) target = $region8
    $region5: #{arnn_forward.5} parent=1 // loop_body
      %s20 = ssub.s32 %s15, 1
      %s21 = ssub.s32 %s15, 2
      %s22 = sadd.s32 %s15, 1
      %s24 = sadd.s32 %s23, 1
      %p27 = scmp.eq.s32.totalorder %s15, 1
      %p28 = scmp.ne.s32.totalorder %s23, %s25
      %p29 = scmp.eq.s32.totalorder %s15, 0
      %p30 = por %p28, %p29
      %p31 = scmp.ne.s32.totalorder %s23, %s25
      %p32 = scmp.eq.s32.totalorder %s20, 1
      %p33 = por %p31, %p32
      %p34 = scmp.ne.s32.totalorder %s25, %s26
      %p35 = scmp.eq.s32.totalorder %s20, 0
      %p36 = por %p34, %p35
      %p37 = scmp.ne.s32.totalorder %s25, %s26
      %p38 = scmp.eq.s32.totalorder %s21, 1
      %p39 = por %p37, %p38
      %p41 = scmp.ne.s32.totalorder %s26, %s40
      %p42 = scmp.eq.s32.totalorder %s21, 0
      %p43 = por %p41, %p42
      %s44 = ssub.s32 %s15, %s22
      %p45 = scmp.eq.s32.totalorder %s44, 0
      %s47 = sadd.s32 %s46, 1
      %s48 = scalar_select %p45, %s46, %s47
      %p51 = pneg %p45
      %p52 = scmp.eq.s32.totalorder %s15, 1
      %p53 = por %p51, %p52
      %p54 = scmp.ne.s32.totalorder %s46, %s49
      %p55 = scmp.eq.s32.totalorder %s15, 0
      %p56 = por %p54, %p55
      %p57 = scmp.ne.s32.totalorder %s46, %s49
      %p58 = scmp.eq.s32.totalorder %s20, 1
      %p59 = por %p57, %p58
      %p60 = scmp.ne.s32.totalorder %s49, %s50
      %p61 = scmp.eq.s32.totalorder %s20, 0
      %p62 = por %p60, %p61
      %p63 = scmp.ne.s32.totalorder %s49, %s50
      %p64 = scmp.eq.s32.totalorder %s21, 1
      %p65 = por %p63, %p64
      %p67 = scmp.ne.s32.totalorder %s50, %s66
      %p68 = scmp.eq.s32.totalorder %s21, 0
      %p69 = por %p67, %p68
      %s70 = ssub.s32 %s15, %s22
      %p71 = scmp.eq.s32.totalorder %s70, 0
      %s73 = sadd.s32 %s72, 1
      %s74 = scalar_select %p71, %s72, %s73
      %p77 = pneg %p71
      %p78 = scmp.eq.s32.totalorder %s15, 1
      %p79 = por %p77, %p78
      %p80 = scmp.ne.s32.totalorder %s72, %s75
      %p81 = scmp.eq.s32.totalorder %s15, 0
      %p82 = por %p80, %p81
      %p83 = scmp.ne.s32.totalorder %s72, %s75
      %p84 = scmp.eq.s32.totalorder %s20, 1
      %p85 = por %p83, %p84
      %p86 = scmp.ne.s32.totalorder %s75, %s76
      %p87 = scmp.eq.s32.totalorder %s20, 0
      %p88 = por %p86, %p87
      %p89 = scmp.ne.s32.totalorder %s75, %s76
      %p90 = scmp.eq.s32.totalorder %s21, 1
      %p91 = por %p89, %p90
      %p93 = scmp.ne.s32.totalorder %s76, %s92
      %p94 = scmp.eq.s32.totalorder %s21, 0
      %p95 = por %p93, %p94
      %s96 = ssub.s32 %s15, %s22
      %p97 = scmp.eq.s32.totalorder %s96, 0
      %s99 = sadd.s32 %s98, 1
      %s100 = scalar_select %p97, %s98, %s99
      %p103 = pneg %p97
      %p104 = scmp.eq.s32.totalorder %s15, 1
      %p105 = por %p103, %p104
      %p106 = scmp.ne.s32.totalorder %s98, %s101
      %p107 = scmp.eq.s32.totalorder %s15, 0
      %p108 = por %p106, %p107
      %p109 = scmp.ne.s32.totalorder %s98, %s101
      %p110 = scmp.eq.s32.totalorder %s20, 1
      %p111 = por %p109, %p110
      %p112 = scmp.ne.s32.totalorder %s101, %s102
      %p113 = scmp.eq.s32.totalorder %s20, 0
      %p114 = por %p112, %p113
      %p115 = scmp.ne.s32.totalorder %s101, %s102
      %p116 = scmp.eq.s32.totalorder %s21, 1
      %p117 = por %p115, %p116
      %p119 = scmp.ne.s32.totalorder %s102, %s118
      %p120 = scmp.eq.s32.totalorder %s21, 0
      %p121 = por %p119, %p120
      %s122 = ssub.s32 %s15, %s22
      %p123 = scmp.eq.s32.totalorder %s122, 0
      %s125 = sadd.s32 %s124, 1
      %s126 = scalar_select %p123, %s124, %s125
      %p129 = pneg %p123
      %p130 = scmp.eq.s32.totalorder %s15, 1
      %p131 = por %p129, %p130
      %p132 = scmp.ne.s32.totalorder %s124, %s127
      %p133 = scmp.eq.s32.totalorder %s15, 0
      %p134 = por %p132, %p133
      %p135 = scmp.ne.s32.totalorder %s124, %s127
      %p136 = scmp.eq.s32.totalorder %s20, 1
      %p137 = por %p135, %p136
      %p138 = scmp.ne.s32.totalorder %s127, %s128
      %p139 = scmp.eq.s32.totalorder %s20, 0
      %p140 = por %p138, %p139
      %p141 = scmp.ne.s32.totalorder %s127, %s128
      %p142 = scmp.eq.s32.totalorder %s21, 1
      %p143 = por %p141, %p142
      %p145 = scmp.ne.s32.totalorder %s128, %s144
      %p146 = scmp.eq.s32.totalorder %s21, 0
      %p147 = por %p145, %p146
      %s148 = ssub.s32 %s15, %s22
      %p149 = scmp.eq.s32.totalorder %s148, 0
      %s151 = sadd.s32 %s150, 1
      %s152 = scalar_select %p149, %s150, %s151
      %p155 = pneg %p149
      %p156 = scmp.eq.s32.totalorder %s15, 1
      %p157 = por %p155, %p156
      %p158 = scmp.ne.s32.totalorder %s150, %s153
      %p159 = scmp.eq.s32.totalorder %s15, 0
      %p160 = por %p158, %p159
      %p161 = scmp.ne.s32.totalorder %s150, %s153
      %p162 = scmp.eq.s32.totalorder %s20, 1
      %p163 = por %p161, %p162
      %p164 = scmp.ne.s32.totalorder %s153, %s154
      %p165 = scmp.eq.s32.totalorder %s20, 0
      %p166 = por %p164, %p165
      %p167 = scmp.ne.s32.totalorder %s153, %s154
      %p168 = scmp.eq.s32.totalorder %s21, 1
      %p169 = por %p167, %p168
      %p171 = scmp.ne.s32.totalorder %s154, %s170
      %p172 = scmp.eq.s32.totalorder %s21, 0
      %p173 = por %p171, %p172
      %p174 = scmp.le.s32.totalorder 1, %s15
      %p175 = scmp.lt.s32.totalorder %s15, 3
      %p176 = pnand %p174, %p175
      %p177 = pneg %p176
      // Predicated region
      $region9: #{arnn_forward.5} parent=5 // pred_check
        _
      $region10: #{arnn_forward.5} parent=5 // pred_check_branch
        %179 = sbr.rel (%p176) target = $region12
      $region11: #{arnn_forward.5} parent=5 // pred_region
        %s180 = ssub.s32 %s15, 1
        // Predicated region
        $region13: #{arnn_forward.5} parent=11 // pred_check
          %p181 = pneg %p36
        $region14: #{arnn_forward.5} parent=11 // pred_check_branch
          %183 = sbr.rel (%p181) target = $region16
        $region15: #{arnn_forward.5} parent=11 // pred_region
          _
        $region16: #{arnn_forward.5} parent=11 // pred_fallthru
          _
      $region12: #{arnn_forward.5} parent=5 // pred_fallthru
        _
      %p184 = scmp.lt.s32.totalorder %s15, 2
      // Predicated region
      $region17: #{arnn_forward.5} parent=5 // pred_check
        %p185 = pneg %p184
      $region18: #{arnn_forward.5} parent=5 // pred_check_branch
        %187 = sbr.rel (%p185) target = $region20
      $region19: #{arnn_forward.5} parent=5 // pred_region
        // Predicated region
        $region21: #{arnn_forward.5} parent=19 // pred_check
          %p188 = pneg %p56
        $region22: #{arnn_forward.5} parent=19 // pred_check_branch
          %190 = sbr.rel (%p188) target = $region24
        $region23: #{arnn_forward.5} parent=19 // pred_region
          %p191 = scmp.lt.s32.totalorder %s15, 1
          %s192 = scalar_select %p191, %s15, 1
          %s193 = smul.addr %s192, 8
          %s194 = smul.addr %s193, 8
          %s195 = scalar_lea.vmem %s1, %s194
        $region24: #{arnn_forward.5} parent=19 // pred_fallthru
          _
        // Predicated region
        $region25: #{arnn_forward.5} parent=19 // pred_check
          %p196 = pneg %p82
        $region26: #{arnn_forward.5} parent=19 // pred_check_branch
          %198 = sbr.rel (%p196) target = $region28
        $region27: #{arnn_forward.5} parent=19 // pred_region
          %p199 = scmp.lt.s32.totalorder %s15, 1
          %s200 = scalar_select %p199, %s15, 1
          %s201 = smul.addr %s200, 4
          %s202 = smul.addr %s201, 8
          %s203 = scalar_lea.vmem %s2, %s202
        $region28: #{arnn_forward.5} parent=19 // pred_fallthru
          _
        // Predicated region
        $region29: #{arnn_forward.5} parent=19 // pred_check
          %p204 = pneg %p108
        $region30: #{arnn_forward.5} parent=19 // pred_check_branch
          %206 = sbr.rel (%p204) target = $region32
        $region31: #{arnn_forward.5} parent=19 // pred_region
          %p207 = scmp.lt.s32.totalorder %s15, 1
          %s208 = scalar_select %p207, %s15, 1
          %s209 = scalar_lea.vmem %s3, %s208
        $region32: #{arnn_forward.5} parent=19 // pred_fallthru
          _
      $region20: #{arnn_forward.5} parent=5 // pred_fallthru
        _
      %p210 = scmp.le.s32.totalorder 1, %s15
      %p211 = scmp.lt.s32.totalorder %s15, 3
      %p212 = pnand %p210, %p211
      %p213 = pneg %p212
      // Predicated region
      $region33: #{arnn_forward.5} parent=5 // pred_check
        _
      $region34: #{arnn_forward.5} parent=5 // pred_check_branch
        %215 = sbr.rel (%p212) target = $region36
      $region35: #{arnn_forward.5} parent=5 // pred_region
        %s216 = ssub.s32 %s15, 1
        %p217 = pneg %p36
        %p218 = pneg %p33
        %p219 = scmp.lt.s32.totalorder %s20, 1
        %s220 = scalar_select %p219, %s20, 1
        %s221 = smul.addr %s220, 8
        %s222 = smul.addr %s221, 8
        %s223 = scalar_lea.vmem %s1, %s222
        %p224 = pneg %p62
        %p225 = pneg %p59
        %p226 = scmp.lt.s32.totalorder %s20, 1
        %s227 = scalar_select %p226, %s20, 1
        %s228 = smul.addr %s227, 4
        %s229 = smul.addr %s228, 8
        %s230 = scalar_lea.vmem %s2, %s229
        %p231 = pneg %p88
        %p232 = pneg %p85
        %p233 = scmp.lt.s32.totalorder %s20, 1
        %s234 = scalar_select %p233, %s20, 1
        %s235 = scalar_lea.vmem %s3, %s234
        %p236 = pneg %p114
        %p237 = pneg %p111
        %p238 = pneg %p140
        %p239 = pneg %p137
        %s240 = sand.u32 %s127, 1
        %s241 = scalar_lea.sflag [#allocation4], %s240
        %s242 = sand.u32 %s127, 1
        %s243 = smul.addr %s242, 16
        %s244 = scalar_lea.vmem [#allocation3], %s243
        %p245 = pneg %p166
        %p246 = pneg %p163
        %p247 = scmp.lt.s32.totalorder %s20, 1
        %s248 = scalar_select %p247, %s20, 1
        %s249 = smul.addr %s248, 2
        %s250 = scalar_lea.vmem %s5, %s249
        %p251 = scmp.lt.s32.totalorder %s20, 1
        %s252 = scalar_select %p251, %s20, 1
        %s253 = smul.addr %s252, 8
        %s254 = smul.addr %s253, 8
        %s255 = scalar_lea.vmem %s1, %s254
        %p256 = scmp.lt.s32.totalorder %s20, 1
        %s257 = scalar_select %p256, %s20, 1
        %s258 = smul.addr %s257, 4
        %s259 = smul.addr %s258, 8
        %s260 = scalar_lea.vmem %s2, %s259
        %p261 = scmp.lt.s32.totalorder %s20, 1
        %s262 = scalar_select %p261, %s20, 1
        %s263 = scalar_lea.vmem %s3, %s262
        %p264 = scmp.lt.s32.totalorder %s20, 1
        %s265 = scalar_select %p264, %s20, 1
        %s266 = smul.addr %s265, 2
        %s267 = scalar_lea.vmem %s5, %s266
        %v268 = vld [vmem:[%s0] sm:$0xff]
        %v269 = vld [vmem:[%s0 + $0x8] sm:$0xff]
        %v270 = vld [vmem:[%s255] sm:$0xff]
        %v271 = vld [vmem:[%s255 + $0x8] sm:$0xff]
        %v272 = vld [vmem:[%s255 + $0x10] sm:$0xff]
        %v273 = vld [vmem:[%s255 + $0x18] sm:$0xff]
        %s274 = scalar_lea.vmem %s0, 16
        %v275 = vld [vmem:[%s274] sm:$0xff]
        %v276 = vld [vmem:[%s274 + $0x8] sm:$0xff]
        %v277 = vld [vmem:[%s255 + $0x20] sm:$0xff]
        %v278 = vld [vmem:[%s255 + $0x28] sm:$0xff]
        %v279 = vld [vmem:[%s255 + $0x30] sm:$0xff]
        %v280 = vld [vmem:[%s255 + $0x38] sm:$0xff]
        %vm281 = vcmask 261120
        %v283 = vsel %vm281, %v275, 0
        %v286 = vsel %vm281, %v276, 0
        %288 = vmatprep.subr.mxu0 0.0
        %289 = vmatpush1.msra.mxu0 %v277
        %290 = vmatprep.subr.mxu0 0.0
        %291 = vmatpush1.msra.mxu0 %v278
        %292 = vmatprep.subr.mxu0 0.0
        %293 = vmatpush1.msra.mxu0 %v279
        %294 = vmatprep.subr.mxu0 0.0
        %295 = vmatpush1.msra.mxu0 %v280
        %296 = vmatprep.subr.mxu0 0.0
        %297 = vmatpush1.msra.mxu0 0.0
        %298 = vmatprep.subr.mxu0 0.0
        %299 = vmatpush1.msra.mxu0 0.0
        %300 = vmatprep.subr.mxu0 0.0
        %301 = vmatpush1.msra.mxu0 0.0
        %302 = vmatprep.subr.mxu0 0.0
        %303 = vmatpush1.msra.mxu0 0.0
        %304 = vmatprep.subr.mxu0 0.0
        %305 = vmatpush1.msra.mxu0 0.0
        %306 = vmatprep.subr.mxu0 0.0
        %307 = vmatpush1.msra.mxu0 0.0
        %308 = vmatprep.subr.mxu0 0.0
        %309 = vmatpush1.msra.mxu0 0.0
        %310 = vmatprep.subr.mxu0 0.0
        %311 = vmatpush1.msra.mxu0 0.0
        %312 = vmatprep.subr.mxu0 0.0
        %313 = vmatpush1.msra.mxu0 0.0
        %314 = vmatprep.subr.mxu0 0.0
        %315 = vmatpush1.msra.mxu0 0.0
        %316 = vmatprep.subr.mxu0 0.0
        %317 = vmatpush1.msra.mxu0 0.0
        %318 = vmatprep.subr.mxu0 0.0
        %319 = vmatpush1.msra.mxu0 0.0
        %320 = vmatprep.subr.mxu0 0.0
        %321 = vmatpush1.msra.mxu0 0.0
        %322 = vmatprep.subr.mxu0 0.0
        %323 = vmatpush1.msra.mxu0 0.0
        %324 = vmatprep.subr.mxu0 0.0
        %325 = vmatpush1.msra.mxu0 0.0
        %326 = vmatprep.subr.mxu0 0.0
        %327 = vmatpush1.msra.mxu0 0.0
        %328 = vmatprep.subr.mxu0 0.0
        %329 = vmatpush1.msra.mxu0 0.0
        %330 = vmatprep.subr.mxu0 0.0
        %331 = vmatpush1.msra.mxu0 0.0
        %332 = vmatprep.subr.mxu0 0.0
        %333 = vmatpush1.msra.mxu0 0.0
        %334 = vmatprep.subr.mxu0 0.0
        %335 = vmatpush1.msra.mxu0 0.0
        %336 = vmatprep.subr.mxu0 0.0
        %337 = vmatpush1.msra.mxu0 0.0
        %338 = vmatprep.subr.mxu0 0.0
        %339 = vmatpush1.msra.mxu0 0.0
        %340 = vmatprep.subr.mxu0 0.0
        %341 = vmatpush1.msra.mxu0 0.0
        %342 = vmatprep.subr.mxu0 0.0
        %343 = vmatpush1.msra.mxu0 0.0
        %344 = vmatprep.subr.mxu0 0.0
        %345 = vmatpush1.msra.mxu0 0.0
        %346 = vmatprep.subr.mxu0 0.0
        %347 = vmatpush1.msra.mxu0 0.0
        %348 = vmatprep.subr.mxu0 0.0
        %349 = vmatpush1.msra.mxu0 0.0
        %350 = vmatprep.subr.mxu0 0.0
        %351 = vmatpush1.msra.mxu0 0.0
        %352 = vmatprep.mubr.f32.mxu0 0.0
        %353 = vmatmul.mubr.f32.gmra.mrb[0].mxu0 %v283
        %v354 = vpop.f32.mrb[0].mxu0
        %v355 = vadd.f32 0.0, %v354
        %v356 = vpop.f32.mrb[0].mxu0
        %357 = vmatprep.mubr.f32.mxu0 0.0
        %358 = vmatmul.mubr.f32.gmra.mrb[0].mxu0 %v286
        %v359 = vpop.f32.mrb[0].mxu0
        %v360 = vadd.f32 0.0, %v359
        %v361 = vpop.f32.mrb[0].mxu0
        %362 = vdwg.mxu0
        %v364 = vsel %vm281, %v268, 0
        %v367 = vsel %vm281, %v269, 0
        %369 = vmatprep.subr.mxu0 0.0
        %370 = vmatpush1.msra.mxu0 %v270
        %371 = vmatprep.subr.mxu0 0.0
        %372 = vmatpush1.msra.mxu0 %v271
        %373 = vmatprep.subr.mxu0 0.0
        %374 = vmatpush1.msra.mxu0 %v272
        %375 = vmatprep.subr.mxu0 0.0
        %376 = vmatpush1.msra.mxu0 %v273
        %377 = vmatprep.subr.mxu0 0.0
        %378 = vmatpush1.msra.mxu0 0.0
        %379 = vmatprep.subr.mxu0 0.0
        %380 = vmatpush1.msra.mxu0 0.0
        %381 = vmatprep.subr.mxu0 0.0
        %382 = vmatpush1.msra.mxu0 0.0
        %383 = vmatprep.subr.mxu0 0.0
        %384 = vmatpush1.msra.mxu0 0.0
        %385 = vmatprep.subr.mxu0 0.0
        %386 = vmatpush1.msra.mxu0 0.0
        %387 = vmatprep.subr.mxu0 0.0
        %388 = vmatpush1.msra.mxu0 0.0
        %389 = vmatprep.subr.mxu0 0.0
        %390 = vmatpush1.msra.mxu0 0.0
        %391 = vmatprep.subr.mxu0 0.0
        %392 = vmatpush1.msra.mxu0 0.0
        %393 = vmatprep.subr.mxu0 0.0
        %394 = vmatpush1.msra.mxu0 0.0
        %395 = vmatprep.subr.mxu0 0.0
        %396 = vmatpush1.msra.mxu0 0.0
        %397 = vmatprep.subr.mxu0 0.0
        %398 = vmatpush1.msra.mxu0 0.0
        %399 = vmatprep.subr.mxu0 0.0
        %400 = vmatpush1.msra.mxu0 0.0
        %401 = vmatprep.subr.mxu0 0.0
        %402 = vmatpush1.msra.mxu0 0.0
        %403 = vmatprep.subr.mxu0 0.0
        %404 = vmatpush1.msra.mxu0 0.0
        %405 = vmatprep.subr.mxu0 0.0
        %406 = vmatpush1.msra.mxu0 0.0
        %407 = vmatprep.subr.mxu0 0.0
        %408 = vmatpush1.msra.mxu0 0.0
        %409 = vmatprep.subr.mxu0 0.0
        %410 = vmatpush1.msra.mxu0 0.0
        %411 = vmatprep.subr.mxu0 0.0
        %412 = vmatpush1.msra.mxu0 0.0
        %413 = vmatprep.subr.mxu0 0.0
        %414 = vmatpush1.msra.mxu0 0.0
        %415 = vmatprep.subr.mxu0 0.0
        %416 = vmatpush1.msra.mxu0 0.0
        %417 = vmatprep.subr.mxu0 0.0
        %418 = vmatpush1.msra.mxu0 0.0
        %419 = vmatprep.subr.mxu0 0.0
        %420 = vmatpush1.msra.mxu0 0.0
        %421 = vmatprep.subr.mxu0 0.0
        %422 = vmatpush1.msra.mxu0 0.0
        %423 = vmatprep.subr.mxu0 0.0
        %424 = vmatpush1.msra.mxu0 0.0
        %425 = vmatprep.subr.mxu0 0.0
        %426 = vmatpush1.msra.mxu0 0.0
        %427 = vmatprep.subr.mxu0 0.0
        %428 = vmatpush1.msra.mxu0 0.0
        %429 = vmatprep.subr.mxu0 0.0
        %430 = vmatpush1.msra.mxu0 0.0
        %431 = vmatprep.subr.mxu0 0.0
        %432 = vmatpush1.msra.mxu0 0.0
        %433 = vmatprep.mubr.f32.mxu0 0.0
        %434 = vmatmul.mubr.f32.gmra.mrb[0].mxu0 %v364
        %v435 = vpop.f32.mrb[0].mxu0
        %v436 = vadd.f32 %v355, %v435
        %v437 = vpop.f32.mrb[0].mxu0
        %438 = vmatprep.mubr.f32.mxu0 0.0
        %439 = vmatmul.mubr.f32.gmra.mrb[0].mxu0 %v367
        %v440 = vpop.f32.mrb[0].mxu0
        %v441 = vadd.f32 %v360, %v440
        %v442 = vpop.f32.mrb[0].mxu0
        %443 = vdwg.mxu0
        %v444 = vld [vmem:[%s263] sm:$0x1]
        %v446 = vlaneseq
        %v447 = vshrl.u32 %v446, 7
        %v448 = vsub.s32 0, %v447
        %v449 = vrot.slane %v444, %v448
        %v451 = vadd.f32 %v436, %v449
        %v452 = vadd.f32 %v441, %v449
        %453 = vst [vmem:[#allocation2] sm:$0xff] %v451
        %454 = vst [vmem:[#allocation2 + $0x8] sm:$0xff] %v452
        %v455 = vld [vmem:[%s260] sm:$0xff]
        %v456 = vld [vmem:[%s260 + $0x8] sm:$0xff]
        %v457 = vld [vmem:[%s260 + $0x10] sm:$0xff]
        %v458 = vld [vmem:[%s260 + $0x18] sm:$0xff]
        %p459 = scmp.eq.s32.totalorder %s20, 1
        %s460 = scalar_select %p459, 7, 0
        %s461 = smul.u32 %s460, 2
        %s462 = scalar_lea.vmem [#allocation2], %s461
        %v463 = vld [vmem:[%s462] sm:$0x3]
        %v465 = vsel %vm281, 0.0, 0
        %467 = vmatprep.subr.mxu0 0.0
        %468 = vmatpush1.msra.mxu0 %v455
        %469 = vmatprep.subr.mxu0 0.0
        %470 = vmatpush1.msra.mxu0 %v456
        %471 = vmatprep.subr.mxu0 0.0
        %472 = vmatpush1.msra.mxu0 %v457
        %473 = vmatprep.subr.mxu0 0.0
        %474 = vmatpush1.msra.mxu0 %v458
        %475 = vmatprep.subr.mxu0 0.0
        %476 = vmatpush1.msra.mxu0 0.0
        %477 = vmatprep.subr.mxu0 0.0
        %478 = vmatpush1.msra.mxu0 0.0
        %479 = vmatprep.subr.mxu0 0.0
        %480 = vmatpush1.msra.mxu0 0.0
        %481 = vmatprep.subr.mxu0 0.0
        %482 = vmatpush1.msra.mxu0 0.0
        %483 = vmatprep.subr.mxu0 0.0
        %484 = vmatpush1.msra.mxu0 0.0
        %485 = vmatprep.subr.mxu0 0.0
        %486 = vmatpush1.msra.mxu0 0.0
        %487 = vmatprep.subr.mxu0 0.0
        %488 = vmatpush1.msra.mxu0 0.0
        %489 = vmatprep.subr.mxu0 0.0
        %490 = vmatpush1.msra.mxu0 0.0
        %491 = vmatprep.subr.mxu0 0.0
        %492 = vmatpush1.msra.mxu0 0.0
        %493 = vmatprep.subr.mxu0 0.0
        %494 = vmatpush1.msra.mxu0 0.0
        %495 = vmatprep.subr.mxu0 0.0
        %496 = vmatpush1.msra.mxu0 0.0
        %497 = vmatprep.subr.mxu0 0.0
        %498 = vmatpush1.msra.mxu0 0.0
        %499 = vmatprep.subr.mxu0 0.0
        %500 = vmatpush1.msra.mxu0 0.0
        %501 = vmatprep.subr.mxu0 0.0
        %502 = vmatpush1.msra.mxu0 0.0
        %503 = vmatprep.subr.mxu0 0.0
        %504 = vmatpush1.msra.mxu0 0.0
        %505 = vmatprep.subr.mxu0 0.0
        %506 = vmatpush1.msra.mxu0 0.0
        %507 = vmatprep.subr.mxu0 0.0
        %508 = vmatpush1.msra.mxu0 0.0
        %509 = vmatprep.subr.mxu0 0.0
        %510 = vmatpush1.msra.mxu0 0.0
        %511 = vmatprep.subr.mxu0 0.0
        %512 = vmatpush1.msra.mxu0 0.0
        %513 = vmatprep.subr.mxu0 0.0
        %514 = vmatpush1.msra.mxu0 0.0
        %515 = vmatprep.subr.mxu0 0.0
        %516 = vmatpush1.msra.mxu0 0.0
        %517 = vmatprep.subr.mxu0 0.0
        %518 = vmatpush1.msra.mxu0 0.0
        %519 = vmatprep.subr.mxu0 0.0
        %520 = vmatpush1.msra.mxu0 0.0
        %521 = vmatprep.subr.mxu0 0.0
        %522 = vmatpush1.msra.mxu0 0.0
        %523 = vmatprep.subr.mxu0 0.0
        %524 = vmatpush1.msra.mxu0 0.0
        %525 = vmatprep.subr.mxu0 0.0
        %526 = vmatpush1.msra.mxu0 0.0
        %527 = vmatprep.subr.mxu0 0.0
        %528 = vmatpush1.msra.mxu0 0.0
        %529 = vmatprep.subr.mxu0 0.0
        %530 = vmatpush1.msra.mxu0 0.0
        %531 = vmatprep.mubr.f32.mxu0 0.0
        %532 = vmatmul.mubr.f32.gmra.mrb[0].mxu0 %v465
        %v533 = vpop.f32.mrb[0].mxu0
        %v534 = vadd.f32 0.0, %v533
        %v535 = vpop.f32.mrb[0].mxu0
        %536 = vdwg.mxu0
        %v537 = vadd.f32 %v463, %v534
        %v538 = vxor.u32 %v537, 2147483648
        %v539 = vmul.f32 %v538, 1.442695
        %v540 = vpow.pop %v539
        %v541 = vadd.f32 %v540, 1.0
        %v542 = vrcp.pop %v541
        %v543 = vmul.f32 1.0, %v542
        %v544 = vtanh.pop %v537
        %v545 = vmul.f32 %v543, 0.0
        %547 = vrot.lane.b32.xlu0 %v544, 64
        %v548 = vpop.permute.xlu0 %547
        %v550 = vmul.f32 %v543, %v548
        %552 = vrot.lane.b32.xlu0 %v550, 32
        %v553 = vpop.permute.xlu0 %552
        %v555 = vadd.f32 %v545, %v553
        %v556 = vtanh.pop %v555
        %558 = vrot.lane.b32.xlu0 %v556, 64
        %v559 = vpop.permute.xlu0 %558
        %v561 = vmul.f32 %v543, %v559
        %563 = vrot.lane.b32.xlu0 %v561, 32
        %v564 = vpop.permute.xlu0 %563
        %s566 = scalar_lea.vmem %s244, %s461 [#allocation3]
        %vm567 = vcmask 254976
        %568 = vst.msk [vmem:[%s566] sm:$0x3] %vm567, %v564
        %s569 = scalar_select %p459, 6, 1
        %s570 = smul.u32 %s569, 2
        %s571 = scalar_lea.vmem [#allocation2], %s570
        %v572 = vld [vmem:[%s571] sm:$0x3]
        %v573 = vsel %vm281, %v564, 0
        %575 = vmatprep.subr.mxu0 0.0
        %576 = vmatpush1.msra.mxu0 %v455
        %577 = vmatprep.subr.mxu0 0.0
        %578 = vmatpush1.msra.mxu0 %v456
        %579 = vmatprep.subr.mxu0 0.0
        %580 = vmatpush1.msra.mxu0 %v457
        %581 = vmatprep.subr.mxu0 0.0
        %582 = vmatpush1.msra.mxu0 %v458
        %583 = vmatprep.subr.mxu0 0.0
        %584 = vmatpush1.msra.mxu0 0.0
        %585 = vmatprep.subr.mxu0 0.0
        %586 = vmatpush1.msra.mxu0 0.0
        %587 = vmatprep.subr.mxu0 0.0
        %588 = vmatpush1.msra.mxu0 0.0
        %589 = vmatprep.subr.mxu0 0.0
        %590 = vmatpush1.msra.mxu0 0.0
        %591 = vmatprep.subr.mxu0 0.0
        %592 = vmatpush1.msra.mxu0 0.0
        %593 = vmatprep.subr.mxu0 0.0
        %594 = vmatpush1.msra.mxu0 0.0
        %595 = vmatprep.subr.mxu0 0.0
        %596 = vmatpush1.msra.mxu0 0.0
        %597 = vmatprep.subr.mxu0 0.0
        %598 = vmatpush1.msra.mxu0 0.0
        %599 = vmatprep.subr.mxu0 0.0
        %600 = vmatpush1.msra.mxu0 0.0
        %601 = vmatprep.subr.mxu0 0.0
        %602 = vmatpush1.msra.mxu0 0.0
        %603 = vmatprep.subr.mxu0 0.0
        %604 = vmatpush1.msra.mxu0 0.0
        %605 = vmatprep.subr.mxu0 0.0
        %606 = vmatpush1.msra.mxu0 0.0
        %607 = vmatprep.subr.mxu0 0.0
        %608 = vmatpush1.msra.mxu0 0.0
        %609 = vmatprep.subr.mxu0 0.0
        %610 = vmatpush1.msra.mxu0 0.0
        %611 = vmatprep.subr.mxu0 0.0
        %612 = vmatpush1.msra.mxu0 0.0
        %613 = vmatprep.subr.mxu0 0.0
        %614 = vmatpush1.msra.mxu0 0.0
        %615 = vmatprep.subr.mxu0 0.0
        %616 = vmatpush1.msra.mxu0 0.0
        %617 = vmatprep.subr.mxu0 0.0
        %618 = vmatpush1.msra.mxu0 0.0
        %619 = vmatprep.subr.mxu0 0.0
        %620 = vmatpush1.msra.mxu0 0.0
        %621 = vmatprep.subr.mxu0 0.0
        %622 = vmatpush1.msra.mxu0 0.0
        %623 = vmatprep.subr.mxu0 0.0
        %624 = vmatpush1.msra.mxu0 0.0
        %625 = vmatprep.subr.mxu0 0.0
        %626 = vmatpush1.msra.mxu0 0.0
        %627 = vmatprep.subr.mxu0 0.0
        %628 = vmatpush1.msra.mxu0 0.0
        %629 = vmatprep.subr.mxu0 0.0
        %630 = vmatpush1.msra.mxu0 0.0
        %631 = vmatprep.subr.mxu0 0.0
        %632 = vmatpush1.msra.mxu0 0.0
        %633 = vmatprep.subr.mxu0 0.0
        %634 = vmatpush1.msra.mxu0 0.0
        %635 = vmatprep.subr.mxu0 0.0
        %636 = vmatpush1.msra.mxu0 0.0
        %637 = vmatprep.subr.mxu0 0.0
        %638 = vmatpush1.msra.mxu0 0.0
        %639 = vmatprep.mubr.f32.mxu0 0.0
        %640 = vmatmul.mubr.f32.gmra.mrb[0].mxu0 %v573
        %v641 = vpop.f32.mrb[0].mxu0
        %v642 = vadd.f32 0.0, %v641
        %v643 = vpop.f32.mrb[0].mxu0
        %644 = vdwg.mxu0
        %v645 = vadd.f32 %v572, %v642
        %v646 = vxor.u32 %v645, 2147483648
        %v647 = vmul.f32 %v646, 1.442695
        %v648 = vpow.pop %v647
        %v649 = vadd.f32 %v648, 1.0
        %v650 = vrcp.pop %v649
        %v651 = vmul.f32 1.0, %v650
        %v652 = vtanh.pop %v645
        %v653 = vmul.f32 %v651, %v555
        %655 = vrot.lane.b32.xlu0 %v652, 64
        %v656 = vpop.permute.xlu0 %655
        %v658 = vmul.f32 %v651, %v656
        %660 = vrot.lane.b32.xlu0 %v658, 32
        %v661 = vpop.permute.xlu0 %660
        %v663 = vadd.f32 %v653, %v661
        %v664 = vtanh.pop %v663
        %666 = vrot.lane.b32.xlu0 %v664, 64
        %v667 = vpop.permute.xlu0 %666
        %v669 = vmul.f32 %v651, %v667
        %671 = vrot.lane.b32.xlu0 %v669, 32
        %v672 = vpop.permute.xlu0 %671
        %s674 = scalar_lea.vmem %s244, %s570 [#allocation3]
        %675 = vst.msk [vmem:[%s674] sm:$0x3] %vm567, %v672
        %s676 = scalar_select %p459, 5, 2
        %s677 = smul.u32 %s676, 2
        %s678 = scalar_lea.vmem [#allocation2], %s677
        %v679 = vld [vmem:[%s678] sm:$0x3]
        %v680 = vsel %vm281, %v672, 0
        %682 = vmatprep.subr.mxu0 0.0
        %683 = vmatpush1.msra.mxu0 %v455
        %684 = vmatprep.subr.mxu0 0.0
        %685 = vmatpush1.msra.mxu0 %v456
        %686 = vmatprep.subr.mxu0 0.0
        %687 = vmatpush1.msra.mxu0 %v457
        %688 = vmatprep.subr.mxu0 0.0
        %689 = vmatpush1.msra.mxu0 %v458
        %690 = vmatprep.subr.mxu0 0.0
        %691 = vmatpush1.msra.mxu0 0.0
        %692 = vmatprep.subr.mxu0 0.0
        %693 = vmatpush1.msra.mxu0 0.0
        %694 = vmatprep.subr.mxu0 0.0
        %695 = vmatpush1.msra.mxu0 0.0
        %696 = vmatprep.subr.mxu0 0.0
        %697 = vmatpush1.msra.mxu0 0.0
        %698 = vmatprep.subr.mxu0 0.0
        %699 = vmatpush1.msra.mxu0 0.0
        %700 = vmatprep.subr.mxu0 0.0
        %701 = vmatpush1.msra.mxu0 0.0
        %702 = vmatprep.subr.mxu0 0.0
        %703 = vmatpush1.msra.mxu0 0.0
        %704 = vmatprep.subr.mxu0 0.0
        %705 = vmatpush1.msra.mxu0 0.0
        %706 = vmatprep.subr.mxu0 0.0
        %707 = vmatpush1.msra.mxu0 0.0
        %708 = vmatprep.subr.mxu0 0.0
        %709 = vmatpush1.msra.mxu0 0.0
        %710 = vmatprep.subr.mxu0 0.0
        %711 = vmatpush1.msra.mxu0 0.0
        %712 = vmatprep.subr.mxu0 0.0
        %713 = vmatpush1.msra.mxu0 0.0
        %714 = vmatprep.subr.mxu0 0.0
        %715 = vmatpush1.msra.mxu0 0.0
        %716 = vmatprep.subr.mxu0 0.0
        %717 = vmatpush1.msra.mxu0 0.0
        %718 = vmatprep.subr.mxu0 0.0
        %719 = vmatpush1.msra.mxu0 0.0
        %720 = vmatprep.subr.mxu0 0.0
        %721 = vmatpush1.msra.mxu0 0.0
        %722 = vmatprep.subr.mxu0 0.0
        %723 = vmatpush1.msra.mxu0 0.0
        %724 = vmatprep.subr.mxu0 0.0
        %725 = vmatpush1.msra.mxu0 0.0
        %726 = vmatprep.subr.mxu0 0.0
        %727 = vmatpush1.msra.mxu0 0.0
        %728 = vmatprep.subr.mxu0 0.0
        %729 = vmatpush1.msra.mxu0 0.0
        %730 = vmatprep.subr.mxu0 0.0
        %731 = vmatpush1.msra.mxu0 0.0
        %732 = vmatprep.subr.mxu0 0.0
        %733 = vmatpush1.msra.mxu0 0.0
        %734 = vmatprep.subr.mxu0 0.0
        %735 = vmatpush1.msra.mxu0 0.0
        %736 = vmatprep.subr.mxu0 0.0
        %737 = vmatpush1.msra.mxu0 0.0
        %738 = vmatprep.subr.mxu0 0.0
        %739 = vmatpush1.msra.mxu0 0.0
        %740 = vmatprep.subr.mxu0 0.0
        %741 = vmatpush1.msra.mxu0 0.0
        %742 = vmatprep.subr.mxu0 0.0
        %743 = vmatpush1.msra.mxu0 0.0
        %744 = vmatprep.subr.mxu0 0.0
        %745 = vmatpush1.msra.mxu0 0.0
        %746 = vmatprep.mubr.f32.mxu0 0.0
        %747 = vmatmul.mubr.f32.gmra.mrb[0].mxu0 %v680
        %v748 = vpop.f32.mrb[0].mxu0
        %v749 = vadd.f32 0.0, %v748
        %v750 = vpop.f32.mrb[0].mxu0
        %751 = vdwg.mxu0
        %v752 = vadd.f32 %v679, %v749
        %v753 = vxor.u32 %v752, 2147483648
        %v754 = vmul.f32 %v753, 1.442695
        %v755 = vpow.pop %v754
        %v756 = vadd.f32 %v755, 1.0
        %v757 = vrcp.pop %v756
        %v758 = vmul.f32 1.0, %v757
        %v759 = vtanh.pop %v752
        %v760 = vmul.f32 %v758, %v663
        %762 = vrot.lane.b32.xlu0 %v759, 64
        %v763 = vpop.permute.xlu0 %762
        %v765 = vmul.f32 %v758, %v763
        %767 = vrot.lane.b32.xlu0 %v765, 32
        %v768 = vpop.permute.xlu0 %767
        %v770 = vadd.f32 %v760, %v768
        %v771 = vtanh.pop %v770
        %773 = vrot.lane.b32.xlu0 %v771, 64
        %v774 = vpop.permute.xlu0 %773
        %v776 = vmul.f32 %v758, %v774
        %778 = vrot.lane.b32.xlu0 %v776, 32
        %v779 = vpop.permute.xlu0 %778
        %s781 = scalar_lea.vmem %s244, %s677 [#allocation3]
        %782 = vst.msk [vmem:[%s781] sm:$0x3] %vm567, %v779
        %s783 = scalar_select %p459, 4, 3
        %s784 = smul.u32 %s783, 2
        %s785 = scalar_lea.vmem [#allocation2], %s784
        %v786 = vld [vmem:[%s785] sm:$0x3]
        %v787 = vsel %vm281, %v779, 0
        %789 = vmatprep.subr.mxu0 0.0
        %790 = vmatpush1.msra.mxu0 %v455
        %791 = vmatprep.subr.mxu0 0.0
        %792 = vmatpush1.msra.mxu0 %v456
        %793 = vmatprep.subr.mxu0 0.0
        %794 = vmatpush1.msra.mxu0 %v457
        %795 = vmatprep.subr.mxu0 0.0
        %796 = vmatpush1.msra.mxu0 %v458
        %797 = vmatprep.subr.mxu0 0.0
        %798 = vmatpush1.msra.mxu0 0.0
        %799 = vmatprep.subr.mxu0 0.0
        %800 = vmatpush1.msra.mxu0 0.0
        %801 = vmatprep.subr.mxu0 0.0
        %802 = vmatpush1.msra.mxu0 0.0
        %803 = vmatprep.subr.mxu0 0.0
        %804 = vmatpush1.msra.mxu0 0.0
        %805 = vmatprep.subr.mxu0 0.0
        %806 = vmatpush1.msra.mxu0 0.0
        %807 = vmatprep.subr.mxu0 0.0
        %808 = vmatpush1.msra.mxu0 0.0
        %809 = vmatprep.subr.mxu0 0.0
        %810 = vmatpush1.msra.mxu0 0.0
        %811 = vmatprep.subr.mxu0 0.0
        %812 = vmatpush1.msra.mxu0 0.0
        %813 = vmatprep.subr.mxu0 0.0
        %814 = vmatpush1.msra.mxu0 0.0
        %815 = vmatprep.subr.mxu0 0.0
        %816 = vmatpush1.msra.mxu0 0.0
        %817 = vmatprep.subr.mxu0 0.0
        %818 = vmatpush1.msra.mxu0 0.0
        %819 = vmatprep.subr.mxu0 0.0
        %820 = vmatpush1.msra.mxu0 0.0
        %821 = vmatprep.subr.mxu0 0.0
        %822 = vmatpush1.msra.mxu0 0.0
        %823 = vmatprep.subr.mxu0 0.0
        %824 = vmatpush1.msra.mxu0 0.0
        %825 = vmatprep.subr.mxu0 0.0
        %826 = vmatpush1.msra.mxu0 0.0
        %827 = vmatprep.subr.mxu0 0.0
        %828 = vmatpush1.msra.mxu0 0.0
        %829 = vmatprep.subr.mxu0 0.0
        %830 = vmatpush1.msra.mxu0 0.0
        %831 = vmatprep.subr.mxu0 0.0
        %832 = vmatpush1.msra.mxu0 0.0
        %833 = vmatprep.subr.mxu0 0.0
        %834 = vmatpush1.msra.mxu0 0.0
        %835 = vmatprep.subr.mxu0 0.0
        %836 = vmatpush1.msra.mxu0 0.0
        %837 = vmatprep.subr.mxu0 0.0
        %838 = vmatpush1.msra.mxu0 0.0
        %839 = vmatprep.subr.mxu0 0.0
        %840 = vmatpush1.msra.mxu0 0.0
        %841 = vmatprep.subr.mxu0 0.0
        %842 = vmatpush1.msra.mxu0 0.0
        %843 = vmatprep.subr.mxu0 0.0
        %844 = vmatpush1.msra.mxu0 0.0
        %845 = vmatprep.subr.mxu0 0.0
        %846 = vmatpush1.msra.mxu0 0.0
        %847 = vmatprep.subr.mxu0 0.0
        %848 = vmatpush1.msra.mxu0 0.0
        %849 = vmatprep.subr.mxu0 0.0
        %850 = vmatpush1.msra.mxu0 0.0
        %851 = vmatprep.subr.mxu0 0.0
        %852 = vmatpush1.msra.mxu0 0.0
        %853 = vmatprep.mubr.f32.mxu0 0.0
        %854 = vmatmul.mubr.f32.gmra.mrb[0].mxu0 %v787
        %v855 = vpop.f32.mrb[0].mxu0
        %v856 = vadd.f32 0.0, %v855
        %v857 = vpop.f32.mrb[0].mxu0
        %858 = vdwg.mxu0
        %v859 = vadd.f32 %v786, %v856
        %v860 = vxor.u32 %v859, 2147483648
        %v861 = vmul.f32 %v860, 1.442695
        %v862 = vpow.pop %v861
        %v863 = vadd.f32 %v862, 1.0
        %v864 = vrcp.pop %v863
        %v865 = vmul.f32 1.0, %v864
        %v866 = vtanh.pop %v859
        %v867 = vmul.f32 %v865, %v770
        %869 = vrot.lane.b32.xlu0 %v866, 64
        %v870 = vpop.permute.xlu0 %869
        %v872 = vmul.f32 %v865, %v870
        %874 = vrot.lane.b32.xlu0 %v872, 32
        %v875 = vpop.permute.xlu0 %874
        %v877 = vadd.f32 %v867, %v875
        %v878 = vtanh.pop %v877
        %880 = vrot.lane.b32.xlu0 %v878, 64
        %v881 = vpop.permute.xlu0 %880
        %v883 = vmul.f32 %v865, %v881
        %885 = vrot.lane.b32.xlu0 %v883, 32
        %v886 = vpop.permute.xlu0 %885
        %s888 = scalar_lea.vmem %s244, %s784 [#allocation3]
        %889 = vst.msk [vmem:[%s888] sm:$0x3] %vm567, %v886
        %s890 = scalar_select %p459, 3, 4
        %s891 = smul.u32 %s890, 2
        %s892 = scalar_lea.vmem [#allocation2], %s891
        %v893 = vld [vmem:[%s892] sm:$0x3]
        %v894 = vsel %vm281, %v886, 0
        %896 = vmatprep.subr.mxu0 0.0
        %897 = vmatpush1.msra.mxu0 %v455
        %898 = vmatprep.subr.mxu0 0.0
        %899 = vmatpush1.msra.mxu0 %v456
        %900 = vmatprep.subr.mxu0 0.0
        %901 = vmatpush1.msra.mxu0 %v457
        %902 = vmatprep.subr.mxu0 0.0
        %903 = vmatpush1.msra.mxu0 %v458
        %904 = vmatprep.subr.mxu0 0.0
        %905 = vmatpush1.msra.mxu0 0.0
        %906 = vmatprep.subr.mxu0 0.0
        %907 = vmatpush1.msra.mxu0 0.0
        %908 = vmatprep.subr.mxu0 0.0
        %909 = vmatpush1.msra.mxu0 0.0
        %910 = vmatprep.subr.mxu0 0.0
        %911 = vmatpush1.msra.mxu0 0.0
        %912 = vmatprep.subr.mxu0 0.0
        %913 = vmatpush1.msra.mxu0 0.0
        %914 = vmatprep.subr.mxu0 0.0
        %915 = vmatpush1.msra.mxu0 0.0
        %916 = vmatprep.subr.mxu0 0.0
        %917 = vmatpush1.msra.mxu0 0.0
        %918 = vmatprep.subr.mxu0 0.0
        %919 = vmatpush1.msra.mxu0 0.0
        %920 = vmatprep.subr.mxu0 0.0
        %921 = vmatpush1.msra.mxu0 0.0
        %922 = vmatprep.subr.mxu0 0.0
        %923 = vmatpush1.msra.mxu0 0.0
        %924 = vmatprep.subr.mxu0 0.0
        %925 = vmatpush1.msra.mxu0 0.0
        %926 = vmatprep.subr.mxu0 0.0
        %927 = vmatpush1.msra.mxu0 0.0
        %928 = vmatprep.subr.mxu0 0.0
        %929 = vmatpush1.msra.mxu0 0.0
        %930 = vmatprep.subr.mxu0 0.0
        %931 = vmatpush1.msra.mxu0 0.0
        %932 = vmatprep.subr.mxu0 0.0
        %933 = vmatpush1.msra.mxu0 0.0
        %934 = vmatprep.subr.mxu0 0.0
        %935 = vmatpush1.msra.mxu0 0.0
        %936 = vmatprep.subr.mxu0 0.0
        %937 = vmatpush1.msra.mxu0 0.0
        %938 = vmatprep.subr.mxu0 0.0
        %939 = vmatpush1.msra.mxu0 0.0
        %940 = vmatprep.subr.mxu0 0.0
        %941 = vmatpush1.msra.mxu0 0.0
        %942 = vmatprep.subr.mxu0 0.0
        %943 = vmatpush1.msra.mxu0 0.0
        %944 = vmatprep.subr.mxu0 0.0
        %945 = vmatpush1.msra.mxu0 0.0
        %946 = vmatprep.subr.mxu0 0.0
        %947 = vmatpush1.msra.mxu0 0.0
        %948 = vmatprep.subr.mxu0 0.0
        %949 = vmatpush1.msra.mxu0 0.0
        %950 = vmatprep.subr.mxu0 0.0
        %951 = vmatpush1.msra.mxu0 0.0
        %952 = vmatprep.subr.mxu0 0.0
        %953 = vmatpush1.msra.mxu0 0.0
        %954 = vmatprep.subr.mxu0 0.0
        %955 = vmatpush1.msra.mxu0 0.0
        %956 = vmatprep.subr.mxu0 0.0
        %957 = vmatpush1.msra.mxu0 0.0
        %958 = vmatprep.subr.mxu0 0.0
        %959 = vmatpush1.msra.mxu0 0.0
        %960 = vmatprep.mubr.f32.mxu0 0.0
        %961 = vmatmul.mubr.f32.gmra.mrb[0].mxu0 %v894
        %v962 = vpop.f32.mrb[0].mxu0
        %v963 = vadd.f32 0.0, %v962
        %v964 = vpop.f32.mrb[0].mxu0
        %965 = vdwg.mxu0
        %v966 = vadd.f32 %v893, %v963
        %v967 = vxor.u32 %v966, 2147483648
        %v968 = vmul.f32 %v967, 1.442695
        %v969 = vpow.pop %v968
        %v970 = vadd.f32 %v969, 1.0
        %v971 = vrcp.pop %v970
        %v972 = vmul.f32 1.0, %v971
        %v973 = vtanh.pop %v966
        %v974 = vmul.f32 %v972, %v877
        %976 = vrot.lane.b32.xlu0 %v973, 64
        %v977 = vpop.permute.xlu0 %976
        %v979 = vmul.f32 %v972, %v977
        %981 = vrot.lane.b32.xlu0 %v979, 32
        %v982 = vpop.permute.xlu0 %981
        %v984 = vadd.f32 %v974, %v982
        %v985 = vtanh.pop %v984
        %987 = vrot.lane.b32.xlu0 %v985, 64
        %v988 = vpop.permute.xlu0 %987
        %v990 = vmul.f32 %v972, %v988
        %992 = vrot.lane.b32.xlu0 %v990, 32
        %v993 = vpop.permute.xlu0 %992
        %s995 = scalar_lea.vmem %s244, %s891 [#allocation3]
        %996 = vst.msk [vmem:[%s995] sm:$0x3] %vm567, %v993
        %s997 = scalar_select %p459, 2, 5
        %s998 = smul.u32 %s997, 2
        %s999 = scalar_lea.vmem [#allocation2], %s998
        %v1000 = vld [vmem:[%s999] sm:$0x3]
        %v1001 = vsel %vm281, %v993, 0
        %1003 = vmatprep.subr.mxu0 0.0
        %1004 = vmatpush1.msra.mxu0 %v455
        %1005 = vmatprep.subr.mxu0 0.0
        %1006 = vmatpush1.msra.mxu0 %v456
        %1007 = vmatprep.subr.mxu0 0.0
        %1008 = vmatpush1.msra.mxu0 %v457
        %1009 = vmatprep.subr.mxu0 0.0
        %1010 = vmatpush1.msra.mxu0 %v458
        %1011 = vmatprep.subr.mxu0 0.0
        %1012 = vmatpush1.msra.mxu0 0.0
        %1013 = vmatprep.subr.mxu0 0.0
        %1014 = vmatpush1.msra.mxu0 0.0
        %1015 = vmatprep.subr.mxu0 0.0
        %1016 = vmatpush1.msra.mxu0 0.0
        %1017 = vmatprep.subr.mxu0 0.0
        %1018 = vmatpush1.msra.mxu0 0.0
        %1019 = vmatprep.subr.mxu0 0.0
        %1020 = vmatpush1.msra.mxu0 0.0
        %1021 = vmatprep.subr.mxu0 0.0
        %1022 = vmatpush1.msra.mxu0 0.0
        %1023 = vmatprep.subr.mxu0 0.0
        %1024 = vmatpush1.msra.mxu0 0.0
        %1025 = vmatprep.subr.mxu0 0.0
        %1026 = vmatpush1.msra.mxu0 0.0
        %1027 = vmatprep.subr.mxu0 0.0
        %1028 = vmatpush1.msra.mxu0 0.0
        %1029 = vmatprep.subr.mxu0 0.0
        %1030 = vmatpush1.msra.mxu0 0.0
        %1031 = vmatprep.subr.mxu0 0.0
        %1032 = vmatpush1.msra.mxu0 0.0
        %1033 = vmatprep.subr.mxu0 0.0
        %1034 = vmatpush1.msra.mxu0 0.0
        %1035 = vmatprep.subr.mxu0 0.0
        %1036 = vmatpush1.msra.mxu0 0.0
        %1037 = vmatprep.subr.mxu0 0.0
        %1038 = vmatpush1.msra.mxu0 0.0
        %1039 = vmatprep.subr.mxu0 0.0
        %1040 = vmatpush1.msra.mxu0 0.0
        %1041 = vmatprep.subr.mxu0 0.0
        %1042 = vmatpush1.msra.mxu0 0.0
        %1043 = vmatprep.subr.mxu0 0.0
        %1044 = vmatpush1.msra.mxu0 0.0
        %1045 = vmatprep.subr.mxu0 0.0
        %1046 = vmatpush1.msra.mxu0 0.0
        %1047 = vmatprep.subr.mxu0 0.0
        %1048 = vmatpush1.msra.mxu0 0.0
        %1049 = vmatprep.subr.mxu0 0.0
        %1050 = vmatpush1.msra.mxu0 0.0
        %1051 = vmatprep.subr.mxu0 0.0
        %1052 = vmatpush1.msra.mxu0 0.0
        %1053 = vmatprep.subr.mxu0 0.0
        %1054 = vmatpush1.msra.mxu0 0.0
        %1055 = vmatprep.subr.mxu0 0.0
        %1056 = vmatpush1.msra.mxu0 0.0
        %1057 = vmatprep.subr.mxu0 0.0
        %1058 = vmatpush1.msra.mxu0 0.0
        %1059 = vmatprep.subr.mxu0 0.0
        %1060 = vmatpush1.msra.mxu0 0.0
        %1061 = vmatprep.subr.mxu0 0.0
        %1062 = vmatpush1.msra.mxu0 0.0
        %1063 = vmatprep.subr.mxu0 0.0
        %1064 = vmatpush1.msra.mxu0 0.0
        %1065 = vmatprep.subr.mxu0 0.0
        %1066 = vmatpush1.msra.mxu0 0.0
        %1067 = vmatprep.mubr.f32.mxu0 0.0
        %1068 = vmatmul.mubr.f32.gmra.mrb[0].mxu0 %v1001
        %v1069 = vpop.f32.mrb[0].mxu0
        %v1070 = vadd.f32 0.0, %v1069
        %v1071 = vpop.f32.mrb[0].mxu0
        %1072 = vdwg.mxu0
        %v1073 = vadd.f32 %v1000, %v1070
        %v1074 = vxor.u32 %v1073, 2147483648
        %v1075 = vmul.f32 %v1074, 1.442695
        %v1076 = vpow.pop %v1075
        %v1077 = vadd.f32 %v1076, 1.0
        %v1078 = vrcp.pop %v1077
        %v1079 = vmul.f32 1.0, %v1078
        %v1080 = vtanh.pop %v1073
        %v1081 = vmul.f32 %v1079, %v984
        %1083 = vrot.lane.b32.xlu0 %v1080, 64
        %v1084 = vpop.permute.xlu0 %1083
        %v1086 = vmul.f32 %v1079, %v1084
        %1088 = vrot.lane.b32.xlu0 %v1086, 32
        %v1089 = vpop.permute.xlu0 %1088
        %v1091 = vadd.f32 %v1081, %v1089
        %v1092 = vtanh.pop %v1091
        %1094 = vrot.lane.b32.xlu0 %v1092, 64
        %v1095 = vpop.permute.xlu0 %1094
        %v1097 = vmul.f32 %v1079, %v1095
        %1099 = vrot.lane.b32.xlu0 %v1097, 32
        %v1100 = vpop.permute.xlu0 %1099
        %s1102 = scalar_lea.vmem %s244, %s998 [#allocation3]
        %1103 = vst.msk [vmem:[%s1102] sm:$0x3] %vm567, %v1100
        %s1104 = scalar_select %p459, 1, 6
        %s1105 = smul.u32 %s1104, 2
        %s1106 = scalar_lea.vmem [#allocation2], %s1105
        %v1107 = vld [vmem:[%s1106] sm:$0x3]
        %v1108 = vsel %vm281, %v1100, 0
        %1110 = vmatprep.subr.mxu0 0.0
        %1111 = vmatpush1.msra.mxu0 %v455
        %1112 = vmatprep.subr.mxu0 0.0
        %1113 = vmatpush1.msra.mxu0 %v456
        %1114 = vmatprep.subr.mxu0 0.0
        %1115 = vmatpush1.msra.mxu0 %v457
        %1116 = vmatprep.subr.mxu0 0.0
        %1117 = vmatpush1.msra.mxu0 %v458
        %1118 = vmatprep.subr.mxu0 0.0
        %1119 = vmatpush1.msra.mxu0 0.0
        %1120 = vmatprep.subr.mxu0 0.0
        %1121 = vmatpush1.msra.mxu0 0.0
        %1122 = vmatprep.subr.mxu0 0.0
        %1123 = vmatpush1.msra.mxu0 0.0
        %1124 = vmatprep.subr.mxu0 0.0
        %1125 = vmatpush1.msra.mxu0 0.0
        %1126 = vmatprep.subr.mxu0 0.0
        %1127 = vmatpush1.msra.mxu0 0.0
        %1128 = vmatprep.subr.mxu0 0.0
        %1129 = vmatpush1.msra.mxu0 0.0
        %1130 = vmatprep.subr.mxu0 0.0
        %1131 = vmatpush1.msra.mxu0 0.0
        %1132 = vmatprep.subr.mxu0 0.0
        %1133 = vmatpush1.msra.mxu0 0.0
        %1134 = vmatprep.subr.mxu0 0.0
        %1135 = vmatpush1.msra.mxu0 0.0
        %1136 = vmatprep.subr.mxu0 0.0
        %1137 = vmatpush1.msra.mxu0 0.0
        %1138 = vmatprep.subr.mxu0 0.0
        %1139 = vmatpush1.msra.mxu0 0.0
        %1140 = vmatprep.subr.mxu0 0.0
        %1141 = vmatpush1.msra.mxu0 0.0
        %1142 = vmatprep.subr.mxu0 0.0
        %1143 = vmatpush1.msra.mxu0 0.0
        %1144 = vmatprep.subr.mxu0 0.0
        %1145 = vmatpush1.msra.mxu0 0.0
        %1146 = vmatprep.subr.mxu0 0.0
        %1147 = vmatpush1.msra.mxu0 0.0
        %1148 = vmatprep.subr.mxu0 0.0
        %1149 = vmatpush1.msra.mxu0 0.0
        %1150 = vmatprep.subr.mxu0 0.0
        %1151 = vmatpush1.msra.mxu0 0.0
        %1152 = vmatprep.subr.mxu0 0.0
        %1153 = vmatpush1.msra.mxu0 0.0
        %1154 = vmatprep.subr.mxu0 0.0
        %1155 = vmatpush1.msra.mxu0 0.0
        %1156 = vmatprep.subr.mxu0 0.0
        %1157 = vmatpush1.msra.mxu0 0.0
        %1158 = vmatprep.subr.mxu0 0.0
        %1159 = vmatpush1.msra.mxu0 0.0
        %1160 = vmatprep.subr.mxu0 0.0
        %1161 = vmatpush1.msra.mxu0 0.0
        %1162 = vmatprep.subr.mxu0 0.0
        %1163 = vmatpush1.msra.mxu0 0.0
        %1164 = vmatprep.subr.mxu0 0.0
        %1165 = vmatpush1.msra.mxu0 0.0
        %1166 = vmatprep.subr.mxu0 0.0
        %1167 = vmatpush1.msra.mxu0 0.0
        %1168 = vmatprep.subr.mxu0 0.0
        %1169 = vmatpush1.msra.mxu0 0.0
        %1170 = vmatprep.subr.mxu0 0.0
        %1171 = vmatpush1.msra.mxu0 0.0
        %1172 = vmatprep.subr.mxu0 0.0
        %1173 = vmatpush1.msra.mxu0 0.0
        %1174 = vmatprep.mubr.f32.mxu0 0.0
        %1175 = vmatmul.mubr.f32.gmra.mrb[0].mxu0 %v1108
        %v1176 = vpop.f32.mrb[0].mxu0
        %v1177 = vadd.f32 0.0, %v1176
        %v1178 = vpop.f32.mrb[0].mxu0
        %1179 = vdwg.mxu0
        %v1180 = vadd.f32 %v1107, %v1177
        %v1181 = vxor.u32 %v1180, 2147483648
        %v1182 = vmul.f32 %v1181, 1.442695
        %v1183 = vpow.pop %v1182
        %v1184 = vadd.f32 %v1183, 1.0
        %v1185 = vrcp.pop %v1184
        %v1186 = vmul.f32 1.0, %v1185
        %v1187 = vtanh.pop %v1180
        %v1188 = vmul.f32 %v1186, %v1091
        %1190 = vrot.lane.b32.xlu0 %v1187, 64
        %v1191 = vpop.permute.xlu0 %1190
        %v1193 = vmul.f32 %v1186, %v1191
        %1195 = vrot.lane.b32.xlu0 %v1193, 32
        %v1196 = vpop.permute.xlu0 %1195
        %v1198 = vadd.f32 %v1188, %v1196
        %v1199 = vtanh.pop %v1198
        %1201 = vrot.lane.b32.xlu0 %v1199, 64
        %v1202 = vpop.permute.xlu0 %1201
        %v1204 = vmul.f32 %v1186, %v1202
        %1206 = vrot.lane.b32.xlu0 %v1204, 32
        %v1207 = vpop.permute.xlu0 %1206
        %s1209 = scalar_lea.vmem %s244, %s1105 [#allocation3]
        %1210 = vst.msk [vmem:[%s1209] sm:$0x3] %vm567, %v1207
        %s1211 = scalar_select %p459, 0, 7
        %s1212 = smul.u32 %s1211, 2
        %s1213 = scalar_lea.vmem [#allocation2], %s1212
        %v1214 = vld [vmem:[%s1213] sm:$0x3]
        %v1215 = vsel %vm281, %v1207, 0
        %1217 = vmatprep.subr.mxu0 0.0
        %1218 = vmatpush1.msra.mxu0 %v455
        %1219 = vmatprep.subr.mxu0 0.0
        %1220 = vmatpush1.msra.mxu0 %v456
        %1221 = vmatprep.subr.mxu0 0.0
        %1222 = vmatpush1.msra.mxu0 %v457
        %1223 = vmatprep.subr.mxu0 0.0
        %1224 = vmatpush1.msra.mxu0 %v458
        %1225 = vmatprep.subr.mxu0 0.0
        %1226 = vmatpush1.msra.mxu0 0.0
        %1227 = vmatprep.subr.mxu0 0.0
        %1228 = vmatpush1.msra.mxu0 0.0
        %1229 = vmatprep.subr.mxu0 0.0
        %1230 = vmatpush1.msra.mxu0 0.0
        %1231 = vmatprep.subr.mxu0 0.0
        %1232 = vmatpush1.msra.mxu0 0.0
        %1233 = vmatprep.subr.mxu0 0.0
        %1234 = vmatpush1.msra.mxu0 0.0
        %1235 = vmatprep.subr.mxu0 0.0
        %1236 = vmatpush1.msra.mxu0 0.0
        %1237 = vmatprep.subr.mxu0 0.0
        %1238 = vmatpush1.msra.mxu0 0.0
        %1239 = vmatprep.subr.mxu0 0.0
        %1240 = vmatpush1.msra.mxu0 0.0
        %1241 = vmatprep.subr.mxu0 0.0
        %1242 = vmatpush1.msra.mxu0 0.0
        %1243 = vmatprep.subr.mxu0 0.0
        %1244 = vmatpush1.msra.mxu0 0.0
        %1245 = vmatprep.subr.mxu0 0.0
        %1246 = vmatpush1.msra.mxu0 0.0
        %1247 = vmatprep.subr.mxu0 0.0
        %1248 = vmatpush1.msra.mxu0 0.0
        %1249 = vmatprep.subr.mxu0 0.0
        %1250 = vmatpush1.msra.mxu0 0.0
        %1251 = vmatprep.subr.mxu0 0.0
        %1252 = vmatpush1.msra.mxu0 0.0
        %1253 = vmatprep.subr.mxu0 0.0
        %1254 = vmatpush1.msra.mxu0 0.0
        %1255 = vmatprep.subr.mxu0 0.0
        %1256 = vmatpush1.msra.mxu0 0.0
        %1257 = vmatprep.subr.mxu0 0.0
        %1258 = vmatpush1.msra.mxu0 0.0
        %1259 = vmatprep.subr.mxu0 0.0
        %1260 = vmatpush1.msra.mxu0 0.0
        %1261 = vmatprep.subr.mxu0 0.0
        %1262 = vmatpush1.msra.mxu0 0.0
        %1263 = vmatprep.subr.mxu0 0.0
        %1264 = vmatpush1.msra.mxu0 0.0
        %1265 = vmatprep.subr.mxu0 0.0
        %1266 = vmatpush1.msra.mxu0 0.0
        %1267 = vmatprep.subr.mxu0 0.0
        %1268 = vmatpush1.msra.mxu0 0.0
        %1269 = vmatprep.subr.mxu0 0.0
        %1270 = vmatpush1.msra.mxu0 0.0
        %1271 = vmatprep.subr.mxu0 0.0
        %1272 = vmatpush1.msra.mxu0 0.0
        %1273 = vmatprep.subr.mxu0 0.0
        %1274 = vmatpush1.msra.mxu0 0.0
        %1275 = vmatprep.subr.mxu0 0.0
        %1276 = vmatpush1.msra.mxu0 0.0
        %1277 = vmatprep.subr.mxu0 0.0
        %1278 = vmatpush1.msra.mxu0 0.0
        %1279 = vmatprep.subr.mxu0 0.0
        %1280 = vmatpush1.msra.mxu0 0.0
        %1281 = vmatprep.mubr.f32.mxu0 0.0
        %1282 = vmatmul.mubr.f32.gmra.mrb[0].mxu0 %v1215
        %v1283 = vpop.f32.mrb[0].mxu0
        %v1284 = vadd.f32 0.0, %v1283
        %v1285 = vpop.f32.mrb[0].mxu0
        %1286 = vdwg.mxu0
        %v1287 = vadd.f32 %v1214, %v1284
        %v1288 = vxor.u32 %v1287, 2147483648
        %v1289 = vmul.f32 %v1288, 1.442695
        %v1290 = vpow.pop %v1289
        %v1291 = vadd.f32 %v1290, 1.0
        %v1292 = vrcp.pop %v1291
        %v1293 = vmul.f32 1.0, %v1292
        %v1294 = vtanh.pop %v1287
        %v1295 = vmul.f32 %v1293, %v1198
        %1297 = vrot.lane.b32.xlu0 %v1294, 64
        %v1298 = vpop.permute.xlu0 %1297
        %v1300 = vmul.f32 %v1293, %v1298
        %1302 = vrot.lane.b32.xlu0 %v1300, 32
        %v1303 = vpop.permute.xlu0 %1302
        %v1305 = vadd.f32 %v1295, %v1303
        %v1306 = vtanh.pop %v1305
        %1308 = vrot.lane.b32.xlu0 %v1306, 64
        %v1309 = vpop.permute.xlu0 %1308
        %v1311 = vmul.f32 %v1293, %v1309
        %1313 = vrot.lane.b32.xlu0 %v1311, 32
        %v1314 = vpop.permute.xlu0 %1313
        %s1316 = scalar_lea.vmem %s244, %s1212 [#allocation3]
        %1317 = vst.msk [vmem:[%s1316] sm:$0x3] %vm567, %v1314
        %1318 = vst.msk [vmem:[%s267] sm:$0x3] %vm567, %v1314
        %s1319 = sand.u32 %s127, 1
        %s1320 = scalar_lea.sflag [#allocation4], %s1319
        %s1321 = sand.u32 %s127, 1
        %s1322 = smul.addr %s1321, 16
        %s1323 = scalar_lea.vmem [#allocation3], %s1322
        %p1324 = scmp.lt.s32.totalorder %s20, 1
        %s1325 = scalar_select %p1324, %s20, 1
        %s1326 = smul.addr %s1325, 2
        %s1327 = scalar_lea.vmem %s5, %s1326
        // Predicated region
        $region37: #{arnn_forward.5} parent=35 // pred_check
          %p1328 = pneg %p137
        $region38: #{arnn_forward.5} parent=35 // pred_check_branch
          %1330 = sbr.rel (%p1328) target = $region40
        $region39: #{arnn_forward.5} parent=35 // pred_region
          %s1332 = ssub.s32 256, 256
          %1333 = vsyncadd %s1320, %s1332
          %s1334 = smul.addr %s20, 8
          %s1335 = smul.addr %s1334, 32
          %s1336 = scalar_lea.hbm %s4, %s1335
          %s1337 = sshll.u32 %s1323, 4
          %s1338 = int_to_ptr.vmem [resolvable:$true] %s1337
          %1343 = dma.vmem_to_hbm [thread:$0]  %s1338, 256, %s1336, %s1320, 32, 32, 2
        $region40: #{arnn_forward.5} parent=35 // pred_fallthru
          _
        // Predicated region
        $region41: #{arnn_forward.5} parent=35 // pred_check
          %p1344 = pneg %p163
        $region42: #{arnn_forward.5} parent=35 // pred_check_branch
          %1346 = sbr.rel (%p1344) target = $region44
        $region43: #{arnn_forward.5} parent=35 // pred_region
          _
        $region44: #{arnn_forward.5} parent=35 // pred_fallthru
          _
      $region36: #{arnn_forward.5} parent=5 // pred_fallthru
        _
      %p1347 = scmp.le.s32.totalorder 2, %s15
      // Predicated region
      $region45: #{arnn_forward.5} parent=5 // pred_check
        %p1348 = pneg %p1347
      $region46: #{arnn_forward.5} parent=5 // pred_check_branch
        %1350 = sbr.rel (%p1348) target = $region48
      $region47: #{arnn_forward.5} parent=5 // pred_region
        %s1351 = ssub.s32 %s15, 2
        // Predicated region
        $region49: #{arnn_forward.5} parent=47 // pred_check
          %p1352 = pneg %p143
        $region50: #{arnn_forward.5} parent=47 // pred_check_branch
          %1354 = sbr.rel (%p1352) target = $region52
        $region51: #{arnn_forward.5} parent=47 // pred_region
          %s1355 = sand.u32 %s128, 1
          %s1356 = scalar_lea.sflag [#allocation4], %s1355
          %s1357 = sand.u32 %s128, 1
          %s1358 = smul.addr %s1357, 16
          %s1359 = scalar_lea.vmem [#allocation3], %s1358
          %1360 = dma.done %s1356, 256
        $region52: #{arnn_forward.5} parent=47 // pred_fallthru
          _
        // Predicated region
        $region53: #{arnn_forward.5} parent=47 // pred_check
          %p1361 = pneg %p169
        $region54: #{arnn_forward.5} parent=47 // pred_check_branch
          %1363 = sbr.rel (%p1361) target = $region56
        $region55: #{arnn_forward.5} parent=47 // pred_region
          %p1364 = scmp.lt.s32.totalorder %s21, 1
          %s1365 = scalar_select %p1364, %s21, 1
          %s1366 = smul.addr %s1365, 2
          %s1367 = scalar_lea.vmem %s5, %s1366
        $region56: #{arnn_forward.5} parent=47 // pred_fallthru
          _
      $region48: #{arnn_forward.5} parent=5 // pred_fallthru
        _
    $region6: #{arnn_forward.5} parent=1 // loop_footer
      %s19 = sadd.s32 1, %s15
    $region7: #{arnn_forward.5} parent=1 // loop_footer_branch
      %14 = sbr.rel target = $region3
    $region8: #{arnn_forward.5} parent=1 // loop_exit
      _
    %1368 = vsyncpa [#allocation4], 1
    %s1369 = scalar_lea.sflag [#allocation4], 1
    %1370 = vsyncpa %s1369, 1

</llo_original>
